<compile_context>
chip_gen: v7x
topology: tpu7x:2x2x1
jax: 0.10.0
libtpu: 0.0.40
codegen_flags: <defaults>
</compile_context>

<pallas_src>
import functools

import numpy as np
import jax
import jax.numpy as jnp
from jax.experimental import pallas as pl
from jax.experimental.pallas import tpu as pltpu


def _fixed_kernel_loss_kernel(w_ref, patches_ref, pool_ref, o_ref, *,
                              n_images, inv_denom):
    # w_ref       : VMEM (Cout, Cin*9+1)      conv weights, bias folded in as last column
    # patches_ref : VMEM (2N, Cin*9+1, H*W)   per-image im2col, [pred_0..pred_{N-1} | tgt_0..tgt_{N-1}]
    # pool_ref    : VMEM (H*W, Hh*Wh)         shared 2x2/stride-2 avg-pool matrix (0.25 entries)
    # o_ref       : SMEM (1, 1)               scalar MSE output
    w = w_ref[...]
    pool = pool_ref[...]
    total = jnp.zeros((), jnp.float32)
    # Static tiny trip count (N images); all MXU work is plain 2-D matmuls with a
    # lane-dense (H*W) minor dim.
    for n in range(n_images):
        a_pred = jnp.maximum(
            jnp.dot(w, patches_ref[n],
                    precision=jax.lax.Precision.HIGHEST,
                    preferred_element_type=jnp.float32), 0.0)            # (Cout, H*W)
        a_true = jnp.maximum(
            jnp.dot(w, patches_ref[n + n_images],
                    precision=jax.lax.Precision.HIGHEST,
                    preferred_element_type=jnp.float32), 0.0)            # (Cout, H*W)
        d = a_pred - a_true                       # VPU subtract before pooling (exact: pool is linear)
        pooled = jnp.dot(d, pool,
                         precision=jax.lax.Precision.HIGHEST,
                         preferred_element_type=jnp.float32)             # (Cout, Hh*Wh)
        total = total + jnp.sum(pooled * pooled)
    o_ref[0, 0] = total * inv_denom


@functools.lru_cache(maxsize=None)
def _avg_pool_matrix(h, w):
    """Shared (H*W, Hh*Wh) average-pool matrix for AvgPool2d(2,2); cached per shape."""
    hh, wh = h // 2, w // 2
    pool = np.zeros((h * w, hh * wh), np.float32)
    rows = np.arange(h * w)
    cols = (rows // w // 2) * wh + (rows % w) // 2
    pool[rows, cols] = 0.25
    return pool


@jax.jit
def fixed_kernel_loss(y_pred, y, weight, bias):
    """y_pred, y: (N, 3, H, W) float32; weight: (6, 3, 3, 3); bias: (6,)."""
    N, Cin, H, W = y_pred.shape
    Cout = weight.shape[0]
    assert H % 2 == 0 and W % 2 == 0 and H >= 2 and W >= 2, "AvgPool2d(2,2) needs even H, W"
    Hh, Wh = H // 2, W // 2
    HW, HhWh = H * W, Hh * Wh
    K = Cin * 9 + 1
    # Lane-density note: H*W = 256 here is a multiple of 128 (dense vregs). Smaller or
    # odd spatial sizes still work, just with masked partial vregs.

    # --- per-image im2col, built directly in final row order (no transpose) ---
    x2 = jnp.concatenate([y_pred, y], axis=0).astype(jnp.float32)        # (2N, Cin, H, W)
    xpad = jnp.pad(x2, ((0, 0), (0, 0), (1, 1), (1, 1)))                 # (2N, Cin, H+2, W+2)
    taps = [xpad[:, :, kh:kh + H, kw:kw + W] for kh in range(3) for kw in range(3)]
    p = jnp.stack(taps, axis=2)                                          # (2N, Cin, 9, H, W)
    p = p.reshape(2 * N, Cin * 9, HW)                                    # row = ci*9 + kh*3 + kw
    patches = jnp.concatenate(
        [p, jnp.ones((2 * N, 1, HW), jnp.float32)], axis=1)              # (2N, K, H*W)

    # conv weights with bias folded in (row ordering matches patches rows)
    w28 = jnp.concatenate(
        [weight.astype(jnp.float32).reshape(Cout, Cin * 9),
         bias.astype(jnp.float32)[:, None]], axis=1)                     # (Cout, K)

    pool = jnp.asarray(_avg_pool_matrix(H, W))                           # (H*W, Hh*Wh)

    inv_denom = 1.0 / float(N * Cout * HhWh)
    vmem = pl.BlockSpec(memory_space=pltpu.MemorySpace.VMEM)
    cost = pl.CostEstimate(
        flops=int(2 * (2 * N) * Cout * K * HW + 2 * N * Cout * HW * HhWh),
        transcendentals=0,
        bytes_accessed=int(4 * (2 * N * K * HW + HW * HhWh + Cout * K + 1)))

    out = pl.pallas_call(
        functools.partial(_fixed_kernel_loss_kernel, n_images=N, inv_denom=inv_denom),
        out_shape=jax.ShapeDtypeStruct((1, 1), jnp.float32),
        in_specs=[vmem, vmem, vmem],
        out_specs=pl.BlockSpec(memory_space=pltpu.MemorySpace.SMEM),
        cost_estimate=cost,
    )(w28, patches, pool)
    return out[0, 0]


def reference_loss(y_pred, y, weight, bias):
    """Pure-JAX reference of the PyTorch forward."""
    def model(x):
        out = jax.lax.conv_general_dilated(
            x.astype(jnp.float32), weight.astype(jnp.float32),
            window_strides=(1, 1), padding=[(1, 1), (1, 1)],
            dimension_numbers=('NCHW', 'OIHW', 'NCHW'),
            precision=jax.lax.Precision.HIGHEST)
        out = out + bias[None, :, None, None]
        out = jnp.maximum(out, 0.0)
        n, c, h, w = out.shape
        return out.reshape(n, c, h // 2, 2, w // 2, 2).mean(axis=(3, 5))
    a = model(y_pred)
    b = model(y)
    return jnp.mean((a - b) ** 2)


def make_fixed_conv_params(key):
    """Deterministic Conv2d(3,6,3) params: default-style uniform init, then the
    first input-channel slices overwritten with the fixed Sobel-like kernels,
    matching FixedKernelLoss.__init__."""
    kw, kb = jax.random.split(key)
    fan_in = 3 * 3 * 3
    bound = 1.0 / np.sqrt(fan_in)
    weight = jax.random.uniform(kw, (6, 3, 3, 3), jnp.float32, -bound, bound)
    bias = jax.random.uniform(kb, (6,), jnp.float32, -bound, bound)
    s1 = jnp.array([[1.0, 0.0, -1.0], [2.0, 0.5, -2.0], [1.0, 0.0, -1.0]], jnp.float32)
    s2 = jnp.array([[1.0, 2.0, 1.0], [0.0, 0.5, 0.0], [-1.0, -2.0, -1.0]], jnp.float32)
    weight = weight.at[0:3, 0].set(s1)   # out channels 0..2, in channel 0
    weight = weight.at[3:6, 0].set(s2)   # out channels 3..5, in channel 0
    return weight, bias


if __name__ == "__main__":
    # TODO(synk): plot_feature_map (matplotlib/file-IO side effect every 100 calls) and
    # the stateful call counter `self.i` are not translated — only the loss math is.
    key = jax.random.PRNGKey(0)
    k_params, k_pred, k_true = jax.random.split(key, 3)

    weight, bias = make_fixed_conv_params(k_params)

    N, C, H, W = 2, 3, 16, 16
    y_pred = jax.random.normal(k_pred, (N, C, H, W), jnp.float32)
    y_true = jax.random.normal(k_true, (N, C, H, W), jnp.float32)

    loss = fixed_kernel_loss(y_pred, y_true, weight, bias)
    loss = jax.block_until_ready(loss)

    ref = jax.block_until_ready(reference_loss(y_pred, y_true, weight, bias))
    assert np.allclose(np.asarray(loss), np.asarray(ref), rtol=1e-3, atol=1e-4), (
        f"mismatch: pallas={float(loss)} ref={float(ref)}")

    print("KERNEL_OK")
</pallas_src>

<mosaic_0001>
module attributes {stable_mosaic.version = 11 : i64} {
  func.func @_fixed_kernel_loss_kernel(%arg0: memref<6x28xf32, #tpu.memory_space<vmem>>, %arg1: memref<4x28x256xf32, #tpu.memory_space<vmem>>, %arg2: memref<256x64xf32, #tpu.memory_space<vmem>>, %arg3: memref<1x1xf32, #tpu.memory_space<smem>>) attributes {dimension_semantics = [], scalar_prefetch = 0 : i64, scratch_operands = 0 : i64, tpu.core_type = #tpu.core_type<tc>} {
    %c0 = arith.constant 0 : index
    %c0_0 = arith.constant 0 : index
    %0 = vector.load %arg0[%c0, %c0_0] : memref<6x28xf32, #tpu.memory_space<vmem>>, vector<6x28xf32>
    %c0_1 = arith.constant 0 : index
    %c0_2 = arith.constant 0 : index
    %1 = vector.load %arg2[%c0_1, %c0_2] : memref<256x64xf32, #tpu.memory_space<vmem>>, vector<256x64xf32>
    %c0_3 = arith.constant 0 : index
    %c0_4 = arith.constant 0 : index
    %c0_5 = arith.constant 0 : index
    %2 = vector.load %arg1[%c0_3, %c0_4, %c0_5] : memref<4x28x256xf32, #tpu.memory_space<vmem>>, vector<1x28x256xf32>
    %3 = vector.shape_cast %2 : vector<1x28x256xf32> to vector<28x256xf32>
    %cst = arith.constant dense<0.000000e+00> : vector<6x256xf32>
    %4 = tpu.matmul %0, %3, %cst {dimension_numbers = #tpu.dot_dimension_numbers<[1], [0], [0], [1], [0, 0, 1, 1], [], []>, precision = #tpu.contract_precision<fp32>} : vector<6x28xf32>, vector<28x256xf32>, vector<6x256xf32> -> vector<6x256xf32>
    %cst_6 = arith.constant 0.000000e+00 : f32
    %5 = vector.broadcast %cst_6 : f32 to vector<6x256xf32>
    %6 = arith.maximumf %4, %5 : vector<6x256xf32>
    %c2 = arith.constant 2 : index
    %c0_7 = arith.constant 0 : index
    %c0_8 = arith.constant 0 : index
    %7 = vector.load %arg1[%c2, %c0_7, %c0_8] : memref<4x28x256xf32, #tpu.memory_space<vmem>>, vector<1x28x256xf32>
    %8 = vector.shape_cast %7 : vector<1x28x256xf32> to vector<28x256xf32>
    %cst_9 = arith.constant dense<0.000000e+00> : vector<6x256xf32>
    %9 = tpu.matmul %0, %8, %cst_9 {dimension_numbers = #tpu.dot_dimension_numbers<[1], [0], [0], [1], [0, 0, 1, 1], [], []>, precision = #tpu.contract_precision<fp32>} : vector<6x28xf32>, vector<28x256xf32>, vector<6x256xf32> -> vector<6x256xf32>
    %cst_10 = arith.constant 0.000000e+00 : f32
    %10 = vector.broadcast %cst_10 : f32 to vector<6x256xf32>
    %11 = arith.maximumf %9, %10 : vector<6x256xf32>
    %12 = arith.subf %6, %11 : vector<6x256xf32>
    %cst_11 = arith.constant dense<0.000000e+00> : vector<6x64xf32>
    %13 = tpu.matmul %12, %1, %cst_11 {dimension_numbers = #tpu.dot_dimension_numbers<[1], [0], [0], [1], [0, 0, 1, 1], [], []>, precision = #tpu.contract_precision<fp32>} : vector<6x256xf32>, vector<256x64xf32>, vector<6x64xf32> -> vector<6x64xf32>
    %14 = arith.mulf %13, %13 : vector<6x64xf32>
    %15 = vector.shape_cast %14 : vector<6x64xf32> to vector<1x6x64xf32>
    %cst_12 = arith.constant dense<0.000000e+00> : vector<1xf32>
    %16 = vector.multi_reduction <add>, %15, %cst_12 [1, 2] : vector<1x6x64xf32> to vector<1xf32>
    %17 = vector.shape_cast %16 : vector<1xf32> to vector<1x1x1xf32>
    %18 = vector.extract %17[0, 0, 0] : f32 from vector<1x1x1xf32>
    %cst_13 = arith.constant 0.000000e+00 : f32
    %19 = arith.addf %cst_13, %18 : f32
    %c1 = arith.constant 1 : index
    %c0_14 = arith.constant 0 : index
    %c0_15 = arith.constant 0 : index
    %20 = vector.load %arg1[%c1, %c0_14, %c0_15] : memref<4x28x256xf32, #tpu.memory_space<vmem>>, vector<1x28x256xf32>
    %21 = vector.shape_cast %20 : vector<1x28x256xf32> to vector<28x256xf32>
    %cst_16 = arith.constant dense<0.000000e+00> : vector<6x256xf32>
    %22 = tpu.matmul %0, %21, %cst_16 {dimension_numbers = #tpu.dot_dimension_numbers<[1], [0], [0], [1], [0, 0, 1, 1], [], []>, precision = #tpu.contract_precision<fp32>} : vector<6x28xf32>, vector<28x256xf32>, vector<6x256xf32> -> vector<6x256xf32>
    %cst_17 = arith.constant 0.000000e+00 : f32
    %23 = vector.broadcast %cst_17 : f32 to vector<6x256xf32>
    %24 = arith.maximumf %22, %23 : vector<6x256xf32>
    %c3 = arith.constant 3 : index
    %c0_18 = arith.constant 0 : index
    %c0_19 = arith.constant 0 : index
    %25 = vector.load %arg1[%c3, %c0_18, %c0_19] : memref<4x28x256xf32, #tpu.memory_space<vmem>>, vector<1x28x256xf32>
    %26 = vector.shape_cast %25 : vector<1x28x256xf32> to vector<28x256xf32>
    %cst_20 = arith.constant dense<0.000000e+00> : vector<6x256xf32>
    %27 = tpu.matmul %0, %26, %cst_20 {dimension_numbers = #tpu.dot_dimension_numbers<[1], [0], [0], [1], [0, 0, 1, 1], [], []>, precision = #tpu.contract_precision<fp32>} : vector<6x28xf32>, vector<28x256xf32>, vector<6x256xf32> -> vector<6x256xf32>
    %cst_21 = arith.constant 0.000000e+00 : f32
    %28 = vector.broadcast %cst_21 : f32 to vector<6x256xf32>
    %29 = arith.maximumf %27, %28 : vector<6x256xf32>
    %30 = arith.subf %24, %29 : vector<6x256xf32>
    %cst_22 = arith.constant dense<0.000000e+00> : vector<6x64xf32>
    %31 = tpu.matmul %30, %1, %cst_22 {dimension_numbers = #tpu.dot_dimension_numbers<[1], [0], [0], [1], [0, 0, 1, 1], [], []>, precision = #tpu.contract_precision<fp32>} : vector<6x256xf32>, vector<256x64xf32>, vector<6x64xf32> -> vector<6x64xf32>
    %32 = arith.mulf %31, %31 : vector<6x64xf32>
    %33 = vector.shape_cast %32 : vector<6x64xf32> to vector<1x6x64xf32>
    %cst_23 = arith.constant dense<0.000000e+00> : vector<1xf32>
    %34 = vector.multi_reduction <add>, %33, %cst_23 [1, 2] : vector<1x6x64xf32> to vector<1xf32>
    %35 = vector.shape_cast %34 : vector<1xf32> to vector<1x1x1xf32>
    %36 = vector.extract %35[0, 0, 0] : f32 from vector<1x1x1xf32>
    %37 = arith.addf %19, %36 : f32
    %cst_24 = arith.constant 0.00130208337 : f32
    %38 = arith.mulf %37, %cst_24 : f32
    %c0_25 = arith.constant 0 : index
    %c0_26 = arith.constant 0 : index
    %39 = memref.load %arg3[%c0_25, %c0_26] : memref<1x1xf32, #tpu.memory_space<smem>>
    memref.store %38, %arg3[%c0_25, %c0_26] : memref<1x1xf32, #tpu.memory_space<smem>>
    return
  }
}

</mosaic_0001>

<llo_original>
// kernel: fixed_kernel_loss.1
$region0: #{fixed_kernel_loss.1}
  #allocation0 [shape = 'u32[]', space=smem, size = 0x4, offset = 0x4, fixed_abs, tag = 'smem constant byte address 0x4 - core index']
  #allocation1 [shape = 'u32[144,128]{1,0:T(1,128)}', space=vmem, size = 0x12000, scoped, tag = 'internal scratch']
  %s0 = inlined_call_operand.vmem [shape: f32[6,28], index: 0, kind: input, shape index: {}]
  %s1 = inlined_call_operand.vmem [shape: f32[4,28,256], index: 1, kind: input, shape index: {}]
  %s2 = inlined_call_operand.vmem [shape: f32[256,64], index: 2, kind: input, shape index: {}]
  %s3 = inlined_call_operand.hbm [shape: f32[1,1], index: 3, kind: output, shape index: {}]
  %s4 = sld [smem:[#allocation0]]
  $region22: #{fixed_kernel_loss.1} parent=0
    _
  %s6 = ssub.s32 1, %s4
  %s7 = scalar_select 0, %s6, %s4
  $region1: #{fixed_kernel_loss.1} parent=0
    #allocation2 [shape = 'u8[512]{0}', space=smem, size = 0x200, scoped, tag = 'output window, operand 0, single buffered']
    #allocation3 [shape = 's32[1]{0}', space=sflag, size = 0x4, scoped, tag = 'scoped memory for fixed_kernel_loss.1']
    %8 = vsyncpa [#allocation3], 0
    // Predicated region
    $region2: #{fixed_kernel_loss.1} parent=1 // pred_check
      _
    $region3: #{fixed_kernel_loss.1} parent=1 // pred_check_branch
      %10 = sbr.rel (0) target = $region5
    $region4: #{fixed_kernel_loss.1} parent=1 // pred_region
      _
    $region5: #{fixed_kernel_loss.1} parent=1 // pred_fallthru
      _
    // Predicated region
    $region6: #{fixed_kernel_loss.1} parent=1 // pred_check
      _
    $region7: #{fixed_kernel_loss.1} parent=1 // pred_check_branch
      %12 = sbr.rel (0) target = $region9
    $region8: #{fixed_kernel_loss.1} parent=1 // pred_region
      _
    $region9: #{fixed_kernel_loss.1} parent=1 // pred_fallthru
      _
    // Predicated region
    $region10: #{fixed_kernel_loss.1} parent=1 // pred_check
      _
    $region11: #{fixed_kernel_loss.1} parent=1 // pred_check_branch
      %14 = sbr.rel (0) target = $region13
    $region12: #{fixed_kernel_loss.1} parent=1 // pred_region
      _
    $region13: #{fixed_kernel_loss.1} parent=1 // pred_fallthru
      _
    %v15 = vld [vmem:[%s0] sm:$0x3f]
    %v16 = vld [vmem:[%s2] sm:$0xff]
    %v17 = vld [vmem:[%s2 + $0x8] sm:$0xff]
    %v18 = vld [vmem:[%s2 + $0x10] sm:$0xff]
    %v19 = vld [vmem:[%s2 + $0x18] sm:$0xff]
    %v20 = vld [vmem:[%s2 + $0x20] sm:$0xff]
    %v21 = vld [vmem:[%s2 + $0x28] sm:$0xff]
    %v22 = vld [vmem:[%s2 + $0x30] sm:$0xff]
    %v23 = vld [vmem:[%s2 + $0x38] sm:$0xff]
    %v24 = vld [vmem:[%s2 + $0x40] sm:$0xff]
    %v25 = vld [vmem:[%s2 + $0x48] sm:$0xff]
    %v26 = vld [vmem:[%s2 + $0x50] sm:$0xff]
    %v27 = vld [vmem:[%s2 + $0x58] sm:$0xff]
    %v28 = vld [vmem:[%s2 + $0x60] sm:$0xff]
    %v29 = vld [vmem:[%s2 + $0x68] sm:$0xff]
    %v30 = vld [vmem:[%s2 + $0x70] sm:$0xff]
    %v31 = vld [vmem:[%s2 + $0x78] sm:$0xff]
    %v32 = vld [vmem:[%s2 + $0x80] sm:$0xff]
    %v33 = vld [vmem:[%s2 + $0x88] sm:$0xff]
    %v34 = vld [vmem:[%s2 + $0x90] sm:$0xff]
    %v35 = vld [vmem:[%s2 + $0x98] sm:$0xff]
    %v36 = vld [vmem:[%s2 + $0xa0] sm:$0xff]
    %v37 = vld [vmem:[%s2 + $0xa8] sm:$0xff]
    %v38 = vld [vmem:[%s2 + $0xb0] sm:$0xff]
    %v39 = vld [vmem:[%s2 + $0xb8] sm:$0xff]
    %v40 = vld [vmem:[%s2 + $0xc0] sm:$0xff]
    %v41 = vld [vmem:[%s2 + $0xc8] sm:$0xff]
    %v42 = vld [vmem:[%s2 + $0xd0] sm:$0xff]
    %v43 = vld [vmem:[%s2 + $0xd8] sm:$0xff]
    %v44 = vld [vmem:[%s2 + $0xe0] sm:$0xff]
    %v45 = vld [vmem:[%s2 + $0xe8] sm:$0xff]
    %v46 = vld [vmem:[%s2 + $0xf0] sm:$0xff]
    %v47 = vld [vmem:[%s2 + $0xf8] sm:$0xff]
    %v48 = vld [vmem:[%s1] sm:$0xff]
    %v49 = vld [vmem:[%s1 + $0x8] sm:$0xff]
    %v50 = vld [vmem:[%s1 + $0x10] sm:$0xff]
    %v51 = vld [vmem:[%s1 + $0x18] sm:$0xff]
    %v52 = vld [vmem:[%s1 + $0x20] sm:$0xff]
    %v53 = vld [vmem:[%s1 + $0x28] sm:$0xff]
    %v54 = vld [vmem:[%s1 + $0x30] sm:$0xf]
    %v55 = vld [vmem:[%s1 + $0x38] sm:$0xf]
    %vm56 = vcmask 228352
    %v58 = vsel %vm56, %v15, 0
    %vm60 = vcmask 1043456
    %v62 = vsel %vm60, %v54, 0
    %v65 = vsel %vm60, %v55, 0
    %v67 = vand.u32 %v49, 4294901760
    %68 = vmatprep.subr.mxu0 %v67
    %v69 = vand.u32 %v48, 4294901760
    %70 = vmatpush1.msra.mxu0 %v69
    %v71 = vand.u32 %v51, 4294901760
    %72 = vmatprep.subr.mxu0 %v71
    %v73 = vand.u32 %v50, 4294901760
    %74 = vmatpush1.msra.mxu0 %v73
    %v75 = vand.u32 %v53, 4294901760
    %76 = vmatprep.subr.mxu0 %v75
    %v77 = vand.u32 %v52, 4294901760
    %78 = vmatpush1.msra.mxu0 %v77
    %v79 = vand.u32 %v65, 4294901760
    %80 = vmatprep.subr.mxu0 %v79
    %v81 = vand.u32 %v62, 4294901760
    %82 = vmatpush1.msra.mxu0 %v81
    %83 = vmatprep.subr.mxu0 0.0
    %84 = vmatpush1.msra.mxu0 0.0
    %85 = vmatprep.subr.mxu0 0.0
    %86 = vmatpush1.msra.mxu0 0.0
    %87 = vmatprep.subr.mxu0 0.0
    %88 = vmatpush1.msra.mxu0 0.0
    %89 = vmatprep.subr.mxu0 0.0
    %90 = vmatpush1.msra.mxu0 0.0
    %91 = vmatprep.subr.mxu0 0.0
    %92 = vmatpush1.msra.mxu0 0.0
    %93 = vmatprep.subr.mxu0 0.0
    %94 = vmatpush1.msra.mxu0 0.0
    %95 = vmatprep.subr.mxu0 0.0
    %96 = vmatpush1.msra.mxu0 0.0
    %97 = vmatprep.subr.mxu0 0.0
    %98 = vmatpush1.msra.mxu0 0.0
    %99 = vmatprep.subr.mxu0 0.0
    %100 = vmatpush1.msra.mxu0 0.0
    %101 = vmatprep.subr.mxu0 0.0
    %102 = vmatpush1.msra.mxu0 0.0
    %103 = vmatprep.subr.mxu0 0.0
    %104 = vmatpush1.msra.mxu0 0.0
    %105 = vmatprep.subr.mxu0 0.0
    %106 = vmatpush1.msra.mxu0 0.0
    %107 = vmatprep.subr.mxu0 0.0
    %108 = vmatpush1.msra.mxu0 0.0
    %109 = vmatprep.subr.mxu0 0.0
    %110 = vmatpush1.msra.mxu0 0.0
    %111 = vmatprep.subr.mxu0 0.0
    %112 = vmatpush1.msra.mxu0 0.0
    %113 = vmatprep.subr.mxu0 0.0
    %114 = vmatpush1.msra.mxu0 0.0
    %115 = vmatprep.subr.mxu0 0.0
    %116 = vmatpush1.msra.mxu0 0.0
    %117 = vmatprep.subr.mxu0 0.0
    %118 = vmatpush1.msra.mxu0 0.0
    %119 = vmatprep.subr.mxu0 0.0
    %120 = vmatpush1.msra.mxu0 0.0
    %121 = vmatprep.subr.mxu0 0.0
    %122 = vmatpush1.msra.mxu0 0.0
    %123 = vmatprep.subr.mxu0 0.0
    %124 = vmatpush1.msra.mxu0 0.0
    %125 = vmatprep.subr.mxu0 0.0
    %126 = vmatpush1.msra.mxu0 0.0
    %127 = vmatprep.subr.mxu0 0.0
    %128 = vmatpush1.msra.mxu0 0.0
    %129 = vmatprep.subr.mxu0 0.0
    %130 = vmatpush1.msra.mxu0 0.0
    %131 = vmatprep.subr.mxu0 0.0
    %132 = vmatpush1.msra.mxu0 0.0
    %133 = vmatprep.subr.mxu0 0.0
    %134 = vmatpush1.msra.mxu0 0.0
    %135 = vmatprep.subr.mxu0 0.0
    %136 = vmatpush1.msra.mxu0 0.0
    %137 = vmatprep.subr.mxu0 0.0
    %138 = vmatpush1.msra.mxu0 0.0
    %139 = vmatprep.mubr.f32.mxu0 0.0
    %v140 = vand.u32 %v58, 4294901760
    %v141 = vsub.f32 %v58, %v140
    %v142 = vand.u32 %v141, 4294901760
    %v143 = vsub.f32 %v141, %v142
    %v144 = vand.u32 %v143, 4294901760
    %145 = vmatmul.mubr.f32.gmra.mrb[0].mxu0 %v144
    %v146 = vpop.f32.mrb[0].mxu0
    %v147 = vadd.f32 0.0, %v146
    %v148 = vpop.f32.mrb[0].mxu0
    %v149 = vadd.f32 0.0, %v148
    %150 = vdwg.mxu0
    %v151 = vand.u32 %v49, 4294901760
    %v152 = vsub.f32 %v49, %v151
    %v153 = vand.u32 %v152, 4294901760
    %v154 = vsub.f32 %v152, %v153
    %v155 = vand.u32 %v154, 4294901760
    %156 = vmatprep.subr.mxu0 %v155
    %v157 = vand.u32 %v48, 4294901760
    %v158 = vsub.f32 %v48, %v157
    %v159 = vand.u32 %v158, 4294901760
    %v160 = vsub.f32 %v158, %v159
    %v161 = vand.u32 %v160, 4294901760
    %162 = vmatpush1.msra.mxu0 %v161
    %v163 = vand.u32 %v51, 4294901760
    %v164 = vsub.f32 %v51, %v163
    %v165 = vand.u32 %v164, 4294901760
    %v166 = vsub.f32 %v164, %v165
    %v167 = vand.u32 %v166, 4294901760
    %168 = vmatprep.subr.mxu0 %v167
    %v169 = vand.u32 %v50, 4294901760
    %v170 = vsub.f32 %v50, %v169
    %v171 = vand.u32 %v170, 4294901760
    %v172 = vsub.f32 %v170, %v171
    %v173 = vand.u32 %v172, 4294901760
    %174 = vmatpush1.msra.mxu0 %v173
    %v175 = vand.u32 %v53, 4294901760
    %v176 = vsub.f32 %v53, %v175
    %v177 = vand.u32 %v176, 4294901760
    %v178 = vsub.f32 %v176, %v177
    %v179 = vand.u32 %v178, 4294901760
    %180 = vmatprep.subr.mxu0 %v179
    %v181 = vand.u32 %v52, 4294901760
    %v182 = vsub.f32 %v52, %v181
    %v183 = vand.u32 %v182, 4294901760
    %v184 = vsub.f32 %v182, %v183
    %v185 = vand.u32 %v184, 4294901760
    %186 = vmatpush1.msra.mxu0 %v185
    %v187 = vand.u32 %v65, 4294901760
    %v188 = vsub.f32 %v65, %v187
    %v189 = vand.u32 %v188, 4294901760
    %v190 = vsub.f32 %v188, %v189
    %v191 = vand.u32 %v190, 4294901760
    %192 = vmatprep.subr.mxu0 %v191
    %v193 = vand.u32 %v62, 4294901760
    %v194 = vsub.f32 %v62, %v193
    %v195 = vand.u32 %v194, 4294901760
    %v196 = vsub.f32 %v194, %v195
    %v197 = vand.u32 %v196, 4294901760
    %198 = vmatpush1.msra.mxu0 %v197
    %199 = vmatprep.subr.mxu0 0.0
    %200 = vmatpush1.msra.mxu0 0.0
    %201 = vmatprep.subr.mxu0 0.0
    %202 = vmatpush1.msra.mxu0 0.0
    %203 = vmatprep.subr.mxu0 0.0
    %204 = vmatpush1.msra.mxu0 0.0
    %205 = vmatprep.subr.mxu0 0.0
    %206 = vmatpush1.msra.mxu0 0.0
    %207 = vmatprep.subr.mxu0 0.0
    %208 = vmatpush1.msra.mxu0 0.0
    %209 = vmatprep.subr.mxu0 0.0
    %210 = vmatpush1.msra.mxu0 0.0
    %211 = vmatprep.subr.mxu0 0.0
    %212 = vmatpush1.msra.mxu0 0.0
    %213 = vmatprep.subr.mxu0 0.0
    %214 = vmatpush1.msra.mxu0 0.0
    %215 = vmatprep.subr.mxu0 0.0
    %216 = vmatpush1.msra.mxu0 0.0
    %217 = vmatprep.subr.mxu0 0.0
    %218 = vmatpush1.msra.mxu0 0.0
    %219 = vmatprep.subr.mxu0 0.0
    %220 = vmatpush1.msra.mxu0 0.0
    %221 = vmatprep.subr.mxu0 0.0
    %222 = vmatpush1.msra.mxu0 0.0
    %223 = vmatprep.subr.mxu0 0.0
    %224 = vmatpush1.msra.mxu0 0.0
    %225 = vmatprep.subr.mxu0 0.0
    %226 = vmatpush1.msra.mxu0 0.0
    %227 = vmatprep.subr.mxu0 0.0
    %228 = vmatpush1.msra.mxu0 0.0
    %229 = vmatprep.subr.mxu0 0.0
    %230 = vmatpush1.msra.mxu0 0.0
    %231 = vmatprep.subr.mxu0 0.0
    %232 = vmatpush1.msra.mxu0 0.0
    %233 = vmatprep.subr.mxu0 0.0
    %234 = vmatpush1.msra.mxu0 0.0
    %235 = vmatprep.subr.mxu0 0.0
    %236 = vmatpush1.msra.mxu0 0.0
    %237 = vmatprep.subr.mxu0 0.0
    %238 = vmatpush1.msra.mxu0 0.0
    %239 = vmatprep.subr.mxu0 0.0
    %240 = vmatpush1.msra.mxu0 0.0
    %241 = vmatprep.subr.mxu0 0.0
    %242 = vmatpush1.msra.mxu0 0.0
    %243 = vmatprep.subr.mxu0 0.0
    %244 = vmatpush1.msra.mxu0 0.0
    %245 = vmatprep.subr.mxu0 0.0
    %246 = vmatpush1.msra.mxu0 0.0
    %247 = vmatprep.subr.mxu0 0.0
    %248 = vmatpush1.msra.mxu0 0.0
    %249 = vmatprep.subr.mxu0 0.0
    %250 = vmatpush1.msra.mxu0 0.0
    %251 = vmatprep.subr.mxu0 0.0
    %252 = vmatpush1.msra.mxu0 0.0
    %253 = vmatprep.subr.mxu0 0.0
    %254 = vmatpush1.msra.mxu0 0.0
    %255 = vmatprep.mubr.f32.mxu0 0.0
    %v256 = vand.u32 %v58, 4294901760
    %257 = vmatmul.mubr.f32.gmra.mrb[0].mxu0 %v256
    %v258 = vpop.f32.mrb[0].mxu0
    %v259 = vadd.f32 %v147, %v258
    %v260 = vpop.f32.mrb[0].mxu0
    %v261 = vadd.f32 %v149, %v260
    %262 = vdwg.mxu0
    %v263 = vand.u32 %v49, 4294901760
    %v264 = vsub.f32 %v49, %v263
    %265 = vmatprep.subr.mxu0 %v264
    %v266 = vand.u32 %v48, 4294901760
    %v267 = vsub.f32 %v48, %v266
    %268 = vmatpush1.msra.mxu0 %v267
    %v269 = vand.u32 %v51, 4294901760
    %v270 = vsub.f32 %v51, %v269
    %271 = vmatprep.subr.mxu0 %v270
    %v272 = vand.u32 %v50, 4294901760
    %v273 = vsub.f32 %v50, %v272
    %274 = vmatpush1.msra.mxu0 %v273
    %v275 = vand.u32 %v53, 4294901760
    %v276 = vsub.f32 %v53, %v275
    %277 = vmatprep.subr.mxu0 %v276
    %v278 = vand.u32 %v52, 4294901760
    %v279 = vsub.f32 %v52, %v278
    %280 = vmatpush1.msra.mxu0 %v279
    %v281 = vand.u32 %v65, 4294901760
    %v282 = vsub.f32 %v65, %v281
    %283 = vmatprep.subr.mxu0 %v282
    %v284 = vand.u32 %v62, 4294901760
    %v285 = vsub.f32 %v62, %v284
    %286 = vmatpush1.msra.mxu0 %v285
    %287 = vmatprep.subr.mxu0 0.0
    %288 = vmatpush1.msra.mxu0 0.0
    %289 = vmatprep.subr.mxu0 0.0
    %290 = vmatpush1.msra.mxu0 0.0
    %291 = vmatprep.subr.mxu0 0.0
    %292 = vmatpush1.msra.mxu0 0.0
    %293 = vmatprep.subr.mxu0 0.0
    %294 = vmatpush1.msra.mxu0 0.0
    %295 = vmatprep.subr.mxu0 0.0
    %296 = vmatpush1.msra.mxu0 0.0
    %297 = vmatprep.subr.mxu0 0.0
    %298 = vmatpush1.msra.mxu0 0.0
    %299 = vmatprep.subr.mxu0 0.0
    %300 = vmatpush1.msra.mxu0 0.0
    %301 = vmatprep.subr.mxu0 0.0
    %302 = vmatpush1.msra.mxu0 0.0
    %303 = vmatprep.subr.mxu0 0.0
    %304 = vmatpush1.msra.mxu0 0.0
    %305 = vmatprep.subr.mxu0 0.0
    %306 = vmatpush1.msra.mxu0 0.0
    %307 = vmatprep.subr.mxu0 0.0
    %308 = vmatpush1.msra.mxu0 0.0
    %309 = vmatprep.subr.mxu0 0.0
    %310 = vmatpush1.msra.mxu0 0.0
    %311 = vmatprep.subr.mxu0 0.0
    %312 = vmatpush1.msra.mxu0 0.0
    %313 = vmatprep.subr.mxu0 0.0
    %314 = vmatpush1.msra.mxu0 0.0
    %315 = vmatprep.subr.mxu0 0.0
    %316 = vmatpush1.msra.mxu0 0.0
    %317 = vmatprep.subr.mxu0 0.0
    %318 = vmatpush1.msra.mxu0 0.0
    %319 = vmatprep.subr.mxu0 0.0
    %320 = vmatpush1.msra.mxu0 0.0
    %321 = vmatprep.subr.mxu0 0.0
    %322 = vmatpush1.msra.mxu0 0.0
    %323 = vmatprep.subr.mxu0 0.0
    %324 = vmatpush1.msra.mxu0 0.0
    %325 = vmatprep.subr.mxu0 0.0
    %326 = vmatpush1.msra.mxu0 0.0
    %327 = vmatprep.subr.mxu0 0.0
    %328 = vmatpush1.msra.mxu0 0.0
    %329 = vmatprep.subr.mxu0 0.0
    %330 = vmatpush1.msra.mxu0 0.0
    %331 = vmatprep.subr.mxu0 0.0
    %332 = vmatpush1.msra.mxu0 0.0
    %333 = vmatprep.subr.mxu0 0.0
    %334 = vmatpush1.msra.mxu0 0.0
    %335 = vmatprep.subr.mxu0 0.0
    %336 = vmatpush1.msra.mxu0 0.0
    %337 = vmatprep.subr.mxu0 0.0
    %338 = vmatpush1.msra.mxu0 0.0
    %339 = vmatprep.subr.mxu0 0.0
    %340 = vmatpush1.msra.mxu0 0.0
    %341 = vmatprep.subr.mxu0 0.0
    %342 = vmatpush1.msra.mxu0 0.0
    %343 = vmatprep.mubr.f32.mxu0 0.0
    %v344 = vand.u32 %v58, 4294901760
    %v345 = vsub.f32 %v58, %v344
    %346 = vmatmul.mubr.f32.gmra.mrb[0].mxu0 %v345
    %v347 = vpop.f32.mrb[0].mxu0
    %v348 = vadd.f32 %v259, %v347
    %v349 = vpop.f32.mrb[0].mxu0
    %v350 = vadd.f32 %v261, %v349
    %351 = vdwg.mxu0
    %v352 = vand.u32 %v49, 4294901760
    %353 = vmatprep.subr.mxu0 %v352
    %v354 = vand.u32 %v48, 4294901760
    %355 = vmatpush1.msra.mxu0 %v354
    %v356 = vand.u32 %v51, 4294901760
    %357 = vmatprep.subr.mxu0 %v356
    %v358 = vand.u32 %v50, 4294901760
    %359 = vmatpush1.msra.mxu0 %v358
    %v360 = vand.u32 %v53, 4294901760
    %361 = vmatprep.subr.mxu0 %v360
    %v362 = vand.u32 %v52, 4294901760
    %363 = vmatpush1.msra.mxu0 %v362
    %v364 = vand.u32 %v65, 4294901760
    %365 = vmatprep.subr.mxu0 %v364
    %v366 = vand.u32 %v62, 4294901760
    %367 = vmatpush1.msra.mxu0 %v366
    %368 = vmatprep.subr.mxu0 0.0
    %369 = vmatpush1.msra.mxu0 0.0
    %370 = vmatprep.subr.mxu0 0.0
    %371 = vmatpush1.msra.mxu0 0.0
    %372 = vmatprep.subr.mxu0 0.0
    %373 = vmatpush1.msra.mxu0 0.0
    %374 = vmatprep.subr.mxu0 0.0
    %375 = vmatpush1.msra.mxu0 0.0
    %376 = vmatprep.subr.mxu0 0.0
    %377 = vmatpush1.msra.mxu0 0.0
    %378 = vmatprep.subr.mxu0 0.0
    %379 = vmatpush1.msra.mxu0 0.0
    %380 = vmatprep.subr.mxu0 0.0
    %381 = vmatpush1.msra.mxu0 0.0
    %382 = vmatprep.subr.mxu0 0.0
    %383 = vmatpush1.msra.mxu0 0.0
    %384 = vmatprep.subr.mxu0 0.0
    %385 = vmatpush1.msra.mxu0 0.0
    %386 = vmatprep.subr.mxu0 0.0
    %387 = vmatpush1.msra.mxu0 0.0
    %388 = vmatprep.subr.mxu0 0.0
    %389 = vmatpush1.msra.mxu0 0.0
    %390 = vmatprep.subr.mxu0 0.0
    %391 = vmatpush1.msra.mxu0 0.0
    %392 = vmatprep.subr.mxu0 0.0
    %393 = vmatpush1.msra.mxu0 0.0
    %394 = vmatprep.subr.mxu0 0.0
    %395 = vmatpush1.msra.mxu0 0.0
    %396 = vmatprep.subr.mxu0 0.0
    %397 = vmatpush1.msra.mxu0 0.0
    %398 = vmatprep.subr.mxu0 0.0
    %399 = vmatpush1.msra.mxu0 0.0
    %400 = vmatprep.subr.mxu0 0.0
    %401 = vmatpush1.msra.mxu0 0.0
    %402 = vmatprep.subr.mxu0 0.0
    %403 = vmatpush1.msra.mxu0 0.0
    %404 = vmatprep.subr.mxu0 0.0
    %405 = vmatpush1.msra.mxu0 0.0
    %406 = vmatprep.subr.mxu0 0.0
    %407 = vmatpush1.msra.mxu0 0.0
    %408 = vmatprep.subr.mxu0 0.0
    %409 = vmatpush1.msra.mxu0 0.0
    %410 = vmatprep.subr.mxu0 0.0
    %411 = vmatpush1.msra.mxu0 0.0
    %412 = vmatprep.subr.mxu0 0.0
    %413 = vmatpush1.msra.mxu0 0.0
    %414 = vmatprep.subr.mxu0 0.0
    %415 = vmatpush1.msra.mxu0 0.0
    %416 = vmatprep.subr.mxu0 0.0
    %417 = vmatpush1.msra.mxu0 0.0
    %418 = vmatprep.subr.mxu0 0.0
    %419 = vmatpush1.msra.mxu0 0.0
    %420 = vmatprep.subr.mxu0 0.0
    %421 = vmatpush1.msra.mxu0 0.0
    %422 = vmatprep.subr.mxu0 0.0
    %423 = vmatpush1.msra.mxu0 0.0
    %424 = vmatprep.mubr.f32.mxu0 0.0
    %v425 = vand.u32 %v58, 4294901760
    %v426 = vsub.f32 %v58, %v425
    %v427 = vand.u32 %v426, 4294901760
    %428 = vmatmul.mubr.f32.gmra.mrb[0].mxu0 %v427
    %v429 = vpop.f32.mrb[0].mxu0
    %v430 = vadd.f32 %v348, %v429
    %v431 = vpop.f32.mrb[0].mxu0
    %v432 = vadd.f32 %v350, %v431
    %433 = vdwg.mxu0
    %v434 = vand.u32 %v49, 4294901760
    %v435 = vsub.f32 %v49, %v434
    %v436 = vand.u32 %v435, 4294901760
    %437 = vmatprep.subr.mxu0 %v436
    %v438 = vand.u32 %v48, 4294901760
    %v439 = vsub.f32 %v48, %v438
    %v440 = vand.u32 %v439, 4294901760
    %441 = vmatpush1.msra.mxu0 %v440
    %v442 = vand.u32 %v51, 4294901760
    %v443 = vsub.f32 %v51, %v442
    %v444 = vand.u32 %v443, 4294901760
    %445 = vmatprep.subr.mxu0 %v444
    %v446 = vand.u32 %v50, 4294901760
    %v447 = vsub.f32 %v50, %v446
    %v448 = vand.u32 %v447, 4294901760
    %449 = vmatpush1.msra.mxu0 %v448
    %v450 = vand.u32 %v53, 4294901760
    %v451 = vsub.f32 %v53, %v450
    %v452 = vand.u32 %v451, 4294901760
    %453 = vmatprep.subr.mxu0 %v452
    %v454 = vand.u32 %v52, 4294901760
    %v455 = vsub.f32 %v52, %v454
    %v456 = vand.u32 %v455, 4294901760
    %457 = vmatpush1.msra.mxu0 %v456
    %v458 = vand.u32 %v65, 4294901760
    %v459 = vsub.f32 %v65, %v458
    %v460 = vand.u32 %v459, 4294901760
    %461 = vmatprep.subr.mxu0 %v460
    %v462 = vand.u32 %v62, 4294901760
    %v463 = vsub.f32 %v62, %v462
    %v464 = vand.u32 %v463, 4294901760
    %465 = vmatpush1.msra.mxu0 %v464
    %466 = vmatprep.subr.mxu0 0.0
    %467 = vmatpush1.msra.mxu0 0.0
    %468 = vmatprep.subr.mxu0 0.0
    %469 = vmatpush1.msra.mxu0 0.0
    %470 = vmatprep.subr.mxu0 0.0
    %471 = vmatpush1.msra.mxu0 0.0
    %472 = vmatprep.subr.mxu0 0.0
    %473 = vmatpush1.msra.mxu0 0.0
    %474 = vmatprep.subr.mxu0 0.0
    %475 = vmatpush1.msra.mxu0 0.0
    %476 = vmatprep.subr.mxu0 0.0
    %477 = vmatpush1.msra.mxu0 0.0
    %478 = vmatprep.subr.mxu0 0.0
    %479 = vmatpush1.msra.mxu0 0.0
    %480 = vmatprep.subr.mxu0 0.0
    %481 = vmatpush1.msra.mxu0 0.0
    %482 = vmatprep.subr.mxu0 0.0
    %483 = vmatpush1.msra.mxu0 0.0
    %484 = vmatprep.subr.mxu0 0.0
    %485 = vmatpush1.msra.mxu0 0.0
    %486 = vmatprep.subr.mxu0 0.0
    %487 = vmatpush1.msra.mxu0 0.0
    %488 = vmatprep.subr.mxu0 0.0
    %489 = vmatpush1.msra.mxu0 0.0
    %490 = vmatprep.subr.mxu0 0.0
    %491 = vmatpush1.msra.mxu0 0.0
    %492 = vmatprep.subr.mxu0 0.0
    %493 = vmatpush1.msra.mxu0 0.0
    %494 = vmatprep.subr.mxu0 0.0
    %495 = vmatpush1.msra.mxu0 0.0
    %496 = vmatprep.subr.mxu0 0.0
    %497 = vmatpush1.msra.mxu0 0.0
    %498 = vmatprep.subr.mxu0 0.0
    %499 = vmatpush1.msra.mxu0 0.0
    %500 = vmatprep.subr.mxu0 0.0
    %501 = vmatpush1.msra.mxu0 0.0
    %502 = vmatprep.subr.mxu0 0.0
    %503 = vmatpush1.msra.mxu0 0.0
    %504 = vmatprep.subr.mxu0 0.0
    %505 = vmatpush1.msra.mxu0 0.0
    %506 = vmatprep.subr.mxu0 0.0
    %507 = vmatpush1.msra.mxu0 0.0
    %508 = vmatprep.subr.mxu0 0.0
    %509 = vmatpush1.msra.mxu0 0.0
    %510 = vmatprep.subr.mxu0 0.0
    %511 = vmatpush1.msra.mxu0 0.0
    %512 = vmatprep.subr.mxu0 0.0
    %513 = vmatpush1.msra.mxu0 0.0
    %514 = vmatprep.subr.mxu0 0.0
    %515 = vmatpush1.msra.mxu0 0.0
    %516 = vmatprep.subr.mxu0 0.0
    %517 = vmatpush1.msra.mxu0 0.0
    %518 = vmatprep.subr.mxu0 0.0
    %519 = vmatpush1.msra.mxu0 0.0
    %520 = vmatprep.subr.mxu0 0.0
    %521 = vmatpush1.msra.mxu0 0.0
    %522 = vmatprep.mubr.f32.mxu0 0.0
    %v523 = vand.u32 %v58, 4294901760
    %524 = vmatmul.mubr.f32.gmra.mrb[0].mxu0 %v523
    %v525 = vpop.f32.mrb[0].mxu0
    %v526 = vadd.f32 %v430, %v525
    %v527 = vpop.f32.mrb[0].mxu0
    %v528 = vadd.f32 %v432, %v527
    %529 = vdwg.mxu0
    %v530 = vand.u32 %v49, 4294901760
    %531 = vmatprep.subr.mxu0 %v530
    %v532 = vand.u32 %v48, 4294901760
    %533 = vmatpush1.msra.mxu0 %v532
    %v534 = vand.u32 %v51, 4294901760
    %535 = vmatprep.subr.mxu0 %v534
    %v536 = vand.u32 %v50, 4294901760
    %537 = vmatpush1.msra.mxu0 %v536
    %v538 = vand.u32 %v53, 4294901760
    %539 = vmatprep.subr.mxu0 %v538
    %v540 = vand.u32 %v52, 4294901760
    %541 = vmatpush1.msra.mxu0 %v540
    %v542 = vand.u32 %v65, 4294901760
    %543 = vmatprep.subr.mxu0 %v542
    %v544 = vand.u32 %v62, 4294901760
    %545 = vmatpush1.msra.mxu0 %v544
    %546 = vmatprep.subr.mxu0 0.0
    %547 = vmatpush1.msra.mxu0 0.0
    %548 = vmatprep.subr.mxu0 0.0
    %549 = vmatpush1.msra.mxu0 0.0
    %550 = vmatprep.subr.mxu0 0.0
    %551 = vmatpush1.msra.mxu0 0.0
    %552 = vmatprep.subr.mxu0 0.0
    %553 = vmatpush1.msra.mxu0 0.0
    %554 = vmatprep.subr.mxu0 0.0
    %555 = vmatpush1.msra.mxu0 0.0
    %556 = vmatprep.subr.mxu0 0.0
    %557 = vmatpush1.msra.mxu0 0.0
    %558 = vmatprep.subr.mxu0 0.0
    %559 = vmatpush1.msra.mxu0 0.0
    %560 = vmatprep.subr.mxu0 0.0
    %561 = vmatpush1.msra.mxu0 0.0
    %562 = vmatprep.subr.mxu0 0.0
    %563 = vmatpush1.msra.mxu0 0.0
    %564 = vmatprep.subr.mxu0 0.0
    %565 = vmatpush1.msra.mxu0 0.0
    %566 = vmatprep.subr.mxu0 0.0
    %567 = vmatpush1.msra.mxu0 0.0
    %568 = vmatprep.subr.mxu0 0.0
    %569 = vmatpush1.msra.mxu0 0.0
    %570 = vmatprep.subr.mxu0 0.0
    %571 = vmatpush1.msra.mxu0 0.0
    %572 = vmatprep.subr.mxu0 0.0
    %573 = vmatpush1.msra.mxu0 0.0
    %574 = vmatprep.subr.mxu0 0.0
    %575 = vmatpush1.msra.mxu0 0.0
    %576 = vmatprep.subr.mxu0 0.0
    %577 = vmatpush1.msra.mxu0 0.0
    %578 = vmatprep.subr.mxu0 0.0
    %579 = vmatpush1.msra.mxu0 0.0
    %580 = vmatprep.subr.mxu0 0.0
    %581 = vmatpush1.msra.mxu0 0.0
    %582 = vmatprep.subr.mxu0 0.0
    %583 = vmatpush1.msra.mxu0 0.0
    %584 = vmatprep.subr.mxu0 0.0
    %585 = vmatpush1.msra.mxu0 0.0
    %586 = vmatprep.subr.mxu0 0.0
    %587 = vmatpush1.msra.mxu0 0.0
    %588 = vmatprep.subr.mxu0 0.0
    %589 = vmatpush1.msra.mxu0 0.0
    %590 = vmatprep.subr.mxu0 0.0
    %591 = vmatpush1.msra.mxu0 0.0
    %592 = vmatprep.subr.mxu0 0.0
    %593 = vmatpush1.msra.mxu0 0.0
    %594 = vmatprep.subr.mxu0 0.0
    %595 = vmatpush1.msra.mxu0 0.0
    %596 = vmatprep.subr.mxu0 0.0
    %597 = vmatpush1.msra.mxu0 0.0
    %598 = vmatprep.subr.mxu0 0.0
    %599 = vmatpush1.msra.mxu0 0.0
    %600 = vmatprep.subr.mxu0 0.0
    %601 = vmatpush1.msra.mxu0 0.0
    %602 = vmatprep.mubr.f32.mxu0 0.0
    %v603 = vand.u32 %v58, 4294901760
    %604 = vmatmul.mubr.f32.gmra.mrb[0].mxu0 %v603
    %v605 = vpop.f32.mrb[0].mxu0
    %v606 = vadd.f32 %v526, %v605
    %v607 = vpop.f32.mrb[0].mxu0
    %v608 = vadd.f32 %v528, %v607
    %609 = vdwg.mxu0
    %v610 = vmax.f32 %v606, 0.0
    %v611 = vmax.f32 %v608, 0.0
    %s612 = scalar_lea.vmem %s1, 128
    %v613 = vld [vmem:[%s612] sm:$0xff]
    %v614 = vld [vmem:[%s612 + $0x8] sm:$0xff]
    %v615 = vld [vmem:[%s612 + $0x10] sm:$0xff]
    %v616 = vld [vmem:[%s612 + $0x18] sm:$0xff]
    %v617 = vld [vmem:[%s612 + $0x20] sm:$0xff]
    %v618 = vld [vmem:[%s612 + $0x28] sm:$0xff]
    %v619 = vld [vmem:[%s612 + $0x30] sm:$0xf]
    %v620 = vld [vmem:[%s612 + $0x38] sm:$0xf]
    %v622 = vsel %vm60, %v619, 0
    %v625 = vsel %vm60, %v620, 0
    %v627 = vand.u32 %v614, 4294901760
    %628 = vmatprep.subr.mxu0 %v627
    %v629 = vand.u32 %v613, 4294901760
    %630 = vmatpush1.msra.mxu0 %v629
    %v631 = vand.u32 %v616, 4294901760
    %632 = vmatprep.subr.mxu0 %v631
    %v633 = vand.u32 %v615, 4294901760
    %634 = vmatpush1.msra.mxu0 %v633
    %v635 = vand.u32 %v618, 4294901760
    %636 = vmatprep.subr.mxu0 %v635
    %v637 = vand.u32 %v617, 4294901760
    %638 = vmatpush1.msra.mxu0 %v637
    %v639 = vand.u32 %v625, 4294901760
    %640 = vmatprep.subr.mxu0 %v639
    %v641 = vand.u32 %v622, 4294901760
    %642 = vmatpush1.msra.mxu0 %v641
    %643 = vmatprep.subr.mxu0 0.0
    %644 = vmatpush1.msra.mxu0 0.0
    %645 = vmatprep.subr.mxu0 0.0
    %646 = vmatpush1.msra.mxu0 0.0
    %647 = vmatprep.subr.mxu0 0.0
    %648 = vmatpush1.msra.mxu0 0.0
    %649 = vmatprep.subr.mxu0 0.0
    %650 = vmatpush1.msra.mxu0 0.0
    %651 = vmatprep.subr.mxu0 0.0
    %652 = vmatpush1.msra.mxu0 0.0
    %653 = vmatprep.subr.mxu0 0.0
    %654 = vmatpush1.msra.mxu0 0.0
    %655 = vmatprep.subr.mxu0 0.0
    %656 = vmatpush1.msra.mxu0 0.0
    %657 = vmatprep.subr.mxu0 0.0
    %658 = vmatpush1.msra.mxu0 0.0
    %659 = vmatprep.subr.mxu0 0.0
    %660 = vmatpush1.msra.mxu0 0.0
    %661 = vmatprep.subr.mxu0 0.0
    %662 = vmatpush1.msra.mxu0 0.0
    %663 = vmatprep.subr.mxu0 0.0
    %664 = vmatpush1.msra.mxu0 0.0
    %665 = vmatprep.subr.mxu0 0.0
    %666 = vmatpush1.msra.mxu0 0.0
    %667 = vmatprep.subr.mxu0 0.0
    %668 = vmatpush1.msra.mxu0 0.0
    %669 = vmatprep.subr.mxu0 0.0
    %670 = vmatpush1.msra.mxu0 0.0
    %671 = vmatprep.subr.mxu0 0.0
    %672 = vmatpush1.msra.mxu0 0.0
    %673 = vmatprep.subr.mxu0 0.0
    %674 = vmatpush1.msra.mxu0 0.0
    %675 = vmatprep.subr.mxu0 0.0
    %676 = vmatpush1.msra.mxu0 0.0
    %677 = vmatprep.subr.mxu0 0.0
    %678 = vmatpush1.msra.mxu0 0.0
    %679 = vmatprep.subr.mxu0 0.0
    %680 = vmatpush1.msra.mxu0 0.0
    %681 = vmatprep.subr.mxu0 0.0
    %682 = vmatpush1.msra.mxu0 0.0
    %683 = vmatprep.subr.mxu0 0.0
    %684 = vmatpush1.msra.mxu0 0.0
    %685 = vmatprep.subr.mxu0 0.0
    %686 = vmatpush1.msra.mxu0 0.0
    %687 = vmatprep.subr.mxu0 0.0
    %688 = vmatpush1.msra.mxu0 0.0
    %689 = vmatprep.subr.mxu0 0.0
    %690 = vmatpush1.msra.mxu0 0.0
    %691 = vmatprep.subr.mxu0 0.0
    %692 = vmatpush1.msra.mxu0 0.0
    %693 = vmatprep.subr.mxu0 0.0
    %694 = vmatpush1.msra.mxu0 0.0
    %695 = vmatprep.subr.mxu0 0.0
    %696 = vmatpush1.msra.mxu0 0.0
    %697 = vmatprep.subr.mxu0 0.0
    %698 = vmatpush1.msra.mxu0 0.0
    %699 = vmatprep.mubr.f32.mxu0 0.0
    %v700 = vand.u32 %v58, 4294901760
    %v701 = vsub.f32 %v58, %v700
    %v702 = vand.u32 %v701, 4294901760
    %v703 = vsub.f32 %v701, %v702
    %v704 = vand.u32 %v703, 4294901760
    %705 = vmatmul.mubr.f32.gmra.mrb[0].mxu0 %v704
    %v706 = vpop.f32.mrb[0].mxu0
    %v707 = vadd.f32 0.0, %v706
    %v708 = vpop.f32.mrb[0].mxu0
    %v709 = vadd.f32 0.0, %v708
    %710 = vdwg.mxu0
    %v711 = vand.u32 %v614, 4294901760
    %v712 = vsub.f32 %v614, %v711
    %v713 = vand.u32 %v712, 4294901760
    %v714 = vsub.f32 %v712, %v713
    %v715 = vand.u32 %v714, 4294901760
    %716 = vmatprep.subr.mxu0 %v715
    %v717 = vand.u32 %v613, 4294901760
    %v718 = vsub.f32 %v613, %v717
    %v719 = vand.u32 %v718, 4294901760
    %v720 = vsub.f32 %v718, %v719
    %v721 = vand.u32 %v720, 4294901760
    %722 = vmatpush1.msra.mxu0 %v721
    %v723 = vand.u32 %v616, 4294901760
    %v724 = vsub.f32 %v616, %v723
    %v725 = vand.u32 %v724, 4294901760
    %v726 = vsub.f32 %v724, %v725
    %v727 = vand.u32 %v726, 4294901760
    %728 = vmatprep.subr.mxu0 %v727
    %v729 = vand.u32 %v615, 4294901760
    %v730 = vsub.f32 %v615, %v729
    %v731 = vand.u32 %v730, 4294901760
    %v732 = vsub.f32 %v730, %v731
    %v733 = vand.u32 %v732, 4294901760
    %734 = vmatpush1.msra.mxu0 %v733
    %v735 = vand.u32 %v618, 4294901760
    %v736 = vsub.f32 %v618, %v735
    %v737 = vand.u32 %v736, 4294901760
    %v738 = vsub.f32 %v736, %v737
    %v739 = vand.u32 %v738, 4294901760
    %740 = vmatprep.subr.mxu0 %v739
    %v741 = vand.u32 %v617, 4294901760
    %v742 = vsub.f32 %v617, %v741
    %v743 = vand.u32 %v742, 4294901760
    %v744 = vsub.f32 %v742, %v743
    %v745 = vand.u32 %v744, 4294901760
    %746 = vmatpush1.msra.mxu0 %v745
    %v747 = vand.u32 %v625, 4294901760
    %v748 = vsub.f32 %v625, %v747
    %v749 = vand.u32 %v748, 4294901760
    %v750 = vsub.f32 %v748, %v749
    %v751 = vand.u32 %v750, 4294901760
    %752 = vmatprep.subr.mxu0 %v751
    %v753 = vand.u32 %v622, 4294901760
    %v754 = vsub.f32 %v622, %v753
    %v755 = vand.u32 %v754, 4294901760
    %v756 = vsub.f32 %v754, %v755
    %v757 = vand.u32 %v756, 4294901760
    %758 = vmatpush1.msra.mxu0 %v757
    %759 = vmatprep.subr.mxu0 0.0
    %760 = vmatpush1.msra.mxu0 0.0
    %761 = vmatprep.subr.mxu0 0.0
    %762 = vmatpush1.msra.mxu0 0.0
    %763 = vmatprep.subr.mxu0 0.0
    %764 = vmatpush1.msra.mxu0 0.0
    %765 = vmatprep.subr.mxu0 0.0
    %766 = vmatpush1.msra.mxu0 0.0
    %767 = vmatprep.subr.mxu0 0.0
    %768 = vmatpush1.msra.mxu0 0.0
    %769 = vmatprep.subr.mxu0 0.0
    %770 = vmatpush1.msra.mxu0 0.0
    %771 = vmatprep.subr.mxu0 0.0
    %772 = vmatpush1.msra.mxu0 0.0
    %773 = vmatprep.subr.mxu0 0.0
    %774 = vmatpush1.msra.mxu0 0.0
    %775 = vmatprep.subr.mxu0 0.0
    %776 = vmatpush1.msra.mxu0 0.0
    %777 = vmatprep.subr.mxu0 0.0
    %778 = vmatpush1.msra.mxu0 0.0
    %779 = vmatprep.subr.mxu0 0.0
    %780 = vmatpush1.msra.mxu0 0.0
    %781 = vmatprep.subr.mxu0 0.0
    %782 = vmatpush1.msra.mxu0 0.0
    %783 = vmatprep.subr.mxu0 0.0
    %784 = vmatpush1.msra.mxu0 0.0
    %785 = vmatprep.subr.mxu0 0.0
    %786 = vmatpush1.msra.mxu0 0.0
    %787 = vmatprep.subr.mxu0 0.0
    %788 = vmatpush1.msra.mxu0 0.0
    %789 = vmatprep.subr.mxu0 0.0
    %790 = vmatpush1.msra.mxu0 0.0
    %791 = vmatprep.subr.mxu0 0.0
    %792 = vmatpush1.msra.mxu0 0.0
    %793 = vmatprep.subr.mxu0 0.0
    %794 = vmatpush1.msra.mxu0 0.0
    %795 = vmatprep.subr.mxu0 0.0
    %796 = vmatpush1.msra.mxu0 0.0
    %797 = vmatprep.subr.mxu0 0.0
    %798 = vmatpush1.msra.mxu0 0.0
    %799 = vmatprep.subr.mxu0 0.0
    %800 = vmatpush1.msra.mxu0 0.0
    %801 = vmatprep.subr.mxu0 0.0
    %802 = vmatpush1.msra.mxu0 0.0
    %803 = vmatprep.subr.mxu0 0.0
    %804 = vmatpush1.msra.mxu0 0.0
    %805 = vmatprep.subr.mxu0 0.0
    %806 = vmatpush1.msra.mxu0 0.0
    %807 = vmatprep.subr.mxu0 0.0
    %808 = vmatpush1.msra.mxu0 0.0
    %809 = vmatprep.subr.mxu0 0.0
    %810 = vmatpush1.msra.mxu0 0.0
    %811 = vmatprep.subr.mxu0 0.0
    %812 = vmatpush1.msra.mxu0 0.0
    %813 = vmatprep.subr.mxu0 0.0
    %814 = vmatpush1.msra.mxu0 0.0
    %815 = vmatprep.mubr.f32.mxu0 0.0
    %v816 = vand.u32 %v58, 4294901760
    %817 = vmatmul.mubr.f32.gmra.mrb[0].mxu0 %v816
    %v818 = vpop.f32.mrb[0].mxu0
    %v819 = vadd.f32 %v707, %v818
    %v820 = vpop.f32.mrb[0].mxu0
    %v821 = vadd.f32 %v709, %v820
    %822 = vdwg.mxu0
    %v823 = vand.u32 %v614, 4294901760
    %v824 = vsub.f32 %v614, %v823
    %825 = vmatprep.subr.mxu0 %v824
    %v826 = vand.u32 %v613, 4294901760
    %v827 = vsub.f32 %v613, %v826
    %828 = vmatpush1.msra.mxu0 %v827
    %v829 = vand.u32 %v616, 4294901760
    %v830 = vsub.f32 %v616, %v829
    %831 = vmatprep.subr.mxu0 %v830
    %v832 = vand.u32 %v615, 4294901760
    %v833 = vsub.f32 %v615, %v832
    %834 = vmatpush1.msra.mxu0 %v833
    %v835 = vand.u32 %v618, 4294901760
    %v836 = vsub.f32 %v618, %v835
    %837 = vmatprep.subr.mxu0 %v836
    %v838 = vand.u32 %v617, 4294901760
    %v839 = vsub.f32 %v617, %v838
    %840 = vmatpush1.msra.mxu0 %v839
    %v841 = vand.u32 %v625, 4294901760
    %v842 = vsub.f32 %v625, %v841
    %843 = vmatprep.subr.mxu0 %v842
    %v844 = vand.u32 %v622, 4294901760
    %v845 = vsub.f32 %v622, %v844
    %846 = vmatpush1.msra.mxu0 %v845
    %847 = vmatprep.subr.mxu0 0.0
    %848 = vmatpush1.msra.mxu0 0.0
    %849 = vmatprep.subr.mxu0 0.0
    %850 = vmatpush1.msra.mxu0 0.0
    %851 = vmatprep.subr.mxu0 0.0
    %852 = vmatpush1.msra.mxu0 0.0
    %853 = vmatprep.subr.mxu0 0.0
    %854 = vmatpush1.msra.mxu0 0.0
    %855 = vmatprep.subr.mxu0 0.0
    %856 = vmatpush1.msra.mxu0 0.0
    %857 = vmatprep.subr.mxu0 0.0
    %858 = vmatpush1.msra.mxu0 0.0
    %859 = vmatprep.subr.mxu0 0.0
    %860 = vmatpush1.msra.mxu0 0.0
    %861 = vmatprep.subr.mxu0 0.0
    %862 = vmatpush1.msra.mxu0 0.0
    %863 = vmatprep.subr.mxu0 0.0
    %864 = vmatpush1.msra.mxu0 0.0
    %865 = vmatprep.subr.mxu0 0.0
    %866 = vmatpush1.msra.mxu0 0.0
    %867 = vmatprep.subr.mxu0 0.0
    %868 = vmatpush1.msra.mxu0 0.0
    %869 = vmatprep.subr.mxu0 0.0
    %870 = vmatpush1.msra.mxu0 0.0
    %871 = vmatprep.subr.mxu0 0.0
    %872 = vmatpush1.msra.mxu0 0.0
    %873 = vmatprep.subr.mxu0 0.0
    %874 = vmatpush1.msra.mxu0 0.0
    %875 = vmatprep.subr.mxu0 0.0
    %876 = vmatpush1.msra.mxu0 0.0
    %877 = vmatprep.subr.mxu0 0.0
    %878 = vmatpush1.msra.mxu0 0.0
    %879 = vmatprep.subr.mxu0 0.0
    %880 = vmatpush1.msra.mxu0 0.0
    %881 = vmatprep.subr.mxu0 0.0
    %882 = vmatpush1.msra.mxu0 0.0
    %883 = vmatprep.subr.mxu0 0.0
    %884 = vmatpush1.msra.mxu0 0.0
    %885 = vmatprep.subr.mxu0 0.0
    %886 = vmatpush1.msra.mxu0 0.0
    %887 = vmatprep.subr.mxu0 0.0
    %888 = vmatpush1.msra.mxu0 0.0
    %889 = vmatprep.subr.mxu0 0.0
    %890 = vmatpush1.msra.mxu0 0.0
    %891 = vmatprep.subr.mxu0 0.0
    %892 = vmatpush1.msra.mxu0 0.0
    %893 = vmatprep.subr.mxu0 0.0
    %894 = vmatpush1.msra.mxu0 0.0
    %895 = vmatprep.subr.mxu0 0.0
    %896 = vmatpush1.msra.mxu0 0.0
    %897 = vmatprep.subr.mxu0 0.0
    %898 = vmatpush1.msra.mxu0 0.0
    %899 = vmatprep.subr.mxu0 0.0
    %900 = vmatpush1.msra.mxu0 0.0
    %901 = vmatprep.subr.mxu0 0.0
    %902 = vmatpush1.msra.mxu0 0.0
    %903 = vmatprep.mubr.f32.mxu0 0.0
    %v904 = vand.u32 %v58, 4294901760
    %v905 = vsub.f32 %v58, %v904
    %906 = vmatmul.mubr.f32.gmra.mrb[0].mxu0 %v905
    %v907 = vpop.f32.mrb[0].mxu0
    %v908 = vadd.f32 %v819, %v907
    %v909 = vpop.f32.mrb[0].mxu0
    %v910 = vadd.f32 %v821, %v909
    %911 = vdwg.mxu0
    %v912 = vand.u32 %v614, 4294901760
    %913 = vmatprep.subr.mxu0 %v912
    %v914 = vand.u32 %v613, 4294901760
    %915 = vmatpush1.msra.mxu0 %v914
    %v916 = vand.u32 %v616, 4294901760
    %917 = vmatprep.subr.mxu0 %v916
    %v918 = vand.u32 %v615, 4294901760
    %919 = vmatpush1.msra.mxu0 %v918
    %v920 = vand.u32 %v618, 4294901760
    %921 = vmatprep.subr.mxu0 %v920
    %v922 = vand.u32 %v617, 4294901760
    %923 = vmatpush1.msra.mxu0 %v922
    %v924 = vand.u32 %v625, 4294901760
    %925 = vmatprep.subr.mxu0 %v924
    %v926 = vand.u32 %v622, 4294901760
    %927 = vmatpush1.msra.mxu0 %v926
    %928 = vmatprep.subr.mxu0 0.0
    %929 = vmatpush1.msra.mxu0 0.0
    %930 = vmatprep.subr.mxu0 0.0
    %931 = vmatpush1.msra.mxu0 0.0
    %932 = vmatprep.subr.mxu0 0.0
    %933 = vmatpush1.msra.mxu0 0.0
    %934 = vmatprep.subr.mxu0 0.0
    %935 = vmatpush1.msra.mxu0 0.0
    %936 = vmatprep.subr.mxu0 0.0
    %937 = vmatpush1.msra.mxu0 0.0
    %938 = vmatprep.subr.mxu0 0.0
    %939 = vmatpush1.msra.mxu0 0.0
    %940 = vmatprep.subr.mxu0 0.0
    %941 = vmatpush1.msra.mxu0 0.0
    %942 = vmatprep.subr.mxu0 0.0
    %943 = vmatpush1.msra.mxu0 0.0
    %944 = vmatprep.subr.mxu0 0.0
    %945 = vmatpush1.msra.mxu0 0.0
    %946 = vmatprep.subr.mxu0 0.0
    %947 = vmatpush1.msra.mxu0 0.0
    %948 = vmatprep.subr.mxu0 0.0
    %949 = vmatpush1.msra.mxu0 0.0
    %950 = vmatprep.subr.mxu0 0.0
    %951 = vmatpush1.msra.mxu0 0.0
    %952 = vmatprep.subr.mxu0 0.0
    %953 = vmatpush1.msra.mxu0 0.0
    %954 = vmatprep.subr.mxu0 0.0
    %955 = vmatpush1.msra.mxu0 0.0
    %956 = vmatprep.subr.mxu0 0.0
    %957 = vmatpush1.msra.mxu0 0.0
    %958 = vmatprep.subr.mxu0 0.0
    %959 = vmatpush1.msra.mxu0 0.0
    %960 = vmatprep.subr.mxu0 0.0
    %961 = vmatpush1.msra.mxu0 0.0
    %962 = vmatprep.subr.mxu0 0.0
    %963 = vmatpush1.msra.mxu0 0.0
    %964 = vmatprep.subr.mxu0 0.0
    %965 = vmatpush1.msra.mxu0 0.0
    %966 = vmatprep.subr.mxu0 0.0
    %967 = vmatpush1.msra.mxu0 0.0
    %968 = vmatprep.subr.mxu0 0.0
    %969 = vmatpush1.msra.mxu0 0.0
    %970 = vmatprep.subr.mxu0 0.0
    %971 = vmatpush1.msra.mxu0 0.0
    %972 = vmatprep.subr.mxu0 0.0
    %973 = vmatpush1.msra.mxu0 0.0
    %974 = vmatprep.subr.mxu0 0.0
    %975 = vmatpush1.msra.mxu0 0.0
    %976 = vmatprep.subr.mxu0 0.0
    %977 = vmatpush1.msra.mxu0 0.0
    %978 = vmatprep.subr.mxu0 0.0
    %979 = vmatpush1.msra.mxu0 0.0
    %980 = vmatprep.subr.mxu0 0.0
    %981 = vmatpush1.msra.mxu0 0.0
    %982 = vmatprep.subr.mxu0 0.0
    %983 = vmatpush1.msra.mxu0 0.0
    %984 = vmatprep.mubr.f32.mxu0 0.0
    %v985 = vand.u32 %v58, 4294901760
    %v986 = vsub.f32 %v58, %v985
    %v987 = vand.u32 %v986, 4294901760
    %988 = vmatmul.mubr.f32.gmra.mrb[0].mxu0 %v987
    %v989 = vpop.f32.mrb[0].mxu0
    %v990 = vadd.f32 %v908, %v989
    %v991 = vpop.f32.mrb[0].mxu0
    %v992 = vadd.f32 %v910, %v991
    %993 = vdwg.mxu0
    %v994 = vand.u32 %v614, 4294901760
    %v995 = vsub.f32 %v614, %v994
    %v996 = vand.u32 %v995, 4294901760
    %997 = vmatprep.subr.mxu0 %v996
    %v998 = vand.u32 %v613, 4294901760
    %v999 = vsub.f32 %v613, %v998
    %v1000 = vand.u32 %v999, 4294901760
    %1001 = vmatpush1.msra.mxu0 %v1000
    %v1002 = vand.u32 %v616, 4294901760
    %v1003 = vsub.f32 %v616, %v1002
    %v1004 = vand.u32 %v1003, 4294901760
    %1005 = vmatprep.subr.mxu0 %v1004
    %v1006 = vand.u32 %v615, 4294901760
    %v1007 = vsub.f32 %v615, %v1006
    %v1008 = vand.u32 %v1007, 4294901760
    %1009 = vmatpush1.msra.mxu0 %v1008
    %v1010 = vand.u32 %v618, 4294901760
    %v1011 = vsub.f32 %v618, %v1010
    %v1012 = vand.u32 %v1011, 4294901760
    %1013 = vmatprep.subr.mxu0 %v1012
    %v1014 = vand.u32 %v617, 4294901760
    %v1015 = vsub.f32 %v617, %v1014
    %v1016 = vand.u32 %v1015, 4294901760
    %1017 = vmatpush1.msra.mxu0 %v1016
    %v1018 = vand.u32 %v625, 4294901760
    %v1019 = vsub.f32 %v625, %v1018
    %v1020 = vand.u32 %v1019, 4294901760
    %1021 = vmatprep.subr.mxu0 %v1020
    %v1022 = vand.u32 %v622, 4294901760
    %v1023 = vsub.f32 %v622, %v1022
    %v1024 = vand.u32 %v1023, 4294901760
    %1025 = vmatpush1.msra.mxu0 %v1024
    %1026 = vmatprep.subr.mxu0 0.0
    %1027 = vmatpush1.msra.mxu0 0.0
    %1028 = vmatprep.subr.mxu0 0.0
    %1029 = vmatpush1.msra.mxu0 0.0
    %1030 = vmatprep.subr.mxu0 0.0
    %1031 = vmatpush1.msra.mxu0 0.0
    %1032 = vmatprep.subr.mxu0 0.0
    %1033 = vmatpush1.msra.mxu0 0.0
    %1034 = vmatprep.subr.mxu0 0.0
    %1035 = vmatpush1.msra.mxu0 0.0
    %1036 = vmatprep.subr.mxu0 0.0
    %1037 = vmatpush1.msra.mxu0 0.0
    %1038 = vmatprep.subr.mxu0 0.0
    %1039 = vmatpush1.msra.mxu0 0.0
    %1040 = vmatprep.subr.mxu0 0.0
    %1041 = vmatpush1.msra.mxu0 0.0
    %1042 = vmatprep.subr.mxu0 0.0
    %1043 = vmatpush1.msra.mxu0 0.0
    %1044 = vmatprep.subr.mxu0 0.0
    %1045 = vmatpush1.msra.mxu0 0.0
    %1046 = vmatprep.subr.mxu0 0.0
    %1047 = vmatpush1.msra.mxu0 0.0
    %1048 = vmatprep.subr.mxu0 0.0
    %1049 = vmatpush1.msra.mxu0 0.0
    %1050 = vmatprep.subr.mxu0 0.0
    %1051 = vmatpush1.msra.mxu0 0.0
    %1052 = vmatprep.subr.mxu0 0.0
    %1053 = vmatpush1.msra.mxu0 0.0
    %1054 = vmatprep.subr.mxu0 0.0
    %1055 = vmatpush1.msra.mxu0 0.0
    %1056 = vmatprep.subr.mxu0 0.0
    %1057 = vmatpush1.msra.mxu0 0.0
    %1058 = vmatprep.subr.mxu0 0.0
    %1059 = vmatpush1.msra.mxu0 0.0
    %1060 = vmatprep.subr.mxu0 0.0
    %1061 = vmatpush1.msra.mxu0 0.0
    %1062 = vmatprep.subr.mxu0 0.0
    %1063 = vmatpush1.msra.mxu0 0.0
    %1064 = vmatprep.subr.mxu0 0.0
    %1065 = vmatpush1.msra.mxu0 0.0
    %1066 = vmatprep.subr.mxu0 0.0
    %1067 = vmatpush1.msra.mxu0 0.0
    %1068 = vmatprep.subr.mxu0 0.0
    %1069 = vmatpush1.msra.mxu0 0.0
    %1070 = vmatprep.subr.mxu0 0.0
    %1071 = vmatpush1.msra.mxu0 0.0
    %1072 = vmatprep.subr.mxu0 0.0
    %1073 = vmatpush1.msra.mxu0 0.0
    %1074 = vmatprep.subr.mxu0 0.0
    %1075 = vmatpush1.msra.mxu0 0.0
    %1076 = vmatprep.subr.mxu0 0.0
    %1077 = vmatpush1.msra.mxu0 0.0
    %1078 = vmatprep.subr.mxu0 0.0
    %1079 = vmatpush1.msra.mxu0 0.0
    %1080 = vmatprep.subr.mxu0 0.0
    %1081 = vmatpush1.msra.mxu0 0.0
    %1082 = vmatprep.mubr.f32.mxu0 0.0
    %v1083 = vand.u32 %v58, 4294901760
    %1084 = vmatmul.mubr.f32.gmra.mrb[0].mxu0 %v1083
    %v1085 = vpop.f32.mrb[0].mxu0
    %v1086 = vadd.f32 %v990, %v1085
    %v1087 = vpop.f32.mrb[0].mxu0
    %v1088 = vadd.f32 %v992, %v1087
    %1089 = vdwg.mxu0
    %v1090 = vand.u32 %v614, 4294901760
    %1091 = vmatprep.subr.mxu0 %v1090
    %v1092 = vand.u32 %v613, 4294901760
    %1093 = vmatpush1.msra.mxu0 %v1092
    %v1094 = vand.u32 %v616, 4294901760
    %1095 = vmatprep.subr.mxu0 %v1094
    %v1096 = vand.u32 %v615, 4294901760
    %1097 = vmatpush1.msra.mxu0 %v1096
    %v1098 = vand.u32 %v618, 4294901760
    %1099 = vmatprep.subr.mxu0 %v1098
    %v1100 = vand.u32 %v617, 4294901760
    %1101 = vmatpush1.msra.mxu0 %v1100
    %v1102 = vand.u32 %v625, 4294901760
    %1103 = vmatprep.subr.mxu0 %v1102
    %v1104 = vand.u32 %v622, 4294901760
    %1105 = vmatpush1.msra.mxu0 %v1104
    %1106 = vmatprep.subr.mxu0 0.0
    %1107 = vmatpush1.msra.mxu0 0.0
    %1108 = vmatprep.subr.mxu0 0.0
    %1109 = vmatpush1.msra.mxu0 0.0
    %1110 = vmatprep.subr.mxu0 0.0
    %1111 = vmatpush1.msra.mxu0 0.0
    %1112 = vmatprep.subr.mxu0 0.0
    %1113 = vmatpush1.msra.mxu0 0.0
    %1114 = vmatprep.subr.mxu0 0.0
    %1115 = vmatpush1.msra.mxu0 0.0
    %1116 = vmatprep.subr.mxu0 0.0
    %1117 = vmatpush1.msra.mxu0 0.0
    %1118 = vmatprep.subr.mxu0 0.0
    %1119 = vmatpush1.msra.mxu0 0.0
    %1120 = vmatprep.subr.mxu0 0.0
    %1121 = vmatpush1.msra.mxu0 0.0
    %1122 = vmatprep.subr.mxu0 0.0
    %1123 = vmatpush1.msra.mxu0 0.0
    %1124 = vmatprep.subr.mxu0 0.0
    %1125 = vmatpush1.msra.mxu0 0.0
    %1126 = vmatprep.subr.mxu0 0.0
    %1127 = vmatpush1.msra.mxu0 0.0
    %1128 = vmatprep.subr.mxu0 0.0
    %1129 = vmatpush1.msra.mxu0 0.0
    %1130 = vmatprep.subr.mxu0 0.0
    %1131 = vmatpush1.msra.mxu0 0.0
    %1132 = vmatprep.subr.mxu0 0.0
    %1133 = vmatpush1.msra.mxu0 0.0
    %1134 = vmatprep.subr.mxu0 0.0
    %1135 = vmatpush1.msra.mxu0 0.0
    %1136 = vmatprep.subr.mxu0 0.0
    %1137 = vmatpush1.msra.mxu0 0.0
    %1138 = vmatprep.subr.mxu0 0.0
    %1139 = vmatpush1.msra.mxu0 0.0
    %1140 = vmatprep.subr.mxu0 0.0
    %1141 = vmatpush1.msra.mxu0 0.0
    %1142 = vmatprep.subr.mxu0 0.0
    %1143 = vmatpush1.msra.mxu0 0.0
    %1144 = vmatprep.subr.mxu0 0.0
    %1145 = vmatpush1.msra.mxu0 0.0
    %1146 = vmatprep.subr.mxu0 0.0
    %1147 = vmatpush1.msra.mxu0 0.0
    %1148 = vmatprep.subr.mxu0 0.0
    %1149 = vmatpush1.msra.mxu0 0.0
    %1150 = vmatprep.subr.mxu0 0.0
    %1151 = vmatpush1.msra.mxu0 0.0
    %1152 = vmatprep.subr.mxu0 0.0
    %1153 = vmatpush1.msra.mxu0 0.0
    %1154 = vmatprep.subr.mxu0 0.0
    %1155 = vmatpush1.msra.mxu0 0.0
    %1156 = vmatprep.subr.mxu0 0.0
    %1157 = vmatpush1.msra.mxu0 0.0
    %1158 = vmatprep.subr.mxu0 0.0
    %1159 = vmatpush1.msra.mxu0 0.0
    %1160 = vmatprep.subr.mxu0 0.0
    %1161 = vmatpush1.msra.mxu0 0.0
    %1162 = vmatprep.mubr.f32.mxu0 0.0
    %v1163 = vand.u32 %v58, 4294901760
    %1164 = vmatmul.mubr.f32.gmra.mrb[0].mxu0 %v1163
    %v1165 = vpop.f32.mrb[0].mxu0
    %v1166 = vadd.f32 %v1086, %v1165
    %v1167 = vpop.f32.mrb[0].mxu0
    %v1168 = vadd.f32 %v1088, %v1167
    %1169 = vdwg.mxu0
    %v1170 = vmax.f32 %v1166, 0.0
    %v1171 = vmax.f32 %v1168, 0.0
    %v1172 = vsub.f32 %v610, %v1170
    %v1173 = vsub.f32 %v611, %v1171
    %1174 = vmatprep.subr.mxu0 0.0
    %v1175 = vand.u32 %v16, 4294901760
    %1176 = vmatpush1.msra.mxu0 %v1175
    %1177 = vmatprep.subr.mxu0 0.0
    %v1178 = vand.u32 %v17, 4294901760
    %1179 = vmatpush1.msra.mxu0 %v1178
    %1180 = vmatprep.subr.mxu0 0.0
    %v1181 = vand.u32 %v18, 4294901760
    %1182 = vmatpush1.msra.mxu0 %v1181
    %1183 = vmatprep.subr.mxu0 0.0
    %v1184 = vand.u32 %v19, 4294901760
    %1185 = vmatpush1.msra.mxu0 %v1184
    %1186 = vmatprep.subr.mxu0 0.0
    %v1187 = vand.u32 %v20, 4294901760
    %1188 = vmatpush1.msra.mxu0 %v1187
    %1189 = vmatprep.subr.mxu0 0.0
    %v1190 = vand.u32 %v21, 4294901760
    %1191 = vmatpush1.msra.mxu0 %v1190
    %1192 = vmatprep.subr.mxu0 0.0
    %v1193 = vand.u32 %v22, 4294901760
    %1194 = vmatpush1.msra.mxu0 %v1193
    %1195 = vmatprep.subr.mxu0 0.0
    %v1196 = vand.u32 %v23, 4294901760
    %1197 = vmatpush1.msra.mxu0 %v1196
    %1198 = vmatprep.subr.mxu0 0.0
    %v1199 = vand.u32 %v24, 4294901760
    %1200 = vmatpush1.msra.mxu0 %v1199
    %1201 = vmatprep.subr.mxu0 0.0
    %v1202 = vand.u32 %v25, 4294901760
    %1203 = vmatpush1.msra.mxu0 %v1202
    %1204 = vmatprep.subr.mxu0 0.0
    %v1205 = vand.u32 %v26, 4294901760
    %1206 = vmatpush1.msra.mxu0 %v1205
    %1207 = vmatprep.subr.mxu0 0.0
    %v1208 = vand.u32 %v27, 4294901760
    %1209 = vmatpush1.msra.mxu0 %v1208
    %1210 = vmatprep.subr.mxu0 0.0
    %v1211 = vand.u32 %v28, 4294901760
    %1212 = vmatpush1.msra.mxu0 %v1211
    %1213 = vmatprep.subr.mxu0 0.0
    %v1214 = vand.u32 %v29, 4294901760
    %1215 = vmatpush1.msra.mxu0 %v1214
    %1216 = vmatprep.subr.mxu0 0.0
    %v1217 = vand.u32 %v30, 4294901760
    %1218 = vmatpush1.msra.mxu0 %v1217
    %1219 = vmatprep.subr.mxu0 0.0
    %v1220 = vand.u32 %v31, 4294901760
    %1221 = vmatpush1.msra.mxu0 %v1220
    %1222 = vmatprep.subr.mxu0 0.0
    %v1223 = vand.u32 %v32, 4294901760
    %1224 = vmatpush1.msra.mxu0 %v1223
    %1225 = vmatprep.subr.mxu0 0.0
    %v1226 = vand.u32 %v33, 4294901760
    %1227 = vmatpush1.msra.mxu0 %v1226
    %1228 = vmatprep.subr.mxu0 0.0
    %v1229 = vand.u32 %v34, 4294901760
    %1230 = vmatpush1.msra.mxu0 %v1229
    %1231 = vmatprep.subr.mxu0 0.0
    %v1232 = vand.u32 %v35, 4294901760
    %1233 = vmatpush1.msra.mxu0 %v1232
    %1234 = vmatprep.subr.mxu0 0.0
    %v1235 = vand.u32 %v36, 4294901760
    %1236 = vmatpush1.msra.mxu0 %v1235
    %1237 = vmatprep.subr.mxu0 0.0
    %v1238 = vand.u32 %v37, 4294901760
    %1239 = vmatpush1.msra.mxu0 %v1238
    %1240 = vmatprep.subr.mxu0 0.0
    %v1241 = vand.u32 %v38, 4294901760
    %1242 = vmatpush1.msra.mxu0 %v1241
    %1243 = vmatprep.subr.mxu0 0.0
    %v1244 = vand.u32 %v39, 4294901760
    %1245 = vmatpush1.msra.mxu0 %v1244
    %1246 = vmatprep.subr.mxu0 0.0
    %v1247 = vand.u32 %v40, 4294901760
    %1248 = vmatpush1.msra.mxu0 %v1247
    %1249 = vmatprep.subr.mxu0 0.0
    %v1250 = vand.u32 %v41, 4294901760
    %1251 = vmatpush1.msra.mxu0 %v1250
    %1252 = vmatprep.subr.mxu0 0.0
    %v1253 = vand.u32 %v42, 4294901760
    %1254 = vmatpush1.msra.mxu0 %v1253
    %1255 = vmatprep.subr.mxu0 0.0
    %v1256 = vand.u32 %v43, 4294901760
    %1257 = vmatpush1.msra.mxu0 %v1256
    %1258 = vmatprep.subr.mxu0 0.0
    %v1259 = vand.u32 %v44, 4294901760
    %1260 = vmatpush1.msra.mxu0 %v1259
    %1261 = vmatprep.subr.mxu0 0.0
    %v1262 = vand.u32 %v45, 4294901760
    %1263 = vmatpush1.msra.mxu0 %v1262
    %1264 = vmatprep.subr.mxu0 0.0
    %v1265 = vand.u32 %v46, 4294901760
    %1266 = vmatpush1.msra.mxu0 %v1265
    %1267 = vmatprep.subr.mxu0 0.0
    %v1268 = vand.u32 %v47, 4294901760
    %1269 = vmatpush1.msra.mxu0 %v1268
    %v1270 = vand.u32 %v1173, 4294901760
    %v1271 = vsub.f32 %v1173, %v1270
    %v1272 = vand.u32 %v1271, 4294901760
    %v1273 = vsub.f32 %v1271, %v1272
    %v1274 = vand.u32 %v1273, 4294901760
    %1275 = vmatprep.mubr.f32.mxu0 %v1274
    %v1276 = vand.u32 %v1172, 4294901760
    %v1277 = vsub.f32 %v1172, %v1276
    %v1278 = vand.u32 %v1277, 4294901760
    %v1279 = vsub.f32 %v1277, %v1278
    %v1280 = vand.u32 %v1279, 4294901760
    %1281 = vmatmul.mubr.f32.gmra.mrb[0].mxu0 %v1280
    %v1282 = vpop.f32.mrb[0].mxu0
    %v1283 = vadd.f32 0.0, %v1282
    %v1284 = vpop.f32.mrb[0].mxu0
    %1285 = vdwg.mxu0
    %1286 = vmatprep.subr.mxu0 0.0
    %v1287 = vand.u32 %v16, 4294901760
    %v1288 = vsub.f32 %v16, %v1287
    %v1289 = vand.u32 %v1288, 4294901760
    %v1290 = vsub.f32 %v1288, %v1289
    %v1291 = vand.u32 %v1290, 4294901760
    %1292 = vmatpush1.msra.mxu0 %v1291
    %1293 = vmatprep.subr.mxu0 0.0
    %v1294 = vand.u32 %v17, 4294901760
    %v1295 = vsub.f32 %v17, %v1294
    %v1296 = vand.u32 %v1295, 4294901760
    %v1297 = vsub.f32 %v1295, %v1296
    %v1298 = vand.u32 %v1297, 4294901760
    %1299 = vmatpush1.msra.mxu0 %v1298
    %1300 = vmatprep.subr.mxu0 0.0
    %v1301 = vand.u32 %v18, 4294901760
    %v1302 = vsub.f32 %v18, %v1301
    %v1303 = vand.u32 %v1302, 4294901760
    %v1304 = vsub.f32 %v1302, %v1303
    %v1305 = vand.u32 %v1304, 4294901760
    %1306 = vmatpush1.msra.mxu0 %v1305
    %1307 = vmatprep.subr.mxu0 0.0
    %v1308 = vand.u32 %v19, 4294901760
    %v1309 = vsub.f32 %v19, %v1308
    %v1310 = vand.u32 %v1309, 4294901760
    %v1311 = vsub.f32 %v1309, %v1310
    %v1312 = vand.u32 %v1311, 4294901760
    %1313 = vmatpush1.msra.mxu0 %v1312
    %1314 = vmatprep.subr.mxu0 0.0
    %v1315 = vand.u32 %v20, 4294901760
    %v1316 = vsub.f32 %v20, %v1315
    %v1317 = vand.u32 %v1316, 4294901760
    %v1318 = vsub.f32 %v1316, %v1317
    %v1319 = vand.u32 %v1318, 4294901760
    %1320 = vmatpush1.msra.mxu0 %v1319
    %1321 = vmatprep.subr.mxu0 0.0
    %v1322 = vand.u32 %v21, 4294901760
    %v1323 = vsub.f32 %v21, %v1322
    %v1324 = vand.u32 %v1323, 4294901760
    %v1325 = vsub.f32 %v1323, %v1324
    %v1326 = vand.u32 %v1325, 4294901760
    %1327 = vmatpush1.msra.mxu0 %v1326
    %1328 = vmatprep.subr.mxu0 0.0
    %v1329 = vand.u32 %v22, 4294901760
    %v1330 = vsub.f32 %v22, %v1329
    %v1331 = vand.u32 %v1330, 4294901760
    %v1332 = vsub.f32 %v1330, %v1331
    %v1333 = vand.u32 %v1332, 4294901760
    %1334 = vmatpush1.msra.mxu0 %v1333
    %1335 = vmatprep.subr.mxu0 0.0
    %v1336 = vand.u32 %v23, 4294901760
    %v1337 = vsub.f32 %v23, %v1336
    %v1338 = vand.u32 %v1337, 4294901760
    %v1339 = vsub.f32 %v1337, %v1338
    %v1340 = vand.u32 %v1339, 4294901760
    %1341 = vmatpush1.msra.mxu0 %v1340
    %1342 = vmatprep.subr.mxu0 0.0
    %v1343 = vand.u32 %v24, 4294901760
    %v1344 = vsub.f32 %v24, %v1343
    %v1345 = vand.u32 %v1344, 4294901760
    %v1346 = vsub.f32 %v1344, %v1345
    %v1347 = vand.u32 %v1346, 4294901760
    %1348 = vmatpush1.msra.mxu0 %v1347
    %1349 = vmatprep.subr.mxu0 0.0
    %v1350 = vand.u32 %v25, 4294901760
    %v1351 = vsub.f32 %v25, %v1350
    %v1352 = vand.u32 %v1351, 4294901760
    %v1353 = vsub.f32 %v1351, %v1352
    %v1354 = vand.u32 %v1353, 4294901760
    %1355 = vmatpush1.msra.mxu0 %v1354
    %1356 = vmatprep.subr.mxu0 0.0
    %v1357 = vand.u32 %v26, 4294901760
    %v1358 = vsub.f32 %v26, %v1357
    %v1359 = vand.u32 %v1358, 4294901760
    %v1360 = vsub.f32 %v1358, %v1359
    %v1361 = vand.u32 %v1360, 4294901760
    %1362 = vmatpush1.msra.mxu0 %v1361
    %1363 = vmatprep.subr.mxu0 0.0
    %v1364 = vand.u32 %v27, 4294901760
    %v1365 = vsub.f32 %v27, %v1364
    %v1366 = vand.u32 %v1365, 4294901760
    %v1367 = vsub.f32 %v1365, %v1366
    %v1368 = vand.u32 %v1367, 4294901760
    %1369 = vmatpush1.msra.mxu0 %v1368
    %1370 = vmatprep.subr.mxu0 0.0
    %v1371 = vand.u32 %v28, 4294901760
    %v1372 = vsub.f32 %v28, %v1371
    %v1373 = vand.u32 %v1372, 4294901760
    %v1374 = vsub.f32 %v1372, %v1373
    %v1375 = vand.u32 %v1374, 4294901760
    %1376 = vmatpush1.msra.mxu0 %v1375
    %1377 = vmatprep.subr.mxu0 0.0
    %v1378 = vand.u32 %v29, 4294901760
    %v1379 = vsub.f32 %v29, %v1378
    %v1380 = vand.u32 %v1379, 4294901760
    %v1381 = vsub.f32 %v1379, %v1380
    %v1382 = vand.u32 %v1381, 4294901760
    %1383 = vmatpush1.msra.mxu0 %v1382
    %1384 = vmatprep.subr.mxu0 0.0
    %v1385 = vand.u32 %v30, 4294901760
    %v1386 = vsub.f32 %v30, %v1385
    %v1387 = vand.u32 %v1386, 4294901760
    %v1388 = vsub.f32 %v1386, %v1387
    %v1389 = vand.u32 %v1388, 4294901760
    %1390 = vmatpush1.msra.mxu0 %v1389
    %1391 = vmatprep.subr.mxu0 0.0
    %v1392 = vand.u32 %v31, 4294901760
    %v1393 = vsub.f32 %v31, %v1392
    %v1394 = vand.u32 %v1393, 4294901760
    %v1395 = vsub.f32 %v1393, %v1394
    %v1396 = vand.u32 %v1395, 4294901760
    %1397 = vmatpush1.msra.mxu0 %v1396
    %1398 = vmatprep.subr.mxu0 0.0
    %v1399 = vand.u32 %v32, 4294901760
    %v1400 = vsub.f32 %v32, %v1399
    %v1401 = vand.u32 %v1400, 4294901760
    %v1402 = vsub.f32 %v1400, %v1401
    %v1403 = vand.u32 %v1402, 4294901760
    %1404 = vmatpush1.msra.mxu0 %v1403
    %1405 = vmatprep.subr.mxu0 0.0
    %v1406 = vand.u32 %v33, 4294901760
    %v1407 = vsub.f32 %v33, %v1406
    %v1408 = vand.u32 %v1407, 4294901760
    %v1409 = vsub.f32 %v1407, %v1408
    %v1410 = vand.u32 %v1409, 4294901760
    %1411 = vmatpush1.msra.mxu0 %v1410
    %1412 = vmatprep.subr.mxu0 0.0
    %v1413 = vand.u32 %v34, 4294901760
    %v1414 = vsub.f32 %v34, %v1413
    %v1415 = vand.u32 %v1414, 4294901760
    %v1416 = vsub.f32 %v1414, %v1415
    %v1417 = vand.u32 %v1416, 4294901760
    %1418 = vmatpush1.msra.mxu0 %v1417
    %1419 = vmatprep.subr.mxu0 0.0
    %v1420 = vand.u32 %v35, 4294901760
    %v1421 = vsub.f32 %v35, %v1420
    %v1422 = vand.u32 %v1421, 4294901760
    %v1423 = vsub.f32 %v1421, %v1422
    %v1424 = vand.u32 %v1423, 4294901760
    %1425 = vmatpush1.msra.mxu0 %v1424
    %1426 = vmatprep.subr.mxu0 0.0
    %v1427 = vand.u32 %v36, 4294901760
    %v1428 = vsub.f32 %v36, %v1427
    %v1429 = vand.u32 %v1428, 4294901760
    %v1430 = vsub.f32 %v1428, %v1429
    %v1431 = vand.u32 %v1430, 4294901760
    %1432 = vmatpush1.msra.mxu0 %v1431
    %1433 = vmatprep.subr.mxu0 0.0
    %v1434 = vand.u32 %v37, 4294901760
    %v1435 = vsub.f32 %v37, %v1434
    %v1436 = vand.u32 %v1435, 4294901760
    %v1437 = vsub.f32 %v1435, %v1436
    %v1438 = vand.u32 %v1437, 4294901760
    %1439 = vmatpush1.msra.mxu0 %v1438
    %1440 = vmatprep.subr.mxu0 0.0
    %v1441 = vand.u32 %v38, 4294901760
    %v1442 = vsub.f32 %v38, %v1441
    %v1443 = vand.u32 %v1442, 4294901760
    %v1444 = vsub.f32 %v1442, %v1443
    %v1445 = vand.u32 %v1444, 4294901760
    %1446 = vmatpush1.msra.mxu0 %v1445
    %1447 = vmatprep.subr.mxu0 0.0
    %v1448 = vand.u32 %v39, 4294901760
    %v1449 = vsub.f32 %v39, %v1448
    %v1450 = vand.u32 %v1449, 4294901760
    %v1451 = vsub.f32 %v1449, %v1450
    %v1452 = vand.u32 %v1451, 4294901760
    %1453 = vmatpush1.msra.mxu0 %v1452
    %1454 = vmatprep.subr.mxu0 0.0
    %v1455 = vand.u32 %v40, 4294901760
    %v1456 = vsub.f32 %v40, %v1455
    %v1457 = vand.u32 %v1456, 4294901760
    %v1458 = vsub.f32 %v1456, %v1457
    %v1459 = vand.u32 %v1458, 4294901760
    %1460 = vmatpush1.msra.mxu0 %v1459
    %1461 = vmatprep.subr.mxu0 0.0
    %v1462 = vand.u32 %v41, 4294901760
    %v1463 = vsub.f32 %v41, %v1462
    %v1464 = vand.u32 %v1463, 4294901760
    %v1465 = vsub.f32 %v1463, %v1464
    %v1466 = vand.u32 %v1465, 4294901760
    %1467 = vmatpush1.msra.mxu0 %v1466
    %1468 = vmatprep.subr.mxu0 0.0
    %v1469 = vand.u32 %v42, 4294901760
    %v1470 = vsub.f32 %v42, %v1469
    %v1471 = vand.u32 %v1470, 4294901760
    %v1472 = vsub.f32 %v1470, %v1471
    %v1473 = vand.u32 %v1472, 4294901760
    %1474 = vmatpush1.msra.mxu0 %v1473
    %1475 = vmatprep.subr.mxu0 0.0
    %v1476 = vand.u32 %v43, 4294901760
    %v1477 = vsub.f32 %v43, %v1476
    %v1478 = vand.u32 %v1477, 4294901760
    %v1479 = vsub.f32 %v1477, %v1478
    %v1480 = vand.u32 %v1479, 4294901760
    %1481 = vmatpush1.msra.mxu0 %v1480
    %1482 = vmatprep.subr.mxu0 0.0
    %v1483 = vand.u32 %v44, 4294901760
    %v1484 = vsub.f32 %v44, %v1483
    %v1485 = vand.u32 %v1484, 4294901760
    %v1486 = vsub.f32 %v1484, %v1485
    %v1487 = vand.u32 %v1486, 4294901760
    %1488 = vmatpush1.msra.mxu0 %v1487
    %1489 = vmatprep.subr.mxu0 0.0
    %v1490 = vand.u32 %v45, 4294901760
    %v1491 = vsub.f32 %v45, %v1490
    %v1492 = vand.u32 %v1491, 4294901760
    %v1493 = vsub.f32 %v1491, %v1492
    %v1494 = vand.u32 %v1493, 4294901760
    %1495 = vmatpush1.msra.mxu0 %v1494
    %1496 = vmatprep.subr.mxu0 0.0
    %v1497 = vand.u32 %v46, 4294901760
    %v1498 = vsub.f32 %v46, %v1497
    %v1499 = vand.u32 %v1498, 4294901760
    %v1500 = vsub.f32 %v1498, %v1499
    %v1501 = vand.u32 %v1500, 4294901760
    %1502 = vmatpush1.msra.mxu0 %v1501
    %1503 = vmatprep.subr.mxu0 0.0
    %v1504 = vand.u32 %v47, 4294901760
    %v1505 = vsub.f32 %v47, %v1504
    %v1506 = vand.u32 %v1505, 4294901760
    %v1507 = vsub.f32 %v1505, %v1506
    %v1508 = vand.u32 %v1507, 4294901760
    %1509 = vmatpush1.msra.mxu0 %v1508
    %v1510 = vand.u32 %v1173, 4294901760
    %1511 = vmatprep.mubr.f32.mxu0 %v1510
    %v1512 = vand.u32 %v1172, 4294901760
    %1513 = vmatmul.mubr.f32.gmra.mrb[0].mxu0 %v1512
    %v1514 = vpop.f32.mrb[0].mxu0
    %v1515 = vadd.f32 %v1283, %v1514
    %v1516 = vpop.f32.mrb[0].mxu0
    %1517 = vdwg.mxu0
    %1518 = vmatprep.subr.mxu0 0.0
    %v1519 = vand.u32 %v16, 4294901760
    %v1520 = vsub.f32 %v16, %v1519
    %1521 = vmatpush1.msra.mxu0 %v1520
    %1522 = vmatprep.subr.mxu0 0.0
    %v1523 = vand.u32 %v17, 4294901760
    %v1524 = vsub.f32 %v17, %v1523
    %1525 = vmatpush1.msra.mxu0 %v1524
    %1526 = vmatprep.subr.mxu0 0.0
    %v1527 = vand.u32 %v18, 4294901760
    %v1528 = vsub.f32 %v18, %v1527
    %1529 = vmatpush1.msra.mxu0 %v1528
    %1530 = vmatprep.subr.mxu0 0.0
    %v1531 = vand.u32 %v19, 4294901760
    %v1532 = vsub.f32 %v19, %v1531
    %1533 = vmatpush1.msra.mxu0 %v1532
    %1534 = vmatprep.subr.mxu0 0.0
    %v1535 = vand.u32 %v20, 4294901760
    %v1536 = vsub.f32 %v20, %v1535
    %1537 = vmatpush1.msra.mxu0 %v1536
    %1538 = vmatprep.subr.mxu0 0.0
    %v1539 = vand.u32 %v21, 4294901760
    %v1540 = vsub.f32 %v21, %v1539
    %1541 = vmatpush1.msra.mxu0 %v1540
    %1542 = vmatprep.subr.mxu0 0.0
    %v1543 = vand.u32 %v22, 4294901760
    %v1544 = vsub.f32 %v22, %v1543
    %1545 = vmatpush1.msra.mxu0 %v1544
    %1546 = vmatprep.subr.mxu0 0.0
    %v1547 = vand.u32 %v23, 4294901760
    %v1548 = vsub.f32 %v23, %v1547
    %1549 = vmatpush1.msra.mxu0 %v1548
    %1550 = vmatprep.subr.mxu0 0.0
    %v1551 = vand.u32 %v24, 4294901760
    %v1552 = vsub.f32 %v24, %v1551
    %1553 = vmatpush1.msra.mxu0 %v1552
    %1554 = vmatprep.subr.mxu0 0.0
    %v1555 = vand.u32 %v25, 4294901760
    %v1556 = vsub.f32 %v25, %v1555
    %1557 = vmatpush1.msra.mxu0 %v1556
    %1558 = vmatprep.subr.mxu0 0.0
    %v1559 = vand.u32 %v26, 4294901760
    %v1560 = vsub.f32 %v26, %v1559
    %1561 = vmatpush1.msra.mxu0 %v1560
    %1562 = vmatprep.subr.mxu0 0.0
    %v1563 = vand.u32 %v27, 4294901760
    %v1564 = vsub.f32 %v27, %v1563
    %1565 = vmatpush1.msra.mxu0 %v1564
    %1566 = vmatprep.subr.mxu0 0.0
    %v1567 = vand.u32 %v28, 4294901760
    %v1568 = vsub.f32 %v28, %v1567
    %1569 = vmatpush1.msra.mxu0 %v1568
    %1570 = vmatprep.subr.mxu0 0.0
    %v1571 = vand.u32 %v29, 4294901760
    %v1572 = vsub.f32 %v29, %v1571
    %1573 = vmatpush1.msra.mxu0 %v1572
    %1574 = vmatprep.subr.mxu0 0.0
    %v1575 = vand.u32 %v30, 4294901760
    %v1576 = vsub.f32 %v30, %v1575
    %1577 = vmatpush1.msra.mxu0 %v1576
    %1578 = vmatprep.subr.mxu0 0.0
    %v1579 = vand.u32 %v31, 4294901760
    %v1580 = vsub.f32 %v31, %v1579
    %1581 = vmatpush1.msra.mxu0 %v1580
    %1582 = vmatprep.subr.mxu0 0.0
    %v1583 = vand.u32 %v32, 4294901760
    %v1584 = vsub.f32 %v32, %v1583
    %1585 = vmatpush1.msra.mxu0 %v1584
    %1586 = vmatprep.subr.mxu0 0.0
    %v1587 = vand.u32 %v33, 4294901760
    %v1588 = vsub.f32 %v33, %v1587
    %1589 = vmatpush1.msra.mxu0 %v1588
    %1590 = vmatprep.subr.mxu0 0.0
    %v1591 = vand.u32 %v34, 4294901760
    %v1592 = vsub.f32 %v34, %v1591
    %1593 = vmatpush1.msra.mxu0 %v1592
    %1594 = vmatprep.subr.mxu0 0.0
    %v1595 = vand.u32 %v35, 4294901760
    %v1596 = vsub.f32 %v35, %v1595
    %1597 = vmatpush1.msra.mxu0 %v1596
    %1598 = vmatprep.subr.mxu0 0.0
    %v1599 = vand.u32 %v36, 4294901760
    %v1600 = vsub.f32 %v36, %v1599
    %1601 = vmatpush1.msra.mxu0 %v1600
    %1602 = vmatprep.subr.mxu0 0.0
    %v1603 = vand.u32 %v37, 4294901760
    %v1604 = vsub.f32 %v37, %v1603
    %1605 = vmatpush1.msra.mxu0 %v1604
    %1606 = vmatprep.subr.mxu0 0.0
    %v1607 = vand.u32 %v38, 4294901760
    %v1608 = vsub.f32 %v38, %v1607
    %1609 = vmatpush1.msra.mxu0 %v1608
    %1610 = vmatprep.subr.mxu0 0.0
    %v1611 = vand.u32 %v39, 4294901760
    %v1612 = vsub.f32 %v39, %v1611
    %1613 = vmatpush1.msra.mxu0 %v1612
    %1614 = vmatprep.subr.mxu0 0.0
    %v1615 = vand.u32 %v40, 4294901760
    %v1616 = vsub.f32 %v40, %v1615
    %1617 = vmatpush1.msra.mxu0 %v1616
    %1618 = vmatprep.subr.mxu0 0.0
    %v1619 = vand.u32 %v41, 4294901760
    %v1620 = vsub.f32 %v41, %v1619
    %1621 = vmatpush1.msra.mxu0 %v1620
    %1622 = vmatprep.subr.mxu0 0.0
    %v1623 = vand.u32 %v42, 4294901760
    %v1624 = vsub.f32 %v42, %v1623
    %1625 = vmatpush1.msra.mxu0 %v1624
    %1626 = vmatprep.subr.mxu0 0.0
    %v1627 = vand.u32 %v43, 4294901760
    %v1628 = vsub.f32 %v43, %v1627
    %1629 = vmatpush1.msra.mxu0 %v1628
    %1630 = vmatprep.subr.mxu0 0.0
    %v1631 = vand.u32 %v44, 4294901760
    %v1632 = vsub.f32 %v44, %v1631
    %1633 = vmatpush1.msra.mxu0 %v1632
    %1634 = vmatprep.subr.mxu0 0.0
    %v1635 = vand.u32 %v45, 4294901760
    %v1636 = vsub.f32 %v45, %v1635
    %1637 = vmatpush1.msra.mxu0 %v1636
    %1638 = vmatprep.subr.mxu0 0.0
    %v1639 = vand.u32 %v46, 4294901760
    %v1640 = vsub.f32 %v46, %v1639
    %1641 = vmatpush1.msra.mxu0 %v1640
    %1642 = vmatprep.subr.mxu0 0.0
    %v1643 = vand.u32 %v47, 4294901760
    %v1644 = vsub.f32 %v47, %v1643
    %1645 = vmatpush1.msra.mxu0 %v1644
    %v1646 = vand.u32 %v1173, 4294901760
    %v1647 = vsub.f32 %v1173, %v1646
    %1648 = vmatprep.mubr.f32.mxu0 %v1647
    %v1649 = vand.u32 %v1172, 4294901760
    %v1650 = vsub.f32 %v1172, %v1649
    %1651 = vmatmul.mubr.f32.gmra.mrb[0].mxu0 %v1650
    %v1652 = vpop.f32.mrb[0].mxu0
    %v1653 = vadd.f32 %v1515, %v1652
    %v1654 = vpop.f32.mrb[0].mxu0
    %1655 = vdwg.mxu0
    %1656 = vmatprep.subr.mxu0 0.0
    %v1657 = vand.u32 %v16, 4294901760
    %1658 = vmatpush1.msra.mxu0 %v1657
    %1659 = vmatprep.subr.mxu0 0.0
    %v1660 = vand.u32 %v17, 4294901760
    %1661 = vmatpush1.msra.mxu0 %v1660
    %1662 = vmatprep.subr.mxu0 0.0
    %v1663 = vand.u32 %v18, 4294901760
    %1664 = vmatpush1.msra.mxu0 %v1663
    %1665 = vmatprep.subr.mxu0 0.0
    %v1666 = vand.u32 %v19, 4294901760
    %1667 = vmatpush1.msra.mxu0 %v1666
    %1668 = vmatprep.subr.mxu0 0.0
    %v1669 = vand.u32 %v20, 4294901760
    %1670 = vmatpush1.msra.mxu0 %v1669
    %1671 = vmatprep.subr.mxu0 0.0
    %v1672 = vand.u32 %v21, 4294901760
    %1673 = vmatpush1.msra.mxu0 %v1672
    %1674 = vmatprep.subr.mxu0 0.0
    %v1675 = vand.u32 %v22, 4294901760
    %1676 = vmatpush1.msra.mxu0 %v1675
    %1677 = vmatprep.subr.mxu0 0.0
    %v1678 = vand.u32 %v23, 4294901760
    %1679 = vmatpush1.msra.mxu0 %v1678
    %1680 = vmatprep.subr.mxu0 0.0
    %v1681 = vand.u32 %v24, 4294901760
    %1682 = vmatpush1.msra.mxu0 %v1681
    %1683 = vmatprep.subr.mxu0 0.0
    %v1684 = vand.u32 %v25, 4294901760
    %1685 = vmatpush1.msra.mxu0 %v1684
    %1686 = vmatprep.subr.mxu0 0.0
    %v1687 = vand.u32 %v26, 4294901760
    %1688 = vmatpush1.msra.mxu0 %v1687
    %1689 = vmatprep.subr.mxu0 0.0
    %v1690 = vand.u32 %v27, 4294901760
    %1691 = vmatpush1.msra.mxu0 %v1690
    %1692 = vmatprep.subr.mxu0 0.0
    %v1693 = vand.u32 %v28, 4294901760
    %1694 = vmatpush1.msra.mxu0 %v1693
    %1695 = vmatprep.subr.mxu0 0.0
    %v1696 = vand.u32 %v29, 4294901760
    %1697 = vmatpush1.msra.mxu0 %v1696
    %1698 = vmatprep.subr.mxu0 0.0
    %v1699 = vand.u32 %v30, 4294901760
    %1700 = vmatpush1.msra.mxu0 %v1699
    %1701 = vmatprep.subr.mxu0 0.0
    %v1702 = vand.u32 %v31, 4294901760
    %1703 = vmatpush1.msra.mxu0 %v1702
    %1704 = vmatprep.subr.mxu0 0.0
    %v1705 = vand.u32 %v32, 4294901760
    %1706 = vmatpush1.msra.mxu0 %v1705
    %1707 = vmatprep.subr.mxu0 0.0
    %v1708 = vand.u32 %v33, 4294901760
    %1709 = vmatpush1.msra.mxu0 %v1708
    %1710 = vmatprep.subr.mxu0 0.0
    %v1711 = vand.u32 %v34, 4294901760
    %1712 = vmatpush1.msra.mxu0 %v1711
    %1713 = vmatprep.subr.mxu0 0.0
    %v1714 = vand.u32 %v35, 4294901760
    %1715 = vmatpush1.msra.mxu0 %v1714
    %1716 = vmatprep.subr.mxu0 0.0
    %v1717 = vand.u32 %v36, 4294901760
    %1718 = vmatpush1.msra.mxu0 %v1717
    %1719 = vmatprep.subr.mxu0 0.0
    %v1720 = vand.u32 %v37, 4294901760
    %1721 = vmatpush1.msra.mxu0 %v1720
    %1722 = vmatprep.subr.mxu0 0.0
    %v1723 = vand.u32 %v38, 4294901760
    %1724 = vmatpush1.msra.mxu0 %v1723
    %1725 = vmatprep.subr.mxu0 0.0
    %v1726 = vand.u32 %v39, 4294901760
    %1727 = vmatpush1.msra.mxu0 %v1726
    %1728 = vmatprep.subr.mxu0 0.0
    %v1729 = vand.u32 %v40, 4294901760
    %1730 = vmatpush1.msra.mxu0 %v1729
    %1731 = vmatprep.subr.mxu0 0.0
    %v1732 = vand.u32 %v41, 4294901760
    %1733 = vmatpush1.msra.mxu0 %v1732
    %1734 = vmatprep.subr.mxu0 0.0
    %v1735 = vand.u32 %v42, 4294901760
    %1736 = vmatpush1.msra.mxu0 %v1735
    %1737 = vmatprep.subr.mxu0 0.0
    %v1738 = vand.u32 %v43, 4294901760
    %1739 = vmatpush1.msra.mxu0 %v1738
    %1740 = vmatprep.subr.mxu0 0.0
    %v1741 = vand.u32 %v44, 4294901760
    %1742 = vmatpush1.msra.mxu0 %v1741
    %1743 = vmatprep.subr.mxu0 0.0
    %v1744 = vand.u32 %v45, 4294901760
    %1745 = vmatpush1.msra.mxu0 %v1744
    %1746 = vmatprep.subr.mxu0 0.0
    %v1747 = vand.u32 %v46, 4294901760
    %1748 = vmatpush1.msra.mxu0 %v1747
    %1749 = vmatprep.subr.mxu0 0.0
    %v1750 = vand.u32 %v47, 4294901760
    %1751 = vmatpush1.msra.mxu0 %v1750
    %v1752 = vand.u32 %v1173, 4294901760
    %v1753 = vsub.f32 %v1173, %v1752
    %v1754 = vand.u32 %v1753, 4294901760
    %1755 = vmatprep.mubr.f32.mxu0 %v1754
    %v1756 = vand.u32 %v1172, 4294901760
    %v1757 = vsub.f32 %v1172, %v1756
    %v1758 = vand.u32 %v1757, 4294901760
    %1759 = vmatmul.mubr.f32.gmra.mrb[0].mxu0 %v1758
    %v1760 = vpop.f32.mrb[0].mxu0
    %v1761 = vadd.f32 %v1653, %v1760
    %v1762 = vpop.f32.mrb[0].mxu0
    %1763 = vdwg.mxu0
    %1764 = vmatprep.subr.mxu0 0.0
    %v1765 = vand.u32 %v16, 4294901760
    %v1766 = vsub.f32 %v16, %v1765
    %v1767 = vand.u32 %v1766, 4294901760
    %1768 = vmatpush1.msra.mxu0 %v1767
    %1769 = vmatprep.subr.mxu0 0.0
    %v1770 = vand.u32 %v17, 4294901760
    %v1771 = vsub.f32 %v17, %v1770
    %v1772 = vand.u32 %v1771, 4294901760
    %1773 = vmatpush1.msra.mxu0 %v1772
    %1774 = vmatprep.subr.mxu0 0.0
    %v1775 = vand.u32 %v18, 4294901760
    %v1776 = vsub.f32 %v18, %v1775
    %v1777 = vand.u32 %v1776, 4294901760
    %1778 = vmatpush1.msra.mxu0 %v1777
    %1779 = vmatprep.subr.mxu0 0.0
    %v1780 = vand.u32 %v19, 4294901760
    %v1781 = vsub.f32 %v19, %v1780
    %v1782 = vand.u32 %v1781, 4294901760
    %1783 = vmatpush1.msra.mxu0 %v1782
    %1784 = vmatprep.subr.mxu0 0.0
    %v1785 = vand.u32 %v20, 4294901760
    %v1786 = vsub.f32 %v20, %v1785
    %v1787 = vand.u32 %v1786, 4294901760
    %1788 = vmatpush1.msra.mxu0 %v1787
    %1789 = vmatprep.subr.mxu0 0.0
    %v1790 = vand.u32 %v21, 4294901760
    %v1791 = vsub.f32 %v21, %v1790
    %v1792 = vand.u32 %v1791, 4294901760
    %1793 = vmatpush1.msra.mxu0 %v1792
    %1794 = vmatprep.subr.mxu0 0.0
    %v1795 = vand.u32 %v22, 4294901760
    %v1796 = vsub.f32 %v22, %v1795
    %v1797 = vand.u32 %v1796, 4294901760
    %1798 = vmatpush1.msra.mxu0 %v1797
    %1799 = vmatprep.subr.mxu0 0.0
    %v1800 = vand.u32 %v23, 4294901760
    %v1801 = vsub.f32 %v23, %v1800
    %v1802 = vand.u32 %v1801, 4294901760
    %1803 = vmatpush1.msra.mxu0 %v1802
    %1804 = vmatprep.subr.mxu0 0.0
    %v1805 = vand.u32 %v24, 4294901760
    %v1806 = vsub.f32 %v24, %v1805
    %v1807 = vand.u32 %v1806, 4294901760
    %1808 = vmatpush1.msra.mxu0 %v1807
    %1809 = vmatprep.subr.mxu0 0.0
    %v1810 = vand.u32 %v25, 4294901760
    %v1811 = vsub.f32 %v25, %v1810
    %v1812 = vand.u32 %v1811, 4294901760
    %1813 = vmatpush1.msra.mxu0 %v1812
    %1814 = vmatprep.subr.mxu0 0.0
    %v1815 = vand.u32 %v26, 4294901760
    %v1816 = vsub.f32 %v26, %v1815
    %v1817 = vand.u32 %v1816, 4294901760
    %1818 = vmatpush1.msra.mxu0 %v1817
    %1819 = vmatprep.subr.mxu0 0.0
    %v1820 = vand.u32 %v27, 4294901760
    %v1821 = vsub.f32 %v27, %v1820
    %v1822 = vand.u32 %v1821, 4294901760
    %1823 = vmatpush1.msra.mxu0 %v1822
    %1824 = vmatprep.subr.mxu0 0.0
    %v1825 = vand.u32 %v28, 4294901760
    %v1826 = vsub.f32 %v28, %v1825
    %v1827 = vand.u32 %v1826, 4294901760
    %1828 = vmatpush1.msra.mxu0 %v1827
    %1829 = vmatprep.subr.mxu0 0.0
    %v1830 = vand.u32 %v29, 4294901760
    %v1831 = vsub.f32 %v29, %v1830
    %v1832 = vand.u32 %v1831, 4294901760
    %1833 = vmatpush1.msra.mxu0 %v1832
    %1834 = vmatprep.subr.mxu0 0.0
    %v1835 = vand.u32 %v30, 4294901760
    %v1836 = vsub.f32 %v30, %v1835
    %v1837 = vand.u32 %v1836, 4294901760
    %1838 = vmatpush1.msra.mxu0 %v1837
    %1839 = vmatprep.subr.mxu0 0.0
    %v1840 = vand.u32 %v31, 4294901760
    %v1841 = vsub.f32 %v31, %v1840
    %v1842 = vand.u32 %v1841, 4294901760
    %1843 = vmatpush1.msra.mxu0 %v1842
    %1844 = vmatprep.subr.mxu0 0.0
    %v1845 = vand.u32 %v32, 4294901760
    %v1846 = vsub.f32 %v32, %v1845
    %v1847 = vand.u32 %v1846, 4294901760
    %1848 = vmatpush1.msra.mxu0 %v1847
    %1849 = vmatprep.subr.mxu0 0.0
    %v1850 = vand.u32 %v33, 4294901760
    %v1851 = vsub.f32 %v33, %v1850
    %v1852 = vand.u32 %v1851, 4294901760
    %1853 = vmatpush1.msra.mxu0 %v1852
    %1854 = vmatprep.subr.mxu0 0.0
    %v1855 = vand.u32 %v34, 4294901760
    %v1856 = vsub.f32 %v34, %v1855
    %v1857 = vand.u32 %v1856, 4294901760
    %1858 = vmatpush1.msra.mxu0 %v1857
    %1859 = vmatprep.subr.mxu0 0.0
    %v1860 = vand.u32 %v35, 4294901760
    %v1861 = vsub.f32 %v35, %v1860
    %v1862 = vand.u32 %v1861, 4294901760
    %1863 = vmatpush1.msra.mxu0 %v1862
    %1864 = vmatprep.subr.mxu0 0.0
    %v1865 = vand.u32 %v36, 4294901760
    %v1866 = vsub.f32 %v36, %v1865
    %v1867 = vand.u32 %v1866, 4294901760
    %1868 = vmatpush1.msra.mxu0 %v1867
    %1869 = vmatprep.subr.mxu0 0.0
    %v1870 = vand.u32 %v37, 4294901760
    %v1871 = vsub.f32 %v37, %v1870
    %v1872 = vand.u32 %v1871, 4294901760
    %1873 = vmatpush1.msra.mxu0 %v1872
    %1874 = vmatprep.subr.mxu0 0.0
    %v1875 = vand.u32 %v38, 4294901760
    %v1876 = vsub.f32 %v38, %v1875
    %v1877 = vand.u32 %v1876, 4294901760
    %1878 = vmatpush1.msra.mxu0 %v1877
    %1879 = vmatprep.subr.mxu0 0.0
    %v1880 = vand.u32 %v39, 4294901760
    %v1881 = vsub.f32 %v39, %v1880
    %v1882 = vand.u32 %v1881, 4294901760
    %1883 = vmatpush1.msra.mxu0 %v1882
    %1884 = vmatprep.subr.mxu0 0.0
    %v1885 = vand.u32 %v40, 4294901760
    %v1886 = vsub.f32 %v40, %v1885
    %v1887 = vand.u32 %v1886, 4294901760
    %1888 = vmatpush1.msra.mxu0 %v1887
    %1889 = vmatprep.subr.mxu0 0.0
    %v1890 = vand.u32 %v41, 4294901760
    %v1891 = vsub.f32 %v41, %v1890
    %v1892 = vand.u32 %v1891, 4294901760
    %1893 = vmatpush1.msra.mxu0 %v1892
    %1894 = vmatprep.subr.mxu0 0.0
    %v1895 = vand.u32 %v42, 4294901760
    %v1896 = vsub.f32 %v42, %v1895
    %v1897 = vand.u32 %v1896, 4294901760
    %1898 = vmatpush1.msra.mxu0 %v1897
    %1899 = vmatprep.subr.mxu0 0.0
    %v1900 = vand.u32 %v43, 4294901760
    %v1901 = vsub.f32 %v43, %v1900
    %v1902 = vand.u32 %v1901, 4294901760
    %1903 = vmatpush1.msra.mxu0 %v1902
    %1904 = vmatprep.subr.mxu0 0.0
    %v1905 = vand.u32 %v44, 4294901760
    %v1906 = vsub.f32 %v44, %v1905
    %v1907 = vand.u32 %v1906, 4294901760
    %1908 = vmatpush1.msra.mxu0 %v1907
    %1909 = vmatprep.subr.mxu0 0.0
    %v1910 = vand.u32 %v45, 4294901760
    %v1911 = vsub.f32 %v45, %v1910
    %v1912 = vand.u32 %v1911, 4294901760
    %1913 = vmatpush1.msra.mxu0 %v1912
    %1914 = vmatprep.subr.mxu0 0.0
    %v1915 = vand.u32 %v46, 4294901760
    %v1916 = vsub.f32 %v46, %v1915
    %v1917 = vand.u32 %v1916, 4294901760
    %1918 = vmatpush1.msra.mxu0 %v1917
    %1919 = vmatprep.subr.mxu0 0.0
    %v1920 = vand.u32 %v47, 4294901760
    %v1921 = vsub.f32 %v47, %v1920
    %v1922 = vand.u32 %v1921, 4294901760
    %1923 = vmatpush1.msra.mxu0 %v1922
    %v1924 = vand.u32 %v1173, 4294901760
    %1925 = vmatprep.mubr.f32.mxu0 %v1924
    %v1926 = vand.u32 %v1172, 4294901760
    %1927 = vmatmul.mubr.f32.gmra.mrb[0].mxu0 %v1926
    %v1928 = vpop.f32.mrb[0].mxu0
    %v1929 = vadd.f32 %v1761, %v1928
    %v1930 = vpop.f32.mrb[0].mxu0
    %1931 = vdwg.mxu0
    %1932 = vmatprep.subr.mxu0 0.0
    %v1933 = vand.u32 %v16, 4294901760
    %1934 = vmatpush1.msra.mxu0 %v1933
    %1935 = vmatprep.subr.mxu0 0.0
    %v1936 = vand.u32 %v17, 4294901760
    %1937 = vmatpush1.msra.mxu0 %v1936
    %1938 = vmatprep.subr.mxu0 0.0
    %v1939 = vand.u32 %v18, 4294901760
    %1940 = vmatpush1.msra.mxu0 %v1939
    %1941 = vmatprep.subr.mxu0 0.0
    %v1942 = vand.u32 %v19, 4294901760
    %1943 = vmatpush1.msra.mxu0 %v1942
    %1944 = vmatprep.subr.mxu0 0.0
    %v1945 = vand.u32 %v20, 4294901760
    %1946 = vmatpush1.msra.mxu0 %v1945
    %1947 = vmatprep.subr.mxu0 0.0
    %v1948 = vand.u32 %v21, 4294901760
    %1949 = vmatpush1.msra.mxu0 %v1948
    %1950 = vmatprep.subr.mxu0 0.0
    %v1951 = vand.u32 %v22, 4294901760
    %1952 = vmatpush1.msra.mxu0 %v1951
    %1953 = vmatprep.subr.mxu0 0.0
    %v1954 = vand.u32 %v23, 4294901760
    %1955 = vmatpush1.msra.mxu0 %v1954
    %1956 = vmatprep.subr.mxu0 0.0
    %v1957 = vand.u32 %v24, 4294901760
    %1958 = vmatpush1.msra.mxu0 %v1957
    %1959 = vmatprep.subr.mxu0 0.0
    %v1960 = vand.u32 %v25, 4294901760
    %1961 = vmatpush1.msra.mxu0 %v1960
    %1962 = vmatprep.subr.mxu0 0.0
    %v1963 = vand.u32 %v26, 4294901760
    %1964 = vmatpush1.msra.mxu0 %v1963
    %1965 = vmatprep.subr.mxu0 0.0
    %v1966 = vand.u32 %v27, 4294901760
    %1967 = vmatpush1.msra.mxu0 %v1966
    %1968 = vmatprep.subr.mxu0 0.0
    %v1969 = vand.u32 %v28, 4294901760
    %1970 = vmatpush1.msra.mxu0 %v1969
    %1971 = vmatprep.subr.mxu0 0.0
    %v1972 = vand.u32 %v29, 4294901760
    %1973 = vmatpush1.msra.mxu0 %v1972
    %1974 = vmatprep.subr.mxu0 0.0
    %v1975 = vand.u32 %v30, 4294901760
    %1976 = vmatpush1.msra.mxu0 %v1975
    %1977 = vmatprep.subr.mxu0 0.0
    %v1978 = vand.u32 %v31, 4294901760
    %1979 = vmatpush1.msra.mxu0 %v1978
    %1980 = vmatprep.subr.mxu0 0.0
    %v1981 = vand.u32 %v32, 4294901760
    %1982 = vmatpush1.msra.mxu0 %v1981
    %1983 = vmatprep.subr.mxu0 0.0
    %v1984 = vand.u32 %v33, 4294901760
    %1985 = vmatpush1.msra.mxu0 %v1984
    %1986 = vmatprep.subr.mxu0 0.0
    %v1987 = vand.u32 %v34, 4294901760
    %1988 = vmatpush1.msra.mxu0 %v1987
    %1989 = vmatprep.subr.mxu0 0.0
    %v1990 = vand.u32 %v35, 4294901760
    %1991 = vmatpush1.msra.mxu0 %v1990
    %1992 = vmatprep.subr.mxu0 0.0
    %v1993 = vand.u32 %v36, 4294901760
    %1994 = vmatpush1.msra.mxu0 %v1993
    %1995 = vmatprep.subr.mxu0 0.0
    %v1996 = vand.u32 %v37, 4294901760
    %1997 = vmatpush1.msra.mxu0 %v1996
    %1998 = vmatprep.subr.mxu0 0.0
    %v1999 = vand.u32 %v38, 4294901760
    %2000 = vmatpush1.msra.mxu0 %v1999
    %2001 = vmatprep.subr.mxu0 0.0
    %v2002 = vand.u32 %v39, 4294901760
    %2003 = vmatpush1.msra.mxu0 %v2002
    %2004 = vmatprep.subr.mxu0 0.0
    %v2005 = vand.u32 %v40, 4294901760
    %2006 = vmatpush1.msra.mxu0 %v2005
    %2007 = vmatprep.subr.mxu0 0.0
    %v2008 = vand.u32 %v41, 4294901760
    %2009 = vmatpush1.msra.mxu0 %v2008
    %2010 = vmatprep.subr.mxu0 0.0
    %v2011 = vand.u32 %v42, 4294901760
    %2012 = vmatpush1.msra.mxu0 %v2011
    %2013 = vmatprep.subr.mxu0 0.0
    %v2014 = vand.u32 %v43, 4294901760
    %2015 = vmatpush1.msra.mxu0 %v2014
    %2016 = vmatprep.subr.mxu0 0.0
    %v2017 = vand.u32 %v44, 4294901760
    %2018 = vmatpush1.msra.mxu0 %v2017
    %2019 = vmatprep.subr.mxu0 0.0
    %v2020 = vand.u32 %v45, 4294901760
    %2021 = vmatpush1.msra.mxu0 %v2020
    %2022 = vmatprep.subr.mxu0 0.0
    %v2023 = vand.u32 %v46, 4294901760
    %2024 = vmatpush1.msra.mxu0 %v2023
    %2025 = vmatprep.subr.mxu0 0.0
    %v2026 = vand.u32 %v47, 4294901760
    %2027 = vmatpush1.msra.mxu0 %v2026
    %v2028 = vand.u32 %v1173, 4294901760
    %2029 = vmatprep.mubr.f32.mxu0 %v2028
    %v2030 = vand.u32 %v1172, 4294901760
    %2031 = vmatmul.mubr.f32.gmra.mrb[0].mxu0 %v2030
    %v2032 = vpop.f32.mrb[0].mxu0
    %v2033 = vadd.f32 %v1929, %v2032
    %v2034 = vpop.f32.mrb[0].mxu0
    %2035 = vdwg.mxu0
    %v2036 = vmul.f32 %v2033, %v2033
    %vm2037 = vcmask 521216
    %v2038 = vsel %vm2037, %v2036, 0.0
    %2039 = vadd.xlane.f32.xlu0 %v2038
    %v2040 = vpop.xlane.xlu0 %2039
    %v2041 = vrot.slane %v2040, 4
    %v2042 = vadd.f32 %v2040, %v2041
    %v2043 = vrot.slane %v2042, 2
    %v2044 = vadd.f32 %v2042, %v2043
    %v2045 = vrot.slane %v2044, 1
    %v2046 = vadd.f32 %v2044, %v2045
    %s2047 = vtos %v2046
    %s2048 = sadd.f32 %s2047, 0.0
    %s2049 = scalar_lea.vmem %s1, 64
    %v2050 = vld [vmem:[%s2049] sm:$0xff]
    %v2051 = vld [vmem:[%s2049 + $0x8] sm:$0xff]
    %v2052 = vld [vmem:[%s2049 + $0x10] sm:$0xff]
    %v2053 = vld [vmem:[%s2049 + $0x18] sm:$0xff]
    %v2054 = vld [vmem:[%s2049 + $0x20] sm:$0xff]
    %v2055 = vld [vmem:[%s2049 + $0x28] sm:$0xff]
    %v2056 = vld [vmem:[%s2049 + $0x30] sm:$0xf]
    %v2057 = vld [vmem:[%s2049 + $0x38] sm:$0xf]
    %v2059 = vsel %vm60, %v2056, 0
    %v2062 = vsel %vm60, %v2057, 0
    %v2064 = vand.u32 %v2051, 4294901760
    %2065 = vmatprep.subr.mxu0 %v2064
    %v2066 = vand.u32 %v2050, 4294901760
    %2067 = vmatpush1.msra.mxu0 %v2066
    %v2068 = vand.u32 %v2053, 4294901760
    %2069 = vmatprep.subr.mxu0 %v2068
    %v2070 = vand.u32 %v2052, 4294901760
    %2071 = vmatpush1.msra.mxu0 %v2070
    %v2072 = vand.u32 %v2055, 4294901760
    %2073 = vmatprep.subr.mxu0 %v2072
    %v2074 = vand.u32 %v2054, 4294901760
    %2075 = vmatpush1.msra.mxu0 %v2074
    %v2076 = vand.u32 %v2062, 4294901760
    %2077 = vmatprep.subr.mxu0 %v2076
    %v2078 = vand.u32 %v2059, 4294901760
    %2079 = vmatpush1.msra.mxu0 %v2078
    %2080 = vmatprep.subr.mxu0 0.0
    %2081 = vmatpush1.msra.mxu0 0.0
    %2082 = vmatprep.subr.mxu0 0.0
    %2083 = vmatpush1.msra.mxu0 0.0
    %2084 = vmatprep.subr.mxu0 0.0
    %2085 = vmatpush1.msra.mxu0 0.0
    %2086 = vmatprep.subr.mxu0 0.0
    %2087 = vmatpush1.msra.mxu0 0.0
    %2088 = vmatprep.subr.mxu0 0.0
    %2089 = vmatpush1.msra.mxu0 0.0
    %2090 = vmatprep.subr.mxu0 0.0
    %2091 = vmatpush1.msra.mxu0 0.0
    %2092 = vmatprep.subr.mxu0 0.0
    %2093 = vmatpush1.msra.mxu0 0.0
    %2094 = vmatprep.subr.mxu0 0.0
    %2095 = vmatpush1.msra.mxu0 0.0
    %2096 = vmatprep.subr.mxu0 0.0
    %2097 = vmatpush1.msra.mxu0 0.0
    %2098 = vmatprep.subr.mxu0 0.0
    %2099 = vmatpush1.msra.mxu0 0.0
    %2100 = vmatprep.subr.mxu0 0.0
    %2101 = vmatpush1.msra.mxu0 0.0
    %2102 = vmatprep.subr.mxu0 0.0
    %2103 = vmatpush1.msra.mxu0 0.0
    %2104 = vmatprep.subr.mxu0 0.0
    %2105 = vmatpush1.msra.mxu0 0.0
    %2106 = vmatprep.subr.mxu0 0.0
    %2107 = vmatpush1.msra.mxu0 0.0
    %2108 = vmatprep.subr.mxu0 0.0
    %2109 = vmatpush1.msra.mxu0 0.0
    %2110 = vmatprep.subr.mxu0 0.0
    %2111 = vmatpush1.msra.mxu0 0.0
    %2112 = vmatprep.subr.mxu0 0.0
    %2113 = vmatpush1.msra.mxu0 0.0
    %2114 = vmatprep.subr.mxu0 0.0
    %2115 = vmatpush1.msra.mxu0 0.0
    %2116 = vmatprep.subr.mxu0 0.0
    %2117 = vmatpush1.msra.mxu0 0.0
    %2118 = vmatprep.subr.mxu0 0.0
    %2119 = vmatpush1.msra.mxu0 0.0
    %2120 = vmatprep.subr.mxu0 0.0
    %2121 = vmatpush1.msra.mxu0 0.0
    %2122 = vmatprep.subr.mxu0 0.0
    %2123 = vmatpush1.msra.mxu0 0.0
    %2124 = vmatprep.subr.mxu0 0.0
    %2125 = vmatpush1.msra.mxu0 0.0
    %2126 = vmatprep.subr.mxu0 0.0
    %2127 = vmatpush1.msra.mxu0 0.0
    %2128 = vmatprep.subr.mxu0 0.0
    %2129 = vmatpush1.msra.mxu0 0.0
    %2130 = vmatprep.subr.mxu0 0.0
    %2131 = vmatpush1.msra.mxu0 0.0
    %2132 = vmatprep.subr.mxu0 0.0
    %2133 = vmatpush1.msra.mxu0 0.0
    %2134 = vmatprep.subr.mxu0 0.0
    %2135 = vmatpush1.msra.mxu0 0.0
    %2136 = vmatprep.mubr.f32.mxu0 0.0
    %v2137 = vand.u32 %v58, 4294901760
    %v2138 = vsub.f32 %v58, %v2137
    %v2139 = vand.u32 %v2138, 4294901760
    %v2140 = vsub.f32 %v2138, %v2139
    %v2141 = vand.u32 %v2140, 4294901760
    %2142 = vmatmul.mubr.f32.gmra.mrb[0].mxu0 %v2141
    %v2143 = vpop.f32.mrb[0].mxu0
    %v2144 = vadd.f32 0.0, %v2143
    %v2145 = vpop.f32.mrb[0].mxu0
    %v2146 = vadd.f32 0.0, %v2145
    %2147 = vdwg.mxu0
    %v2148 = vand.u32 %v2051, 4294901760
    %v2149 = vsub.f32 %v2051, %v2148
    %v2150 = vand.u32 %v2149, 4294901760
    %v2151 = vsub.f32 %v2149, %v2150
    %v2152 = vand.u32 %v2151, 4294901760
    %2153 = vmatprep.subr.mxu0 %v2152
    %v2154 = vand.u32 %v2050, 4294901760
    %v2155 = vsub.f32 %v2050, %v2154
    %v2156 = vand.u32 %v2155, 4294901760
    %v2157 = vsub.f32 %v2155, %v2156
    %v2158 = vand.u32 %v2157, 4294901760
    %2159 = vmatpush1.msra.mxu0 %v2158
    %v2160 = vand.u32 %v2053, 4294901760
    %v2161 = vsub.f32 %v2053, %v2160
    %v2162 = vand.u32 %v2161, 4294901760
    %v2163 = vsub.f32 %v2161, %v2162
    %v2164 = vand.u32 %v2163, 4294901760
    %2165 = vmatprep.subr.mxu0 %v2164
    %v2166 = vand.u32 %v2052, 4294901760
    %v2167 = vsub.f32 %v2052, %v2166
    %v2168 = vand.u32 %v2167, 4294901760
    %v2169 = vsub.f32 %v2167, %v2168
    %v2170 = vand.u32 %v2169, 4294901760
    %2171 = vmatpush1.msra.mxu0 %v2170
    %v2172 = vand.u32 %v2055, 4294901760
    %v2173 = vsub.f32 %v2055, %v2172
    %v2174 = vand.u32 %v2173, 4294901760
    %v2175 = vsub.f32 %v2173, %v2174
    %v2176 = vand.u32 %v2175, 4294901760
    %2177 = vmatprep.subr.mxu0 %v2176
    %v2178 = vand.u32 %v2054, 4294901760
    %v2179 = vsub.f32 %v2054, %v2178
    %v2180 = vand.u32 %v2179, 4294901760
    %v2181 = vsub.f32 %v2179, %v2180
    %v2182 = vand.u32 %v2181, 4294901760
    %2183 = vmatpush1.msra.mxu0 %v2182
    %v2184 = vand.u32 %v2062, 4294901760
    %v2185 = vsub.f32 %v2062, %v2184
    %v2186 = vand.u32 %v2185, 4294901760
    %v2187 = vsub.f32 %v2185, %v2186
    %v2188 = vand.u32 %v2187, 4294901760
    %2189 = vmatprep.subr.mxu0 %v2188
    %v2190 = vand.u32 %v2059, 4294901760
    %v2191 = vsub.f32 %v2059, %v2190
    %v2192 = vand.u32 %v2191, 4294901760
    %v2193 = vsub.f32 %v2191, %v2192
    %v2194 = vand.u32 %v2193, 4294901760
    %2195 = vmatpush1.msra.mxu0 %v2194
    %2196 = vmatprep.subr.mxu0 0.0
    %2197 = vmatpush1.msra.mxu0 0.0
    %2198 = vmatprep.subr.mxu0 0.0
    %2199 = vmatpush1.msra.mxu0 0.0
    %2200 = vmatprep.subr.mxu0 0.0
    %2201 = vmatpush1.msra.mxu0 0.0
    %2202 = vmatprep.subr.mxu0 0.0
    %2203 = vmatpush1.msra.mxu0 0.0
    %2204 = vmatprep.subr.mxu0 0.0
    %2205 = vmatpush1.msra.mxu0 0.0
    %2206 = vmatprep.subr.mxu0 0.0
    %2207 = vmatpush1.msra.mxu0 0.0
    %2208 = vmatprep.subr.mxu0 0.0
    %2209 = vmatpush1.msra.mxu0 0.0
    %2210 = vmatprep.subr.mxu0 0.0
    %2211 = vmatpush1.msra.mxu0 0.0
    %2212 = vmatprep.subr.mxu0 0.0
    %2213 = vmatpush1.msra.mxu0 0.0
    %2214 = vmatprep.subr.mxu0 0.0
    %2215 = vmatpush1.msra.mxu0 0.0
    %2216 = vmatprep.subr.mxu0 0.0
    %2217 = vmatpush1.msra.mxu0 0.0
    %2218 = vmatprep.subr.mxu0 0.0
    %2219 = vmatpush1.msra.mxu0 0.0
    %2220 = vmatprep.subr.mxu0 0.0
    %2221 = vmatpush1.msra.mxu0 0.0
    %2222 = vmatprep.subr.mxu0 0.0
    %2223 = vmatpush1.msra.mxu0 0.0
    %2224 = vmatprep.subr.mxu0 0.0
    %2225 = vmatpush1.msra.mxu0 0.0
    %2226 = vmatprep.subr.mxu0 0.0
    %2227 = vmatpush1.msra.mxu0 0.0
    %2228 = vmatprep.subr.mxu0 0.0
    %2229 = vmatpush1.msra.mxu0 0.0
    %2230 = vmatprep.subr.mxu0 0.0
    %2231 = vmatpush1.msra.mxu0 0.0
    %2232 = vmatprep.subr.mxu0 0.0
    %2233 = vmatpush1.msra.mxu0 0.0
    %2234 = vmatprep.subr.mxu0 0.0
    %2235 = vmatpush1.msra.mxu0 0.0
    %2236 = vmatprep.subr.mxu0 0.0
    %2237 = vmatpush1.msra.mxu0 0.0
    %2238 = vmatprep.subr.mxu0 0.0
    %2239 = vmatpush1.msra.mxu0 0.0
    %2240 = vmatprep.subr.mxu0 0.0
    %2241 = vmatpush1.msra.mxu0 0.0
    %2242 = vmatprep.subr.mxu0 0.0
    %2243 = vmatpush1.msra.mxu0 0.0
    %2244 = vmatprep.subr.mxu0 0.0
    %2245 = vmatpush1.msra.mxu0 0.0
    %2246 = vmatprep.subr.mxu0 0.0
    %2247 = vmatpush1.msra.mxu0 0.0
    %2248 = vmatprep.subr.mxu0 0.0
    %2249 = vmatpush1.msra.mxu0 0.0
    %2250 = vmatprep.subr.mxu0 0.0
    %2251 = vmatpush1.msra.mxu0 0.0
    %2252 = vmatprep.mubr.f32.mxu0 0.0
    %v2253 = vand.u32 %v58, 4294901760
    %2254 = vmatmul.mubr.f32.gmra.mrb[0].mxu0 %v2253
    %v2255 = vpop.f32.mrb[0].mxu0
    %v2256 = vadd.f32 %v2144, %v2255
    %v2257 = vpop.f32.mrb[0].mxu0
    %v2258 = vadd.f32 %v2146, %v2257
    %2259 = vdwg.mxu0
    %v2260 = vand.u32 %v2051, 4294901760
    %v2261 = vsub.f32 %v2051, %v2260
    %2262 = vmatprep.subr.mxu0 %v2261
    %v2263 = vand.u32 %v2050, 4294901760
    %v2264 = vsub.f32 %v2050, %v2263
    %2265 = vmatpush1.msra.mxu0 %v2264
    %v2266 = vand.u32 %v2053, 4294901760
    %v2267 = vsub.f32 %v2053, %v2266
    %2268 = vmatprep.subr.mxu0 %v2267
    %v2269 = vand.u32 %v2052, 4294901760
    %v2270 = vsub.f32 %v2052, %v2269
    %2271 = vmatpush1.msra.mxu0 %v2270
    %v2272 = vand.u32 %v2055, 4294901760
    %v2273 = vsub.f32 %v2055, %v2272
    %2274 = vmatprep.subr.mxu0 %v2273
    %v2275 = vand.u32 %v2054, 4294901760
    %v2276 = vsub.f32 %v2054, %v2275
    %2277 = vmatpush1.msra.mxu0 %v2276
    %v2278 = vand.u32 %v2062, 4294901760
    %v2279 = vsub.f32 %v2062, %v2278
    %2280 = vmatprep.subr.mxu0 %v2279
    %v2281 = vand.u32 %v2059, 4294901760
    %v2282 = vsub.f32 %v2059, %v2281
    %2283 = vmatpush1.msra.mxu0 %v2282
    %2284 = vmatprep.subr.mxu0 0.0
    %2285 = vmatpush1.msra.mxu0 0.0
    %2286 = vmatprep.subr.mxu0 0.0
    %2287 = vmatpush1.msra.mxu0 0.0
    %2288 = vmatprep.subr.mxu0 0.0
    %2289 = vmatpush1.msra.mxu0 0.0
    %2290 = vmatprep.subr.mxu0 0.0
    %2291 = vmatpush1.msra.mxu0 0.0
    %2292 = vmatprep.subr.mxu0 0.0
    %2293 = vmatpush1.msra.mxu0 0.0
    %2294 = vmatprep.subr.mxu0 0.0
    %2295 = vmatpush1.msra.mxu0 0.0
    %2296 = vmatprep.subr.mxu0 0.0
    %2297 = vmatpush1.msra.mxu0 0.0
    %2298 = vmatprep.subr.mxu0 0.0
    %2299 = vmatpush1.msra.mxu0 0.0
    %2300 = vmatprep.subr.mxu0 0.0
    %2301 = vmatpush1.msra.mxu0 0.0
    %2302 = vmatprep.subr.mxu0 0.0
    %2303 = vmatpush1.msra.mxu0 0.0
    %2304 = vmatprep.subr.mxu0 0.0
    %2305 = vmatpush1.msra.mxu0 0.0
    %2306 = vmatprep.subr.mxu0 0.0
    %2307 = vmatpush1.msra.mxu0 0.0
    %2308 = vmatprep.subr.mxu0 0.0
    %2309 = vmatpush1.msra.mxu0 0.0
    %2310 = vmatprep.subr.mxu0 0.0
    %2311 = vmatpush1.msra.mxu0 0.0
    %2312 = vmatprep.subr.mxu0 0.0
    %2313 = vmatpush1.msra.mxu0 0.0
    %2314 = vmatprep.subr.mxu0 0.0
    %2315 = vmatpush1.msra.mxu0 0.0
    %2316 = vmatprep.subr.mxu0 0.0
    %2317 = vmatpush1.msra.mxu0 0.0
    %2318 = vmatprep.subr.mxu0 0.0
    %2319 = vmatpush1.msra.mxu0 0.0
    %2320 = vmatprep.subr.mxu0 0.0
    %2321 = vmatpush1.msra.mxu0 0.0
    %2322 = vmatprep.subr.mxu0 0.0
    %2323 = vmatpush1.msra.mxu0 0.0
    %2324 = vmatprep.subr.mxu0 0.0
    %2325 = vmatpush1.msra.mxu0 0.0
    %2326 = vmatprep.subr.mxu0 0.0
    %2327 = vmatpush1.msra.mxu0 0.0
    %2328 = vmatprep.subr.mxu0 0.0
    %2329 = vmatpush1.msra.mxu0 0.0
    %2330 = vmatprep.subr.mxu0 0.0
    %2331 = vmatpush1.msra.mxu0 0.0
    %2332 = vmatprep.subr.mxu0 0.0
    %2333 = vmatpush1.msra.mxu0 0.0
    %2334 = vmatprep.subr.mxu0 0.0
    %2335 = vmatpush1.msra.mxu0 0.0
    %2336 = vmatprep.subr.mxu0 0.0
    %2337 = vmatpush1.msra.mxu0 0.0
    %2338 = vmatprep.subr.mxu0 0.0
    %2339 = vmatpush1.msra.mxu0 0.0
    %2340 = vmatprep.mubr.f32.mxu0 0.0
    %v2341 = vand.u32 %v58, 4294901760
    %v2342 = vsub.f32 %v58, %v2341
    %2343 = vmatmul.mubr.f32.gmra.mrb[0].mxu0 %v2342
    %v2344 = vpop.f32.mrb[0].mxu0
    %v2345 = vadd.f32 %v2256, %v2344
    %v2346 = vpop.f32.mrb[0].mxu0
    %v2347 = vadd.f32 %v2258, %v2346
    %2348 = vdwg.mxu0
    %v2349 = vand.u32 %v2051, 4294901760
    %2350 = vmatprep.subr.mxu0 %v2349
    %v2351 = vand.u32 %v2050, 4294901760
    %2352 = vmatpush1.msra.mxu0 %v2351
    %v2353 = vand.u32 %v2053, 4294901760
    %2354 = vmatprep.subr.mxu0 %v2353
    %v2355 = vand.u32 %v2052, 4294901760
    %2356 = vmatpush1.msra.mxu0 %v2355
    %v2357 = vand.u32 %v2055, 4294901760
    %2358 = vmatprep.subr.mxu0 %v2357
    %v2359 = vand.u32 %v2054, 4294901760
    %2360 = vmatpush1.msra.mxu0 %v2359
    %v2361 = vand.u32 %v2062, 4294901760
    %2362 = vmatprep.subr.mxu0 %v2361
    %v2363 = vand.u32 %v2059, 4294901760
    %2364 = vmatpush1.msra.mxu0 %v2363
    %2365 = vmatprep.subr.mxu0 0.0
    %2366 = vmatpush1.msra.mxu0 0.0
    %2367 = vmatprep.subr.mxu0 0.0
    %2368 = vmatpush1.msra.mxu0 0.0
    %2369 = vmatprep.subr.mxu0 0.0
    %2370 = vmatpush1.msra.mxu0 0.0
    %2371 = vmatprep.subr.mxu0 0.0
    %2372 = vmatpush1.msra.mxu0 0.0
    %2373 = vmatprep.subr.mxu0 0.0
    %2374 = vmatpush1.msra.mxu0 0.0
    %2375 = vmatprep.subr.mxu0 0.0
    %2376 = vmatpush1.msra.mxu0 0.0
    %2377 = vmatprep.subr.mxu0 0.0
    %2378 = vmatpush1.msra.mxu0 0.0
    %2379 = vmatprep.subr.mxu0 0.0
    %2380 = vmatpush1.msra.mxu0 0.0
    %2381 = vmatprep.subr.mxu0 0.0
    %2382 = vmatpush1.msra.mxu0 0.0
    %2383 = vmatprep.subr.mxu0 0.0
    %2384 = vmatpush1.msra.mxu0 0.0
    %2385 = vmatprep.subr.mxu0 0.0
    %2386 = vmatpush1.msra.mxu0 0.0
    %2387 = vmatprep.subr.mxu0 0.0
    %2388 = vmatpush1.msra.mxu0 0.0
    %2389 = vmatprep.subr.mxu0 0.0
    %2390 = vmatpush1.msra.mxu0 0.0
    %2391 = vmatprep.subr.mxu0 0.0
    %2392 = vmatpush1.msra.mxu0 0.0
    %2393 = vmatprep.subr.mxu0 0.0
    %2394 = vmatpush1.msra.mxu0 0.0
    %2395 = vmatprep.subr.mxu0 0.0
    %2396 = vmatpush1.msra.mxu0 0.0
    %2397 = vmatprep.subr.mxu0 0.0
    %2398 = vmatpush1.msra.mxu0 0.0
    %2399 = vmatprep.subr.mxu0 0.0
    %2400 = vmatpush1.msra.mxu0 0.0
    %2401 = vmatprep.subr.mxu0 0.0
    %2402 = vmatpush1.msra.mxu0 0.0
    %2403 = vmatprep.subr.mxu0 0.0
    %2404 = vmatpush1.msra.mxu0 0.0
    %2405 = vmatprep.subr.mxu0 0.0
    %2406 = vmatpush1.msra.mxu0 0.0
    %2407 = vmatprep.subr.mxu0 0.0
    %2408 = vmatpush1.msra.mxu0 0.0
    %2409 = vmatprep.subr.mxu0 0.0
    %2410 = vmatpush1.msra.mxu0 0.0
    %2411 = vmatprep.subr.mxu0 0.0
    %2412 = vmatpush1.msra.mxu0 0.0
    %2413 = vmatprep.subr.mxu0 0.0
    %2414 = vmatpush1.msra.mxu0 0.0
    %2415 = vmatprep.subr.mxu0 0.0
    %2416 = vmatpush1.msra.mxu0 0.0
    %2417 = vmatprep.subr.mxu0 0.0
    %2418 = vmatpush1.msra.mxu0 0.0
    %2419 = vmatprep.subr.mxu0 0.0
    %2420 = vmatpush1.msra.mxu0 0.0
    %2421 = vmatprep.mubr.f32.mxu0 0.0
    %v2422 = vand.u32 %v58, 4294901760
    %v2423 = vsub.f32 %v58, %v2422
    %v2424 = vand.u32 %v2423, 4294901760
    %2425 = vmatmul.mubr.f32.gmra.mrb[0].mxu0 %v2424
    %v2426 = vpop.f32.mrb[0].mxu0
    %v2427 = vadd.f32 %v2345, %v2426
    %v2428 = vpop.f32.mrb[0].mxu0
    %v2429 = vadd.f32 %v2347, %v2428
    %2430 = vdwg.mxu0
    %v2431 = vand.u32 %v2051, 4294901760
    %v2432 = vsub.f32 %v2051, %v2431
    %v2433 = vand.u32 %v2432, 4294901760
    %2434 = vmatprep.subr.mxu0 %v2433
    %v2435 = vand.u32 %v2050, 4294901760
    %v2436 = vsub.f32 %v2050, %v2435
    %v2437 = vand.u32 %v2436, 4294901760
    %2438 = vmatpush1.msra.mxu0 %v2437
    %v2439 = vand.u32 %v2053, 4294901760
    %v2440 = vsub.f32 %v2053, %v2439
    %v2441 = vand.u32 %v2440, 4294901760
    %2442 = vmatprep.subr.mxu0 %v2441
    %v2443 = vand.u32 %v2052, 4294901760
    %v2444 = vsub.f32 %v2052, %v2443
    %v2445 = vand.u32 %v2444, 4294901760
    %2446 = vmatpush1.msra.mxu0 %v2445
    %v2447 = vand.u32 %v2055, 4294901760
    %v2448 = vsub.f32 %v2055, %v2447
    %v2449 = vand.u32 %v2448, 4294901760
    %2450 = vmatprep.subr.mxu0 %v2449
    %v2451 = vand.u32 %v2054, 4294901760
    %v2452 = vsub.f32 %v2054, %v2451
    %v2453 = vand.u32 %v2452, 4294901760
    %2454 = vmatpush1.msra.mxu0 %v2453
    %v2455 = vand.u32 %v2062, 4294901760
    %v2456 = vsub.f32 %v2062, %v2455
    %v2457 = vand.u32 %v2456, 4294901760
    %2458 = vmatprep.subr.mxu0 %v2457
    %v2459 = vand.u32 %v2059, 4294901760
    %v2460 = vsub.f32 %v2059, %v2459
    %v2461 = vand.u32 %v2460, 4294901760
    %2462 = vmatpush1.msra.mxu0 %v2461
    %2463 = vmatprep.subr.mxu0 0.0
    %2464 = vmatpush1.msra.mxu0 0.0
    %2465 = vmatprep.subr.mxu0 0.0
    %2466 = vmatpush1.msra.mxu0 0.0
    %2467 = vmatprep.subr.mxu0 0.0
    %2468 = vmatpush1.msra.mxu0 0.0
    %2469 = vmatprep.subr.mxu0 0.0
    %2470 = vmatpush1.msra.mxu0 0.0
    %2471 = vmatprep.subr.mxu0 0.0
    %2472 = vmatpush1.msra.mxu0 0.0
    %2473 = vmatprep.subr.mxu0 0.0
    %2474 = vmatpush1.msra.mxu0 0.0
    %2475 = vmatprep.subr.mxu0 0.0
    %2476 = vmatpush1.msra.mxu0 0.0
    %2477 = vmatprep.subr.mxu0 0.0
    %2478 = vmatpush1.msra.mxu0 0.0
    %2479 = vmatprep.subr.mxu0 0.0
    %2480 = vmatpush1.msra.mxu0 0.0
    %2481 = vmatprep.subr.mxu0 0.0
    %2482 = vmatpush1.msra.mxu0 0.0
    %2483 = vmatprep.subr.mxu0 0.0
    %2484 = vmatpush1.msra.mxu0 0.0
    %2485 = vmatprep.subr.mxu0 0.0
    %2486 = vmatpush1.msra.mxu0 0.0
    %2487 = vmatprep.subr.mxu0 0.0
    %2488 = vmatpush1.msra.mxu0 0.0
    %2489 = vmatprep.subr.mxu0 0.0
    %2490 = vmatpush1.msra.mxu0 0.0
    %2491 = vmatprep.subr.mxu0 0.0
    %2492 = vmatpush1.msra.mxu0 0.0
    %2493 = vmatprep.subr.mxu0 0.0
    %2494 = vmatpush1.msra.mxu0 0.0
    %2495 = vmatprep.subr.mxu0 0.0
    %2496 = vmatpush1.msra.mxu0 0.0
    %2497 = vmatprep.subr.mxu0 0.0
    %2498 = vmatpush1.msra.mxu0 0.0
    %2499 = vmatprep.subr.mxu0 0.0
    %2500 = vmatpush1.msra.mxu0 0.0
    %2501 = vmatprep.subr.mxu0 0.0
    %2502 = vmatpush1.msra.mxu0 0.0
    %2503 = vmatprep.subr.mxu0 0.0
    %2504 = vmatpush1.msra.mxu0 0.0
    %2505 = vmatprep.subr.mxu0 0.0
    %2506 = vmatpush1.msra.mxu0 0.0
    %2507 = vmatprep.subr.mxu0 0.0
    %2508 = vmatpush1.msra.mxu0 0.0
    %2509 = vmatprep.subr.mxu0 0.0
    %2510 = vmatpush1.msra.mxu0 0.0
    %2511 = vmatprep.subr.mxu0 0.0
    %2512 = vmatpush1.msra.mxu0 0.0
    %2513 = vmatprep.subr.mxu0 0.0
    %2514 = vmatpush1.msra.mxu0 0.0
    %2515 = vmatprep.subr.mxu0 0.0
    %2516 = vmatpush1.msra.mxu0 0.0
    %2517 = vmatprep.subr.mxu0 0.0
    %2518 = vmatpush1.msra.mxu0 0.0
    %2519 = vmatprep.mubr.f32.mxu0 0.0
    %v2520 = vand.u32 %v58, 4294901760
    %2521 = vmatmul.mubr.f32.gmra.mrb[0].mxu0 %v2520
    %v2522 = vpop.f32.mrb[0].mxu0
    %v2523 = vadd.f32 %v2427, %v2522
    %v2524 = vpop.f32.mrb[0].mxu0
    %v2525 = vadd.f32 %v2429, %v2524
    %2526 = vdwg.mxu0
    %v2527 = vand.u32 %v2051, 4294901760
    %2528 = vmatprep.subr.mxu0 %v2527
    %v2529 = vand.u32 %v2050, 4294901760
    %2530 = vmatpush1.msra.mxu0 %v2529
    %v2531 = vand.u32 %v2053, 4294901760
    %2532 = vmatprep.subr.mxu0 %v2531
    %v2533 = vand.u32 %v2052, 4294901760
    %2534 = vmatpush1.msra.mxu0 %v2533
    %v2535 = vand.u32 %v2055, 4294901760
    %2536 = vmatprep.subr.mxu0 %v2535
    %v2537 = vand.u32 %v2054, 4294901760
    %2538 = vmatpush1.msra.mxu0 %v2537
    %v2539 = vand.u32 %v2062, 4294901760
    %2540 = vmatprep.subr.mxu0 %v2539
    %v2541 = vand.u32 %v2059, 4294901760
    %2542 = vmatpush1.msra.mxu0 %v2541
    %2543 = vmatprep.subr.mxu0 0.0
    %2544 = vmatpush1.msra.mxu0 0.0
    %2545 = vmatprep.subr.mxu0 0.0
    %2546 = vmatpush1.msra.mxu0 0.0
    %2547 = vmatprep.subr.mxu0 0.0
    %2548 = vmatpush1.msra.mxu0 0.0
    %2549 = vmatprep.subr.mxu0 0.0
    %2550 = vmatpush1.msra.mxu0 0.0
    %2551 = vmatprep.subr.mxu0 0.0
    %2552 = vmatpush1.msra.mxu0 0.0
    %2553 = vmatprep.subr.mxu0 0.0
    %2554 = vmatpush1.msra.mxu0 0.0
    %2555 = vmatprep.subr.mxu0 0.0
    %2556 = vmatpush1.msra.mxu0 0.0
    %2557 = vmatprep.subr.mxu0 0.0
    %2558 = vmatpush1.msra.mxu0 0.0
    %2559 = vmatprep.subr.mxu0 0.0
    %2560 = vmatpush1.msra.mxu0 0.0
    %2561 = vmatprep.subr.mxu0 0.0
    %2562 = vmatpush1.msra.mxu0 0.0
    %2563 = vmatprep.subr.mxu0 0.0
    %2564 = vmatpush1.msra.mxu0 0.0
    %2565 = vmatprep.subr.mxu0 0.0
    %2566 = vmatpush1.msra.mxu0 0.0
    %2567 = vmatprep.subr.mxu0 0.0
    %2568 = vmatpush1.msra.mxu0 0.0
    %2569 = vmatprep.subr.mxu0 0.0
    %2570 = vmatpush1.msra.mxu0 0.0
    %2571 = vmatprep.subr.mxu0 0.0
    %2572 = vmatpush1.msra.mxu0 0.0
    %2573 = vmatprep.subr.mxu0 0.0
    %2574 = vmatpush1.msra.mxu0 0.0
    %2575 = vmatprep.subr.mxu0 0.0
    %2576 = vmatpush1.msra.mxu0 0.0
    %2577 = vmatprep.subr.mxu0 0.0
    %2578 = vmatpush1.msra.mxu0 0.0
    %2579 = vmatprep.subr.mxu0 0.0
    %2580 = vmatpush1.msra.mxu0 0.0
    %2581 = vmatprep.subr.mxu0 0.0
    %2582 = vmatpush1.msra.mxu0 0.0
    %2583 = vmatprep.subr.mxu0 0.0
    %2584 = vmatpush1.msra.mxu0 0.0
    %2585 = vmatprep.subr.mxu0 0.0
    %2586 = vmatpush1.msra.mxu0 0.0
    %2587 = vmatprep.subr.mxu0 0.0
    %2588 = vmatpush1.msra.mxu0 0.0
    %2589 = vmatprep.subr.mxu0 0.0
    %2590 = vmatpush1.msra.mxu0 0.0
    %2591 = vmatprep.subr.mxu0 0.0
    %2592 = vmatpush1.msra.mxu0 0.0
    %2593 = vmatprep.subr.mxu0 0.0
    %2594 = vmatpush1.msra.mxu0 0.0
    %2595 = vmatprep.subr.mxu0 0.0
    %2596 = vmatpush1.msra.mxu0 0.0
    %2597 = vmatprep.subr.mxu0 0.0
    %2598 = vmatpush1.msra.mxu0 0.0
    %2599 = vmatprep.mubr.f32.mxu0 0.0
    %v2600 = vand.u32 %v58, 4294901760
    %2601 = vmatmul.mubr.f32.gmra.mrb[0].mxu0 %v2600
    %v2602 = vpop.f32.mrb[0].mxu0
    %v2603 = vadd.f32 %v2523, %v2602
    %v2604 = vpop.f32.mrb[0].mxu0
    %v2605 = vadd.f32 %v2525, %v2604
    %2606 = vdwg.mxu0
    %v2607 = vmax.f32 %v2603, 0.0
    %v2608 = vmax.f32 %v2605, 0.0
    %s2609 = scalar_lea.vmem %s1, 192
    %v2610 = vld [vmem:[%s2609] sm:$0xff]
    %v2611 = vld [vmem:[%s2609 + $0x8] sm:$0xff]
    %v2612 = vld [vmem:[%s2609 + $0x10] sm:$0xff]
    %v2613 = vld [vmem:[%s2609 + $0x18] sm:$0xff]
    %v2614 = vld [vmem:[%s2609 + $0x20] sm:$0xff]
    %v2615 = vld [vmem:[%s2609 + $0x28] sm:$0xff]
    %v2616 = vld [vmem:[%s2609 + $0x30] sm:$0xf]
    %v2617 = vld [vmem:[%s2609 + $0x38] sm:$0xf]
    %v2619 = vsel %vm60, %v2616, 0
    %v2622 = vsel %vm60, %v2617, 0
    %v2624 = vand.u32 %v2611, 4294901760
    %2625 = vmatprep.subr.mxu0 %v2624
    %v2626 = vand.u32 %v2610, 4294901760
    %2627 = vmatpush1.msra.mxu0 %v2626
    %v2628 = vand.u32 %v2613, 4294901760
    %2629 = vmatprep.subr.mxu0 %v2628
    %v2630 = vand.u32 %v2612, 4294901760
    %2631 = vmatpush1.msra.mxu0 %v2630
    %v2632 = vand.u32 %v2615, 4294901760
    %2633 = vmatprep.subr.mxu0 %v2632
    %v2634 = vand.u32 %v2614, 4294901760
    %2635 = vmatpush1.msra.mxu0 %v2634
    %v2636 = vand.u32 %v2622, 4294901760
    %2637 = vmatprep.subr.mxu0 %v2636
    %v2638 = vand.u32 %v2619, 4294901760
    %2639 = vmatpush1.msra.mxu0 %v2638
    %2640 = vmatprep.subr.mxu0 0.0
    %2641 = vmatpush1.msra.mxu0 0.0
    %2642 = vmatprep.subr.mxu0 0.0
    %2643 = vmatpush1.msra.mxu0 0.0
    %2644 = vmatprep.subr.mxu0 0.0
    %2645 = vmatpush1.msra.mxu0 0.0
    %2646 = vmatprep.subr.mxu0 0.0
    %2647 = vmatpush1.msra.mxu0 0.0
    %2648 = vmatprep.subr.mxu0 0.0
    %2649 = vmatpush1.msra.mxu0 0.0
    %2650 = vmatprep.subr.mxu0 0.0
    %2651 = vmatpush1.msra.mxu0 0.0
    %2652 = vmatprep.subr.mxu0 0.0
    %2653 = vmatpush1.msra.mxu0 0.0
    %2654 = vmatprep.subr.mxu0 0.0
    %2655 = vmatpush1.msra.mxu0 0.0
    %2656 = vmatprep.subr.mxu0 0.0
    %2657 = vmatpush1.msra.mxu0 0.0
    %2658 = vmatprep.subr.mxu0 0.0
    %2659 = vmatpush1.msra.mxu0 0.0
    %2660 = vmatprep.subr.mxu0 0.0
    %2661 = vmatpush1.msra.mxu0 0.0
    %2662 = vmatprep.subr.mxu0 0.0
    %2663 = vmatpush1.msra.mxu0 0.0
    %2664 = vmatprep.subr.mxu0 0.0
    %2665 = vmatpush1.msra.mxu0 0.0
    %2666 = vmatprep.subr.mxu0 0.0
    %2667 = vmatpush1.msra.mxu0 0.0
    %2668 = vmatprep.subr.mxu0 0.0
    %2669 = vmatpush1.msra.mxu0 0.0
    %2670 = vmatprep.subr.mxu0 0.0
    %2671 = vmatpush1.msra.mxu0 0.0
    %2672 = vmatprep.subr.mxu0 0.0
    %2673 = vmatpush1.msra.mxu0 0.0
    %2674 = vmatprep.subr.mxu0 0.0
    %2675 = vmatpush1.msra.mxu0 0.0
    %2676 = vmatprep.subr.mxu0 0.0
    %2677 = vmatpush1.msra.mxu0 0.0
    %2678 = vmatprep.subr.mxu0 0.0
    %2679 = vmatpush1.msra.mxu0 0.0
    %2680 = vmatprep.subr.mxu0 0.0
    %2681 = vmatpush1.msra.mxu0 0.0
    %2682 = vmatprep.subr.mxu0 0.0
    %2683 = vmatpush1.msra.mxu0 0.0
    %2684 = vmatprep.subr.mxu0 0.0
    %2685 = vmatpush1.msra.mxu0 0.0
    %2686 = vmatprep.subr.mxu0 0.0
    %2687 = vmatpush1.msra.mxu0 0.0
    %2688 = vmatprep.subr.mxu0 0.0
    %2689 = vmatpush1.msra.mxu0 0.0
    %2690 = vmatprep.subr.mxu0 0.0
    %2691 = vmatpush1.msra.mxu0 0.0
    %2692 = vmatprep.subr.mxu0 0.0
    %2693 = vmatpush1.msra.mxu0 0.0
    %2694 = vmatprep.subr.mxu0 0.0
    %2695 = vmatpush1.msra.mxu0 0.0
    %2696 = vmatprep.mubr.f32.mxu0 0.0
    %v2697 = vand.u32 %v58, 4294901760
    %v2698 = vsub.f32 %v58, %v2697
    %v2699 = vand.u32 %v2698, 4294901760
    %v2700 = vsub.f32 %v2698, %v2699
    %v2701 = vand.u32 %v2700, 4294901760
    %2702 = vmatmul.mubr.f32.gmra.mrb[0].mxu0 %v2701
    %v2703 = vpop.f32.mrb[0].mxu0
    %v2704 = vadd.f32 0.0, %v2703
    %v2705 = vpop.f32.mrb[0].mxu0
    %v2706 = vadd.f32 0.0, %v2705
    %2707 = vdwg.mxu0
    %v2708 = vand.u32 %v2611, 4294901760
    %v2709 = vsub.f32 %v2611, %v2708
    %v2710 = vand.u32 %v2709, 4294901760
    %v2711 = vsub.f32 %v2709, %v2710
    %v2712 = vand.u32 %v2711, 4294901760
    %2713 = vmatprep.subr.mxu0 %v2712
    %v2714 = vand.u32 %v2610, 4294901760
    %v2715 = vsub.f32 %v2610, %v2714
    %v2716 = vand.u32 %v2715, 4294901760
    %v2717 = vsub.f32 %v2715, %v2716
    %v2718 = vand.u32 %v2717, 4294901760
    %2719 = vmatpush1.msra.mxu0 %v2718
    %v2720 = vand.u32 %v2613, 4294901760
    %v2721 = vsub.f32 %v2613, %v2720
    %v2722 = vand.u32 %v2721, 4294901760
    %v2723 = vsub.f32 %v2721, %v2722
    %v2724 = vand.u32 %v2723, 4294901760
    %2725 = vmatprep.subr.mxu0 %v2724
    %v2726 = vand.u32 %v2612, 4294901760
    %v2727 = vsub.f32 %v2612, %v2726
    %v2728 = vand.u32 %v2727, 4294901760
    %v2729 = vsub.f32 %v2727, %v2728
    %v2730 = vand.u32 %v2729, 4294901760
    %2731 = vmatpush1.msra.mxu0 %v2730
    %v2732 = vand.u32 %v2615, 4294901760
    %v2733 = vsub.f32 %v2615, %v2732
    %v2734 = vand.u32 %v2733, 4294901760
    %v2735 = vsub.f32 %v2733, %v2734
    %v2736 = vand.u32 %v2735, 4294901760
    %2737 = vmatprep.subr.mxu0 %v2736
    %v2738 = vand.u32 %v2614, 4294901760
    %v2739 = vsub.f32 %v2614, %v2738
    %v2740 = vand.u32 %v2739, 4294901760
    %v2741 = vsub.f32 %v2739, %v2740
    %v2742 = vand.u32 %v2741, 4294901760
    %2743 = vmatpush1.msra.mxu0 %v2742
    %v2744 = vand.u32 %v2622, 4294901760
    %v2745 = vsub.f32 %v2622, %v2744
    %v2746 = vand.u32 %v2745, 4294901760
    %v2747 = vsub.f32 %v2745, %v2746
    %v2748 = vand.u32 %v2747, 4294901760
    %2749 = vmatprep.subr.mxu0 %v2748
    %v2750 = vand.u32 %v2619, 4294901760
    %v2751 = vsub.f32 %v2619, %v2750
    %v2752 = vand.u32 %v2751, 4294901760
    %v2753 = vsub.f32 %v2751, %v2752
    %v2754 = vand.u32 %v2753, 4294901760
    %2755 = vmatpush1.msra.mxu0 %v2754
    %2756 = vmatprep.subr.mxu0 0.0
    %2757 = vmatpush1.msra.mxu0 0.0
    %2758 = vmatprep.subr.mxu0 0.0
    %2759 = vmatpush1.msra.mxu0 0.0
    %2760 = vmatprep.subr.mxu0 0.0
    %2761 = vmatpush1.msra.mxu0 0.0
    %2762 = vmatprep.subr.mxu0 0.0
    %2763 = vmatpush1.msra.mxu0 0.0
    %2764 = vmatprep.subr.mxu0 0.0
    %2765 = vmatpush1.msra.mxu0 0.0
    %2766 = vmatprep.subr.mxu0 0.0
    %2767 = vmatpush1.msra.mxu0 0.0
    %2768 = vmatprep.subr.mxu0 0.0
    %2769 = vmatpush1.msra.mxu0 0.0
    %2770 = vmatprep.subr.mxu0 0.0
    %2771 = vmatpush1.msra.mxu0 0.0
    %2772 = vmatprep.subr.mxu0 0.0
    %2773 = vmatpush1.msra.mxu0 0.0
    %2774 = vmatprep.subr.mxu0 0.0
    %2775 = vmatpush1.msra.mxu0 0.0
    %2776 = vmatprep.subr.mxu0 0.0
    %2777 = vmatpush1.msra.mxu0 0.0
    %2778 = vmatprep.subr.mxu0 0.0
    %2779 = vmatpush1.msra.mxu0 0.0
    %2780 = vmatprep.subr.mxu0 0.0
    %2781 = vmatpush1.msra.mxu0 0.0
    %2782 = vmatprep.subr.mxu0 0.0
    %2783 = vmatpush1.msra.mxu0 0.0
    %2784 = vmatprep.subr.mxu0 0.0
    %2785 = vmatpush1.msra.mxu0 0.0
    %2786 = vmatprep.subr.mxu0 0.0
    %2787 = vmatpush1.msra.mxu0 0.0
    %2788 = vmatprep.subr.mxu0 0.0
    %2789 = vmatpush1.msra.mxu0 0.0
    %2790 = vmatprep.subr.mxu0 0.0
    %2791 = vmatpush1.msra.mxu0 0.0
    %2792 = vmatprep.subr.mxu0 0.0
    %2793 = vmatpush1.msra.mxu0 0.0
    %2794 = vmatprep.subr.mxu0 0.0
    %2795 = vmatpush1.msra.mxu0 0.0
    %2796 = vmatprep.subr.mxu0 0.0
    %2797 = vmatpush1.msra.mxu0 0.0
    %2798 = vmatprep.subr.mxu0 0.0
    %2799 = vmatpush1.msra.mxu0 0.0
    %2800 = vmatprep.subr.mxu0 0.0
    %2801 = vmatpush1.msra.mxu0 0.0
    %2802 = vmatprep.subr.mxu0 0.0
    %2803 = vmatpush1.msra.mxu0 0.0
    %2804 = vmatprep.subr.mxu0 0.0
    %2805 = vmatpush1.msra.mxu0 0.0
    %2806 = vmatprep.subr.mxu0 0.0
    %2807 = vmatpush1.msra.mxu0 0.0
    %2808 = vmatprep.subr.mxu0 0.0
    %2809 = vmatpush1.msra.mxu0 0.0
    %2810 = vmatprep.subr.mxu0 0.0
    %2811 = vmatpush1.msra.mxu0 0.0
    %2812 = vmatprep.mubr.f32.mxu0 0.0
    %v2813 = vand.u32 %v58, 4294901760
    %2814 = vmatmul.mubr.f32.gmra.mrb[0].mxu0 %v2813
    %v2815 = vpop.f32.mrb[0].mxu0
    %v2816 = vadd.f32 %v2704, %v2815
    %v2817 = vpop.f32.mrb[0].mxu0
    %v2818 = vadd.f32 %v2706, %v2817
    %2819 = vdwg.mxu0
    %v2820 = vand.u32 %v2611, 4294901760
    %v2821 = vsub.f32 %v2611, %v2820
    %2822 = vmatprep.subr.mxu0 %v2821
    %v2823 = vand.u32 %v2610, 4294901760
    %v2824 = vsub.f32 %v2610, %v2823
    %2825 = vmatpush1.msra.mxu0 %v2824
    %v2826 = vand.u32 %v2613, 4294901760
    %v2827 = vsub.f32 %v2613, %v2826
    %2828 = vmatprep.subr.mxu0 %v2827
    %v2829 = vand.u32 %v2612, 4294901760
    %v2830 = vsub.f32 %v2612, %v2829
    %2831 = vmatpush1.msra.mxu0 %v2830
    %v2832 = vand.u32 %v2615, 4294901760
    %v2833 = vsub.f32 %v2615, %v2832
    %2834 = vmatprep.subr.mxu0 %v2833
    %v2835 = vand.u32 %v2614, 4294901760
    %v2836 = vsub.f32 %v2614, %v2835
    %2837 = vmatpush1.msra.mxu0 %v2836
    %v2838 = vand.u32 %v2622, 4294901760
    %v2839 = vsub.f32 %v2622, %v2838
    %2840 = vmatprep.subr.mxu0 %v2839
    %v2841 = vand.u32 %v2619, 4294901760
    %v2842 = vsub.f32 %v2619, %v2841
    %2843 = vmatpush1.msra.mxu0 %v2842
    %2844 = vmatprep.subr.mxu0 0.0
    %2845 = vmatpush1.msra.mxu0 0.0
    %2846 = vmatprep.subr.mxu0 0.0
    %2847 = vmatpush1.msra.mxu0 0.0
    %2848 = vmatprep.subr.mxu0 0.0
    %2849 = vmatpush1.msra.mxu0 0.0
    %2850 = vmatprep.subr.mxu0 0.0
    %2851 = vmatpush1.msra.mxu0 0.0
    %2852 = vmatprep.subr.mxu0 0.0
    %2853 = vmatpush1.msra.mxu0 0.0
    %2854 = vmatprep.subr.mxu0 0.0
    %2855 = vmatpush1.msra.mxu0 0.0
    %2856 = vmatprep.subr.mxu0 0.0
    %2857 = vmatpush1.msra.mxu0 0.0
    %2858 = vmatprep.subr.mxu0 0.0
    %2859 = vmatpush1.msra.mxu0 0.0
    %2860 = vmatprep.subr.mxu0 0.0
    %2861 = vmatpush1.msra.mxu0 0.0
    %2862 = vmatprep.subr.mxu0 0.0
    %2863 = vmatpush1.msra.mxu0 0.0
    %2864 = vmatprep.subr.mxu0 0.0
    %2865 = vmatpush1.msra.mxu0 0.0
    %2866 = vmatprep.subr.mxu0 0.0
    %2867 = vmatpush1.msra.mxu0 0.0
    %2868 = vmatprep.subr.mxu0 0.0
    %2869 = vmatpush1.msra.mxu0 0.0
    %2870 = vmatprep.subr.mxu0 0.0
    %2871 = vmatpush1.msra.mxu0 0.0
    %2872 = vmatprep.subr.mxu0 0.0
    %2873 = vmatpush1.msra.mxu0 0.0
    %2874 = vmatprep.subr.mxu0 0.0
    %2875 = vmatpush1.msra.mxu0 0.0
    %2876 = vmatprep.subr.mxu0 0.0
    %2877 = vmatpush1.msra.mxu0 0.0
    %2878 = vmatprep.subr.mxu0 0.0
    %2879 = vmatpush1.msra.mxu0 0.0
    %2880 = vmatprep.subr.mxu0 0.0
    %2881 = vmatpush1.msra.mxu0 0.0
    %2882 = vmatprep.subr.mxu0 0.0
    %2883 = vmatpush1.msra.mxu0 0.0
    %2884 = vmatprep.subr.mxu0 0.0
    %2885 = vmatpush1.msra.mxu0 0.0
    %2886 = vmatprep.subr.mxu0 0.0
    %2887 = vmatpush1.msra.mxu0 0.0
    %2888 = vmatprep.subr.mxu0 0.0
    %2889 = vmatpush1.msra.mxu0 0.0
    %2890 = vmatprep.subr.mxu0 0.0
    %2891 = vmatpush1.msra.mxu0 0.0
    %2892 = vmatprep.subr.mxu0 0.0
    %2893 = vmatpush1.msra.mxu0 0.0
    %2894 = vmatprep.subr.mxu0 0.0
    %2895 = vmatpush1.msra.mxu0 0.0
    %2896 = vmatprep.subr.mxu0 0.0
    %2897 = vmatpush1.msra.mxu0 0.0
    %2898 = vmatprep.subr.mxu0 0.0
    %2899 = vmatpush1.msra.mxu0 0.0
    %2900 = vmatprep.mubr.f32.mxu0 0.0
    %v2901 = vand.u32 %v58, 4294901760
    %v2902 = vsub.f32 %v58, %v2901
    %2903 = vmatmul.mubr.f32.gmra.mrb[0].mxu0 %v2902
    %v2904 = vpop.f32.mrb[0].mxu0
    %v2905 = vadd.f32 %v2816, %v2904
    %v2906 = vpop.f32.mrb[0].mxu0
    %v2907 = vadd.f32 %v2818, %v2906
    %2908 = vdwg.mxu0
    %v2909 = vand.u32 %v2611, 4294901760
    %2910 = vmatprep.subr.mxu0 %v2909
    %v2911 = vand.u32 %v2610, 4294901760
    %2912 = vmatpush1.msra.mxu0 %v2911
    %v2913 = vand.u32 %v2613, 4294901760
    %2914 = vmatprep.subr.mxu0 %v2913
    %v2915 = vand.u32 %v2612, 4294901760
    %2916 = vmatpush1.msra.mxu0 %v2915
    %v2917 = vand.u32 %v2615, 4294901760
    %2918 = vmatprep.subr.mxu0 %v2917
    %v2919 = vand.u32 %v2614, 4294901760
    %2920 = vmatpush1.msra.mxu0 %v2919
    %v2921 = vand.u32 %v2622, 4294901760
    %2922 = vmatprep.subr.mxu0 %v2921
    %v2923 = vand.u32 %v2619, 4294901760
    %2924 = vmatpush1.msra.mxu0 %v2923
    %2925 = vmatprep.subr.mxu0 0.0
    %2926 = vmatpush1.msra.mxu0 0.0
    %2927 = vmatprep.subr.mxu0 0.0
    %2928 = vmatpush1.msra.mxu0 0.0
    %2929 = vmatprep.subr.mxu0 0.0
    %2930 = vmatpush1.msra.mxu0 0.0
    %2931 = vmatprep.subr.mxu0 0.0
    %2932 = vmatpush1.msra.mxu0 0.0
    %2933 = vmatprep.subr.mxu0 0.0
    %2934 = vmatpush1.msra.mxu0 0.0
    %2935 = vmatprep.subr.mxu0 0.0
    %2936 = vmatpush1.msra.mxu0 0.0
    %2937 = vmatprep.subr.mxu0 0.0
    %2938 = vmatpush1.msra.mxu0 0.0
    %2939 = vmatprep.subr.mxu0 0.0
    %2940 = vmatpush1.msra.mxu0 0.0
    %2941 = vmatprep.subr.mxu0 0.0
    %2942 = vmatpush1.msra.mxu0 0.0
    %2943 = vmatprep.subr.mxu0 0.0
    %2944 = vmatpush1.msra.mxu0 0.0
    %2945 = vmatprep.subr.mxu0 0.0
    %2946 = vmatpush1.msra.mxu0 0.0
    %2947 = vmatprep.subr.mxu0 0.0
    %2948 = vmatpush1.msra.mxu0 0.0
    %2949 = vmatprep.subr.mxu0 0.0
    %2950 = vmatpush1.msra.mxu0 0.0
    %2951 = vmatprep.subr.mxu0 0.0
    %2952 = vmatpush1.msra.mxu0 0.0
    %2953 = vmatprep.subr.mxu0 0.0
    %2954 = vmatpush1.msra.mxu0 0.0
    %2955 = vmatprep.subr.mxu0 0.0
    %2956 = vmatpush1.msra.mxu0 0.0
    %2957 = vmatprep.subr.mxu0 0.0
    %2958 = vmatpush1.msra.mxu0 0.0
    %2959 = vmatprep.subr.mxu0 0.0
    %2960 = vmatpush1.msra.mxu0 0.0
    %2961 = vmatprep.subr.mxu0 0.0
    %2962 = vmatpush1.msra.mxu0 0.0
    %2963 = vmatprep.subr.mxu0 0.0
    %2964 = vmatpush1.msra.mxu0 0.0
    %2965 = vmatprep.subr.mxu0 0.0
    %2966 = vmatpush1.msra.mxu0 0.0
    %2967 = vmatprep.subr.mxu0 0.0
    %2968 = vmatpush1.msra.mxu0 0.0
    %2969 = vmatprep.subr.mxu0 0.0
    %2970 = vmatpush1.msra.mxu0 0.0
    %2971 = vmatprep.subr.mxu0 0.0
    %2972 = vmatpush1.msra.mxu0 0.0
    %2973 = vmatprep.subr.mxu0 0.0
    %2974 = vmatpush1.msra.mxu0 0.0
    %2975 = vmatprep.subr.mxu0 0.0
    %2976 = vmatpush1.msra.mxu0 0.0
    %2977 = vmatprep.subr.mxu0 0.0
    %2978 = vmatpush1.msra.mxu0 0.0
    %2979 = vmatprep.subr.mxu0 0.0
    %2980 = vmatpush1.msra.mxu0 0.0
    %2981 = vmatprep.mubr.f32.mxu0 0.0
    %v2982 = vand.u32 %v58, 4294901760
    %v2983 = vsub.f32 %v58, %v2982
    %v2984 = vand.u32 %v2983, 4294901760
    %2985 = vmatmul.mubr.f32.gmra.mrb[0].mxu0 %v2984
    %v2986 = vpop.f32.mrb[0].mxu0
    %v2987 = vadd.f32 %v2905, %v2986
    %v2988 = vpop.f32.mrb[0].mxu0
    %v2989 = vadd.f32 %v2907, %v2988
    %2990 = vdwg.mxu0
    %v2991 = vand.u32 %v2611, 4294901760
    %v2992 = vsub.f32 %v2611, %v2991
    %v2993 = vand.u32 %v2992, 4294901760
    %2994 = vmatprep.subr.mxu0 %v2993
    %v2995 = vand.u32 %v2610, 4294901760
    %v2996 = vsub.f32 %v2610, %v2995
    %v2997 = vand.u32 %v2996, 4294901760
    %2998 = vmatpush1.msra.mxu0 %v2997
    %v2999 = vand.u32 %v2613, 4294901760
    %v3000 = vsub.f32 %v2613, %v2999
    %v3001 = vand.u32 %v3000, 4294901760
    %3002 = vmatprep.subr.mxu0 %v3001
    %v3003 = vand.u32 %v2612, 4294901760
    %v3004 = vsub.f32 %v2612, %v3003
    %v3005 = vand.u32 %v3004, 4294901760
    %3006 = vmatpush1.msra.mxu0 %v3005
    %v3007 = vand.u32 %v2615, 4294901760
    %v3008 = vsub.f32 %v2615, %v3007
    %v3009 = vand.u32 %v3008, 4294901760
    %3010 = vmatprep.subr.mxu0 %v3009
    %v3011 = vand.u32 %v2614, 4294901760
    %v3012 = vsub.f32 %v2614, %v3011
    %v3013 = vand.u32 %v3012, 4294901760
    %3014 = vmatpush1.msra.mxu0 %v3013
    %v3015 = vand.u32 %v2622, 4294901760
    %v3016 = vsub.f32 %v2622, %v3015
    %v3017 = vand.u32 %v3016, 4294901760
    %3018 = vmatprep.subr.mxu0 %v3017
    %v3019 = vand.u32 %v2619, 4294901760
    %v3020 = vsub.f32 %v2619, %v3019
    %v3021 = vand.u32 %v3020, 4294901760
    %3022 = vmatpush1.msra.mxu0 %v3021
    %3023 = vmatprep.subr.mxu0 0.0
    %3024 = vmatpush1.msra.mxu0 0.0
    %3025 = vmatprep.subr.mxu0 0.0
    %3026 = vmatpush1.msra.mxu0 0.0
    %3027 = vmatprep.subr.mxu0 0.0
    %3028 = vmatpush1.msra.mxu0 0.0
    %3029 = vmatprep.subr.mxu0 0.0
    %3030 = vmatpush1.msra.mxu0 0.0
    %3031 = vmatprep.subr.mxu0 0.0
    %3032 = vmatpush1.msra.mxu0 0.0
    %3033 = vmatprep.subr.mxu0 0.0
    %3034 = vmatpush1.msra.mxu0 0.0
    %3035 = vmatprep.subr.mxu0 0.0
    %3036 = vmatpush1.msra.mxu0 0.0
    %3037 = vmatprep.subr.mxu0 0.0
    %3038 = vmatpush1.msra.mxu0 0.0
    %3039 = vmatprep.subr.mxu0 0.0
    %3040 = vmatpush1.msra.mxu0 0.0
    %3041 = vmatprep.subr.mxu0 0.0
    %3042 = vmatpush1.msra.mxu0 0.0
    %3043 = vmatprep.subr.mxu0 0.0
    %3044 = vmatpush1.msra.mxu0 0.0
    %3045 = vmatprep.subr.mxu0 0.0
    %3046 = vmatpush1.msra.mxu0 0.0
    %3047 = vmatprep.subr.mxu0 0.0
    %3048 = vmatpush1.msra.mxu0 0.0
    %3049 = vmatprep.subr.mxu0 0.0
    %3050 = vmatpush1.msra.mxu0 0.0
    %3051 = vmatprep.subr.mxu0 0.0
    %3052 = vmatpush1.msra.mxu0 0.0
    %3053 = vmatprep.subr.mxu0 0.0
    %3054 = vmatpush1.msra.mxu0 0.0
    %3055 = vmatprep.subr.mxu0 0.0
    %3056 = vmatpush1.msra.mxu0 0.0
    %3057 = vmatprep.subr.mxu0 0.0
    %3058 = vmatpush1.msra.mxu0 0.0
    %3059 = vmatprep.subr.mxu0 0.0
    %3060 = vmatpush1.msra.mxu0 0.0
    %3061 = vmatprep.subr.mxu0 0.0
    %3062 = vmatpush1.msra.mxu0 0.0
    %3063 = vmatprep.subr.mxu0 0.0
    %3064 = vmatpush1.msra.mxu0 0.0
    %3065 = vmatprep.subr.mxu0 0.0
    %3066 = vmatpush1.msra.mxu0 0.0
    %3067 = vmatprep.subr.mxu0 0.0
    %3068 = vmatpush1.msra.mxu0 0.0
    %3069 = vmatprep.subr.mxu0 0.0
    %3070 = vmatpush1.msra.mxu0 0.0
    %3071 = vmatprep.subr.mxu0 0.0
    %3072 = vmatpush1.msra.mxu0 0.0
    %3073 = vmatprep.subr.mxu0 0.0
    %3074 = vmatpush1.msra.mxu0 0.0
    %3075 = vmatprep.subr.mxu0 0.0
    %3076 = vmatpush1.msra.mxu0 0.0
    %3077 = vmatprep.subr.mxu0 0.0
    %3078 = vmatpush1.msra.mxu0 0.0
    %3079 = vmatprep.mubr.f32.mxu0 0.0
    %v3080 = vand.u32 %v58, 4294901760
    %3081 = vmatmul.mubr.f32.gmra.mrb[0].mxu0 %v3080
    %v3082 = vpop.f32.mrb[0].mxu0
    %v3083 = vadd.f32 %v2987, %v3082
    %v3084 = vpop.f32.mrb[0].mxu0
    %v3085 = vadd.f32 %v2989, %v3084
    %3086 = vdwg.mxu0
    %v3087 = vand.u32 %v2611, 4294901760
    %3088 = vmatprep.subr.mxu0 %v3087
    %v3089 = vand.u32 %v2610, 4294901760
    %3090 = vmatpush1.msra.mxu0 %v3089
    %v3091 = vand.u32 %v2613, 4294901760
    %3092 = vmatprep.subr.mxu0 %v3091
    %v3093 = vand.u32 %v2612, 4294901760
    %3094 = vmatpush1.msra.mxu0 %v3093
    %v3095 = vand.u32 %v2615, 4294901760
    %3096 = vmatprep.subr.mxu0 %v3095
    %v3097 = vand.u32 %v2614, 4294901760
    %3098 = vmatpush1.msra.mxu0 %v3097
    %v3099 = vand.u32 %v2622, 4294901760
    %3100 = vmatprep.subr.mxu0 %v3099
    %v3101 = vand.u32 %v2619, 4294901760
    %3102 = vmatpush1.msra.mxu0 %v3101
    %3103 = vmatprep.subr.mxu0 0.0
    %3104 = vmatpush1.msra.mxu0 0.0
    %3105 = vmatprep.subr.mxu0 0.0
    %3106 = vmatpush1.msra.mxu0 0.0
    %3107 = vmatprep.subr.mxu0 0.0
    %3108 = vmatpush1.msra.mxu0 0.0
    %3109 = vmatprep.subr.mxu0 0.0
    %3110 = vmatpush1.msra.mxu0 0.0
    %3111 = vmatprep.subr.mxu0 0.0
    %3112 = vmatpush1.msra.mxu0 0.0
    %3113 = vmatprep.subr.mxu0 0.0
    %3114 = vmatpush1.msra.mxu0 0.0
    %3115 = vmatprep.subr.mxu0 0.0
    %3116 = vmatpush1.msra.mxu0 0.0
    %3117 = vmatprep.subr.mxu0 0.0
    %3118 = vmatpush1.msra.mxu0 0.0
    %3119 = vmatprep.subr.mxu0 0.0
    %3120 = vmatpush1.msra.mxu0 0.0
    %3121 = vmatprep.subr.mxu0 0.0
    %3122 = vmatpush1.msra.mxu0 0.0
    %3123 = vmatprep.subr.mxu0 0.0
    %3124 = vmatpush1.msra.mxu0 0.0
    %3125 = vmatprep.subr.mxu0 0.0
    %3126 = vmatpush1.msra.mxu0 0.0
    %3127 = vmatprep.subr.mxu0 0.0
    %3128 = vmatpush1.msra.mxu0 0.0
    %3129 = vmatprep.subr.mxu0 0.0
    %3130 = vmatpush1.msra.mxu0 0.0
    %3131 = vmatprep.subr.mxu0 0.0
    %3132 = vmatpush1.msra.mxu0 0.0
    %3133 = vmatprep.subr.mxu0 0.0
    %3134 = vmatpush1.msra.mxu0 0.0
    %3135 = vmatprep.subr.mxu0 0.0
    %3136 = vmatpush1.msra.mxu0 0.0
    %3137 = vmatprep.subr.mxu0 0.0
    %3138 = vmatpush1.msra.mxu0 0.0
    %3139 = vmatprep.subr.mxu0 0.0
    %3140 = vmatpush1.msra.mxu0 0.0
    %3141 = vmatprep.subr.mxu0 0.0
    %3142 = vmatpush1.msra.mxu0 0.0
    %3143 = vmatprep.subr.mxu0 0.0
    %3144 = vmatpush1.msra.mxu0 0.0
    %3145 = vmatprep.subr.mxu0 0.0
    %3146 = vmatpush1.msra.mxu0 0.0
    %3147 = vmatprep.subr.mxu0 0.0
    %3148 = vmatpush1.msra.mxu0 0.0
    %3149 = vmatprep.subr.mxu0 0.0
    %3150 = vmatpush1.msra.mxu0 0.0
    %3151 = vmatprep.subr.mxu0 0.0
    %3152 = vmatpush1.msra.mxu0 0.0
    %3153 = vmatprep.subr.mxu0 0.0
    %3154 = vmatpush1.msra.mxu0 0.0
    %3155 = vmatprep.subr.mxu0 0.0
    %3156 = vmatpush1.msra.mxu0 0.0
    %3157 = vmatprep.subr.mxu0 0.0
    %3158 = vmatpush1.msra.mxu0 0.0
    %3159 = vmatprep.mubr.f32.mxu0 0.0
    %v3160 = vand.u32 %v58, 4294901760
    %3161 = vmatmul.mubr.f32.gmra.mrb[0].mxu0 %v3160
    %v3162 = vpop.f32.mrb[0].mxu0
    %v3163 = vadd.f32 %v3083, %v3162
    %v3164 = vpop.f32.mrb[0].mxu0
    %v3165 = vadd.f32 %v3085, %v3164
    %3166 = vdwg.mxu0
    %v3167 = vmax.f32 %v3163, 0.0
    %v3168 = vmax.f32 %v3165, 0.0
    %v3169 = vsub.f32 %v2607, %v3167
    %v3170 = vsub.f32 %v2608, %v3168
    %3171 = vmatprep.subr.mxu0 0.0
    %v3172 = vand.u32 %v16, 4294901760
    %3173 = vmatpush1.msra.mxu0 %v3172
    %3174 = vmatprep.subr.mxu0 0.0
    %v3175 = vand.u32 %v17, 4294901760
    %3176 = vmatpush1.msra.mxu0 %v3175
    %3177 = vmatprep.subr.mxu0 0.0
    %v3178 = vand.u32 %v18, 4294901760
    %3179 = vmatpush1.msra.mxu0 %v3178
    %3180 = vmatprep.subr.mxu0 0.0
    %v3181 = vand.u32 %v19, 4294901760
    %3182 = vmatpush1.msra.mxu0 %v3181
    %3183 = vmatprep.subr.mxu0 0.0
    %v3184 = vand.u32 %v20, 4294901760
    %3185 = vmatpush1.msra.mxu0 %v3184
    %3186 = vmatprep.subr.mxu0 0.0
    %v3187 = vand.u32 %v21, 4294901760
    %3188 = vmatpush1.msra.mxu0 %v3187
    %3189 = vmatprep.subr.mxu0 0.0
    %v3190 = vand.u32 %v22, 4294901760
    %3191 = vmatpush1.msra.mxu0 %v3190
    %3192 = vmatprep.subr.mxu0 0.0
    %v3193 = vand.u32 %v23, 4294901760
    %3194 = vmatpush1.msra.mxu0 %v3193
    %3195 = vmatprep.subr.mxu0 0.0
    %v3196 = vand.u32 %v24, 4294901760
    %3197 = vmatpush1.msra.mxu0 %v3196
    %3198 = vmatprep.subr.mxu0 0.0
    %v3199 = vand.u32 %v25, 4294901760
    %3200 = vmatpush1.msra.mxu0 %v3199
    %3201 = vmatprep.subr.mxu0 0.0
    %v3202 = vand.u32 %v26, 4294901760
    %3203 = vmatpush1.msra.mxu0 %v3202
    %3204 = vmatprep.subr.mxu0 0.0
    %v3205 = vand.u32 %v27, 4294901760
    %3206 = vmatpush1.msra.mxu0 %v3205
    %3207 = vmatprep.subr.mxu0 0.0
    %v3208 = vand.u32 %v28, 4294901760
    %3209 = vmatpush1.msra.mxu0 %v3208
    %3210 = vmatprep.subr.mxu0 0.0
    %v3211 = vand.u32 %v29, 4294901760
    %3212 = vmatpush1.msra.mxu0 %v3211
    %3213 = vmatprep.subr.mxu0 0.0
    %v3214 = vand.u32 %v30, 4294901760
    %3215 = vmatpush1.msra.mxu0 %v3214
    %3216 = vmatprep.subr.mxu0 0.0
    %v3217 = vand.u32 %v31, 4294901760
    %3218 = vmatpush1.msra.mxu0 %v3217
    %3219 = vmatprep.subr.mxu0 0.0
    %v3220 = vand.u32 %v32, 4294901760
    %3221 = vmatpush1.msra.mxu0 %v3220
    %3222 = vmatprep.subr.mxu0 0.0
    %v3223 = vand.u32 %v33, 4294901760
    %3224 = vmatpush1.msra.mxu0 %v3223
    %3225 = vmatprep.subr.mxu0 0.0
    %v3226 = vand.u32 %v34, 4294901760
    %3227 = vmatpush1.msra.mxu0 %v3226
    %3228 = vmatprep.subr.mxu0 0.0
    %v3229 = vand.u32 %v35, 4294901760
    %3230 = vmatpush1.msra.mxu0 %v3229
    %3231 = vmatprep.subr.mxu0 0.0
    %v3232 = vand.u32 %v36, 4294901760
    %3233 = vmatpush1.msra.mxu0 %v3232
    %3234 = vmatprep.subr.mxu0 0.0
    %v3235 = vand.u32 %v37, 4294901760
    %3236 = vmatpush1.msra.mxu0 %v3235
    %3237 = vmatprep.subr.mxu0 0.0
    %v3238 = vand.u32 %v38, 4294901760
    %3239 = vmatpush1.msra.mxu0 %v3238
    %3240 = vmatprep.subr.mxu0 0.0
    %v3241 = vand.u32 %v39, 4294901760
    %3242 = vmatpush1.msra.mxu0 %v3241
    %3243 = vmatprep.subr.mxu0 0.0
    %v3244 = vand.u32 %v40, 4294901760
    %3245 = vmatpush1.msra.mxu0 %v3244
    %3246 = vmatprep.subr.mxu0 0.0
    %v3247 = vand.u32 %v41, 4294901760
    %3248 = vmatpush1.msra.mxu0 %v3247
    %3249 = vmatprep.subr.mxu0 0.0
    %v3250 = vand.u32 %v42, 4294901760
    %3251 = vmatpush1.msra.mxu0 %v3250
    %3252 = vmatprep.subr.mxu0 0.0
    %v3253 = vand.u32 %v43, 4294901760
    %3254 = vmatpush1.msra.mxu0 %v3253
    %3255 = vmatprep.subr.mxu0 0.0
    %v3256 = vand.u32 %v44, 4294901760
    %3257 = vmatpush1.msra.mxu0 %v3256
    %3258 = vmatprep.subr.mxu0 0.0
    %v3259 = vand.u32 %v45, 4294901760
    %3260 = vmatpush1.msra.mxu0 %v3259
    %3261 = vmatprep.subr.mxu0 0.0
    %v3262 = vand.u32 %v46, 4294901760
    %3263 = vmatpush1.msra.mxu0 %v3262
    %3264 = vmatprep.subr.mxu0 0.0
    %v3265 = vand.u32 %v47, 4294901760
    %3266 = vmatpush1.msra.mxu0 %v3265
    %v3267 = vand.u32 %v3170, 4294901760
    %v3268 = vsub.f32 %v3170, %v3267
    %v3269 = vand.u32 %v3268, 4294901760
    %v3270 = vsub.f32 %v3268, %v3269
    %v3271 = vand.u32 %v3270, 4294901760
    %3272 = vmatprep.mubr.f32.mxu0 %v3271
    %v3273 = vand.u32 %v3169, 4294901760
    %v3274 = vsub.f32 %v3169, %v3273
    %v3275 = vand.u32 %v3274, 4294901760
    %v3276 = vsub.f32 %v3274, %v3275
    %v3277 = vand.u32 %v3276, 4294901760
    %3278 = vmatmul.mubr.f32.gmra.mrb[0].mxu0 %v3277
    %v3279 = vpop.f32.mrb[0].mxu0
    %v3280 = vadd.f32 0.0, %v3279
    %v3281 = vpop.f32.mrb[0].mxu0
    %3282 = vdwg.mxu0
    %3283 = vmatprep.subr.mxu0 0.0
    %v3284 = vand.u32 %v16, 4294901760
    %v3285 = vsub.f32 %v16, %v3284
    %v3286 = vand.u32 %v3285, 4294901760
    %v3287 = vsub.f32 %v3285, %v3286
    %v3288 = vand.u32 %v3287, 4294901760
    %3289 = vmatpush1.msra.mxu0 %v3288
    %3290 = vmatprep.subr.mxu0 0.0
    %v3291 = vand.u32 %v17, 4294901760
    %v3292 = vsub.f32 %v17, %v3291
    %v3293 = vand.u32 %v3292, 4294901760
    %v3294 = vsub.f32 %v3292, %v3293
    %v3295 = vand.u32 %v3294, 4294901760
    %3296 = vmatpush1.msra.mxu0 %v3295
    %3297 = vmatprep.subr.mxu0 0.0
    %v3298 = vand.u32 %v18, 4294901760
    %v3299 = vsub.f32 %v18, %v3298
    %v3300 = vand.u32 %v3299, 4294901760
    %v3301 = vsub.f32 %v3299, %v3300
    %v3302 = vand.u32 %v3301, 4294901760
    %3303 = vmatpush1.msra.mxu0 %v3302
    %3304 = vmatprep.subr.mxu0 0.0
    %v3305 = vand.u32 %v19, 4294901760
    %v3306 = vsub.f32 %v19, %v3305
    %v3307 = vand.u32 %v3306, 4294901760
    %v3308 = vsub.f32 %v3306, %v3307
    %v3309 = vand.u32 %v3308, 4294901760
    %3310 = vmatpush1.msra.mxu0 %v3309
    %3311 = vmatprep.subr.mxu0 0.0
    %v3312 = vand.u32 %v20, 4294901760
    %v3313 = vsub.f32 %v20, %v3312
    %v3314 = vand.u32 %v3313, 4294901760
    %v3315 = vsub.f32 %v3313, %v3314
    %v3316 = vand.u32 %v3315, 4294901760
    %3317 = vmatpush1.msra.mxu0 %v3316
    %3318 = vmatprep.subr.mxu0 0.0
    %v3319 = vand.u32 %v21, 4294901760
    %v3320 = vsub.f32 %v21, %v3319
    %v3321 = vand.u32 %v3320, 4294901760
    %v3322 = vsub.f32 %v3320, %v3321
    %v3323 = vand.u32 %v3322, 4294901760
    %3324 = vmatpush1.msra.mxu0 %v3323
    %3325 = vmatprep.subr.mxu0 0.0
    %v3326 = vand.u32 %v22, 4294901760
    %v3327 = vsub.f32 %v22, %v3326
    %v3328 = vand.u32 %v3327, 4294901760
    %v3329 = vsub.f32 %v3327, %v3328
    %v3330 = vand.u32 %v3329, 4294901760
    %3331 = vmatpush1.msra.mxu0 %v3330
    %3332 = vmatprep.subr.mxu0 0.0
    %v3333 = vand.u32 %v23, 4294901760
    %v3334 = vsub.f32 %v23, %v3333
    %v3335 = vand.u32 %v3334, 4294901760
    %v3336 = vsub.f32 %v3334, %v3335
    %v3337 = vand.u32 %v3336, 4294901760
    %3338 = vmatpush1.msra.mxu0 %v3337
    %3339 = vmatprep.subr.mxu0 0.0
    %v3340 = vand.u32 %v24, 4294901760
    %v3341 = vsub.f32 %v24, %v3340
    %v3342 = vand.u32 %v3341, 4294901760
    %v3343 = vsub.f32 %v3341, %v3342
    %v3344 = vand.u32 %v3343, 4294901760
    %3345 = vmatpush1.msra.mxu0 %v3344
    %3346 = vmatprep.subr.mxu0 0.0
    %v3347 = vand.u32 %v25, 4294901760
    %v3348 = vsub.f32 %v25, %v3347
    %v3349 = vand.u32 %v3348, 4294901760
    %v3350 = vsub.f32 %v3348, %v3349
    %v3351 = vand.u32 %v3350, 4294901760
    %3352 = vmatpush1.msra.mxu0 %v3351
    %3353 = vmatprep.subr.mxu0 0.0
    %v3354 = vand.u32 %v26, 4294901760
    %v3355 = vsub.f32 %v26, %v3354
    %v3356 = vand.u32 %v3355, 4294901760
    %v3357 = vsub.f32 %v3355, %v3356
    %v3358 = vand.u32 %v3357, 4294901760
    %3359 = vmatpush1.msra.mxu0 %v3358
    %3360 = vmatprep.subr.mxu0 0.0
    %v3361 = vand.u32 %v27, 4294901760
    %v3362 = vsub.f32 %v27, %v3361
    %v3363 = vand.u32 %v3362, 4294901760
    %v3364 = vsub.f32 %v3362, %v3363
    %v3365 = vand.u32 %v3364, 4294901760
    %3366 = vmatpush1.msra.mxu0 %v3365
    %3367 = vmatprep.subr.mxu0 0.0
    %v3368 = vand.u32 %v28, 4294901760
    %v3369 = vsub.f32 %v28, %v3368
    %v3370 = vand.u32 %v3369, 4294901760
    %v3371 = vsub.f32 %v3369, %v3370
    %v3372 = vand.u32 %v3371, 4294901760
    %3373 = vmatpush1.msra.mxu0 %v3372
    %3374 = vmatprep.subr.mxu0 0.0
    %v3375 = vand.u32 %v29, 4294901760
    %v3376 = vsub.f32 %v29, %v3375
    %v3377 = vand.u32 %v3376, 4294901760
    %v3378 = vsub.f32 %v3376, %v3377
    %v3379 = vand.u32 %v3378, 4294901760
    %3380 = vmatpush1.msra.mxu0 %v3379
    %3381 = vmatprep.subr.mxu0 0.0
    %v3382 = vand.u32 %v30, 4294901760
    %v3383 = vsub.f32 %v30, %v3382
    %v3384 = vand.u32 %v3383, 4294901760
    %v3385 = vsub.f32 %v3383, %v3384
    %v3386 = vand.u32 %v3385, 4294901760
    %3387 = vmatpush1.msra.mxu0 %v3386
    %3388 = vmatprep.subr.mxu0 0.0
    %v3389 = vand.u32 %v31, 4294901760
    %v3390 = vsub.f32 %v31, %v3389
    %v3391 = vand.u32 %v3390, 4294901760
    %v3392 = vsub.f32 %v3390, %v3391
    %v3393 = vand.u32 %v3392, 4294901760
    %3394 = vmatpush1.msra.mxu0 %v3393
    %3395 = vmatprep.subr.mxu0 0.0
    %v3396 = vand.u32 %v32, 4294901760
    %v3397 = vsub.f32 %v32, %v3396
    %v3398 = vand.u32 %v3397, 4294901760
    %v3399 = vsub.f32 %v3397, %v3398
    %v3400 = vand.u32 %v3399, 4294901760
    %3401 = vmatpush1.msra.mxu0 %v3400
    %3402 = vmatprep.subr.mxu0 0.0
    %v3403 = vand.u32 %v33, 4294901760
    %v3404 = vsub.f32 %v33, %v3403
    %v3405 = vand.u32 %v3404, 4294901760
    %v3406 = vsub.f32 %v3404, %v3405
    %v3407 = vand.u32 %v3406, 4294901760
    %3408 = vmatpush1.msra.mxu0 %v3407
    %3409 = vmatprep.subr.mxu0 0.0
    %v3410 = vand.u32 %v34, 4294901760
    %v3411 = vsub.f32 %v34, %v3410
    %v3412 = vand.u32 %v3411, 4294901760
    %v3413 = vsub.f32 %v3411, %v3412
    %v3414 = vand.u32 %v3413, 4294901760
    %3415 = vmatpush1.msra.mxu0 %v3414
    %3416 = vmatprep.subr.mxu0 0.0
    %v3417 = vand.u32 %v35, 4294901760
    %v3418 = vsub.f32 %v35, %v3417
    %v3419 = vand.u32 %v3418, 4294901760
    %v3420 = vsub.f32 %v3418, %v3419
    %v3421 = vand.u32 %v3420, 4294901760
    %3422 = vmatpush1.msra.mxu0 %v3421
    %3423 = vmatprep.subr.mxu0 0.0
    %v3424 = vand.u32 %v36, 4294901760
    %v3425 = vsub.f32 %v36, %v3424
    %v3426 = vand.u32 %v3425, 4294901760
    %v3427 = vsub.f32 %v3425, %v3426
    %v3428 = vand.u32 %v3427, 4294901760
    %3429 = vmatpush1.msra.mxu0 %v3428
    %3430 = vmatprep.subr.mxu0 0.0
    %v3431 = vand.u32 %v37, 4294901760
    %v3432 = vsub.f32 %v37, %v3431
    %v3433 = vand.u32 %v3432, 4294901760
    %v3434 = vsub.f32 %v3432, %v3433
    %v3435 = vand.u32 %v3434, 4294901760
    %3436 = vmatpush1.msra.mxu0 %v3435
    %3437 = vmatprep.subr.mxu0 0.0
    %v3438 = vand.u32 %v38, 4294901760
    %v3439 = vsub.f32 %v38, %v3438
    %v3440 = vand.u32 %v3439, 4294901760
    %v3441 = vsub.f32 %v3439, %v3440
    %v3442 = vand.u32 %v3441, 4294901760
    %3443 = vmatpush1.msra.mxu0 %v3442
    %3444 = vmatprep.subr.mxu0 0.0
    %v3445 = vand.u32 %v39, 4294901760
    %v3446 = vsub.f32 %v39, %v3445
    %v3447 = vand.u32 %v3446, 4294901760
    %v3448 = vsub.f32 %v3446, %v3447
    %v3449 = vand.u32 %v3448, 4294901760
    %3450 = vmatpush1.msra.mxu0 %v3449
    %3451 = vmatprep.subr.mxu0 0.0
    %v3452 = vand.u32 %v40, 4294901760
    %v3453 = vsub.f32 %v40, %v3452
    %v3454 = vand.u32 %v3453, 4294901760
    %v3455 = vsub.f32 %v3453, %v3454
    %v3456 = vand.u32 %v3455, 4294901760
    %3457 = vmatpush1.msra.mxu0 %v3456
    %3458 = vmatprep.subr.mxu0 0.0
    %v3459 = vand.u32 %v41, 4294901760
    %v3460 = vsub.f32 %v41, %v3459
    %v3461 = vand.u32 %v3460, 4294901760
    %v3462 = vsub.f32 %v3460, %v3461
    %v3463 = vand.u32 %v3462, 4294901760
    %3464 = vmatpush1.msra.mxu0 %v3463
    %3465 = vmatprep.subr.mxu0 0.0
    %v3466 = vand.u32 %v42, 4294901760
    %v3467 = vsub.f32 %v42, %v3466
    %v3468 = vand.u32 %v3467, 4294901760
    %v3469 = vsub.f32 %v3467, %v3468
    %v3470 = vand.u32 %v3469, 4294901760
    %3471 = vmatpush1.msra.mxu0 %v3470
    %3472 = vmatprep.subr.mxu0 0.0
    %v3473 = vand.u32 %v43, 4294901760
    %v3474 = vsub.f32 %v43, %v3473
    %v3475 = vand.u32 %v3474, 4294901760
    %v3476 = vsub.f32 %v3474, %v3475
    %v3477 = vand.u32 %v3476, 4294901760
    %3478 = vmatpush1.msra.mxu0 %v3477
    %3479 = vmatprep.subr.mxu0 0.0
    %v3480 = vand.u32 %v44, 4294901760
    %v3481 = vsub.f32 %v44, %v3480
    %v3482 = vand.u32 %v3481, 4294901760
    %v3483 = vsub.f32 %v3481, %v3482
    %v3484 = vand.u32 %v3483, 4294901760
    %3485 = vmatpush1.msra.mxu0 %v3484
    %3486 = vmatprep.subr.mxu0 0.0
    %v3487 = vand.u32 %v45, 4294901760
    %v3488 = vsub.f32 %v45, %v3487
    %v3489 = vand.u32 %v3488, 4294901760
    %v3490 = vsub.f32 %v3488, %v3489
    %v3491 = vand.u32 %v3490, 4294901760
    %3492 = vmatpush1.msra.mxu0 %v3491
    %3493 = vmatprep.subr.mxu0 0.0
    %v3494 = vand.u32 %v46, 4294901760
    %v3495 = vsub.f32 %v46, %v3494
    %v3496 = vand.u32 %v3495, 4294901760
    %v3497 = vsub.f32 %v3495, %v3496
    %v3498 = vand.u32 %v3497, 4294901760
    %3499 = vmatpush1.msra.mxu0 %v3498
    %3500 = vmatprep.subr.mxu0 0.0
    %v3501 = vand.u32 %v47, 4294901760
    %v3502 = vsub.f32 %v47, %v3501
    %v3503 = vand.u32 %v3502, 4294901760
    %v3504 = vsub.f32 %v3502, %v3503
    %v3505 = vand.u32 %v3504, 4294901760
    %3506 = vmatpush1.msra.mxu0 %v3505
    %v3507 = vand.u32 %v3170, 4294901760
    %3508 = vmatprep.mubr.f32.mxu0 %v3507
    %v3509 = vand.u32 %v3169, 4294901760
    %3510 = vmatmul.mubr.f32.gmra.mrb[0].mxu0 %v3509
    %v3511 = vpop.f32.mrb[0].mxu0
    %v3512 = vadd.f32 %v3280, %v3511
    %v3513 = vpop.f32.mrb[0].mxu0
    %3514 = vdwg.mxu0
    %3515 = vmatprep.subr.mxu0 0.0
    %v3516 = vand.u32 %v16, 4294901760
    %v3517 = vsub.f32 %v16, %v3516
    %3518 = vmatpush1.msra.mxu0 %v3517
    %3519 = vmatprep.subr.mxu0 0.0
    %v3520 = vand.u32 %v17, 4294901760
    %v3521 = vsub.f32 %v17, %v3520
    %3522 = vmatpush1.msra.mxu0 %v3521
    %3523 = vmatprep.subr.mxu0 0.0
    %v3524 = vand.u32 %v18, 4294901760
    %v3525 = vsub.f32 %v18, %v3524
    %3526 = vmatpush1.msra.mxu0 %v3525
    %3527 = vmatprep.subr.mxu0 0.0
    %v3528 = vand.u32 %v19, 4294901760
    %v3529 = vsub.f32 %v19, %v3528
    %3530 = vmatpush1.msra.mxu0 %v3529
    %3531 = vmatprep.subr.mxu0 0.0
    %v3532 = vand.u32 %v20, 4294901760
    %v3533 = vsub.f32 %v20, %v3532
    %3534 = vmatpush1.msra.mxu0 %v3533
    %3535 = vmatprep.subr.mxu0 0.0
    %v3536 = vand.u32 %v21, 4294901760
    %v3537 = vsub.f32 %v21, %v3536
    %3538 = vmatpush1.msra.mxu0 %v3537
    %3539 = vmatprep.subr.mxu0 0.0
    %v3540 = vand.u32 %v22, 4294901760
    %v3541 = vsub.f32 %v22, %v3540
    %3542 = vmatpush1.msra.mxu0 %v3541
    %3543 = vmatprep.subr.mxu0 0.0
    %v3544 = vand.u32 %v23, 4294901760
    %v3545 = vsub.f32 %v23, %v3544
    %3546 = vmatpush1.msra.mxu0 %v3545
    %3547 = vmatprep.subr.mxu0 0.0
    %v3548 = vand.u32 %v24, 4294901760
    %v3549 = vsub.f32 %v24, %v3548
    %3550 = vmatpush1.msra.mxu0 %v3549
    %3551 = vmatprep.subr.mxu0 0.0
    %v3552 = vand.u32 %v25, 4294901760
    %v3553 = vsub.f32 %v25, %v3552
    %3554 = vmatpush1.msra.mxu0 %v3553
    %3555 = vmatprep.subr.mxu0 0.0
    %v3556 = vand.u32 %v26, 4294901760
    %v3557 = vsub.f32 %v26, %v3556
    %3558 = vmatpush1.msra.mxu0 %v3557
    %3559 = vmatprep.subr.mxu0 0.0
    %v3560 = vand.u32 %v27, 4294901760
    %v3561 = vsub.f32 %v27, %v3560
    %3562 = vmatpush1.msra.mxu0 %v3561
    %3563 = vmatprep.subr.mxu0 0.0
    %v3564 = vand.u32 %v28, 4294901760
    %v3565 = vsub.f32 %v28, %v3564
    %3566 = vmatpush1.msra.mxu0 %v3565
    %3567 = vmatprep.subr.mxu0 0.0
    %v3568 = vand.u32 %v29, 4294901760
    %v3569 = vsub.f32 %v29, %v3568
    %3570 = vmatpush1.msra.mxu0 %v3569
    %3571 = vmatprep.subr.mxu0 0.0
    %v3572 = vand.u32 %v30, 4294901760
    %v3573 = vsub.f32 %v30, %v3572
    %3574 = vmatpush1.msra.mxu0 %v3573
    %3575 = vmatprep.subr.mxu0 0.0
    %v3576 = vand.u32 %v31, 4294901760
    %v3577 = vsub.f32 %v31, %v3576
    %3578 = vmatpush1.msra.mxu0 %v3577
    %3579 = vmatprep.subr.mxu0 0.0
    %v3580 = vand.u32 %v32, 4294901760
    %v3581 = vsub.f32 %v32, %v3580
    %3582 = vmatpush1.msra.mxu0 %v3581
    %3583 = vmatprep.subr.mxu0 0.0
    %v3584 = vand.u32 %v33, 4294901760
    %v3585 = vsub.f32 %v33, %v3584
    %3586 = vmatpush1.msra.mxu0 %v3585
    %3587 = vmatprep.subr.mxu0 0.0
    %v3588 = vand.u32 %v34, 4294901760
    %v3589 = vsub.f32 %v34, %v3588
    %3590 = vmatpush1.msra.mxu0 %v3589
    %3591 = vmatprep.subr.mxu0 0.0
    %v3592 = vand.u32 %v35, 4294901760
    %v3593 = vsub.f32 %v35, %v3592
    %3594 = vmatpush1.msra.mxu0 %v3593
    %3595 = vmatprep.subr.mxu0 0.0
    %v3596 = vand.u32 %v36, 4294901760
    %v3597 = vsub.f32 %v36, %v3596
    %3598 = vmatpush1.msra.mxu0 %v3597
    %3599 = vmatprep.subr.mxu0 0.0
    %v3600 = vand.u32 %v37, 4294901760
    %v3601 = vsub.f32 %v37, %v3600
    %3602 = vmatpush1.msra.mxu0 %v3601
    %3603 = vmatprep.subr.mxu0 0.0
    %v3604 = vand.u32 %v38, 4294901760
    %v3605 = vsub.f32 %v38, %v3604
    %3606 = vmatpush1.msra.mxu0 %v3605
    %3607 = vmatprep.subr.mxu0 0.0
    %v3608 = vand.u32 %v39, 4294901760
    %v3609 = vsub.f32 %v39, %v3608
    %3610 = vmatpush1.msra.mxu0 %v3609
    %3611 = vmatprep.subr.mxu0 0.0
    %v3612 = vand.u32 %v40, 4294901760
    %v3613 = vsub.f32 %v40, %v3612
    %3614 = vmatpush1.msra.mxu0 %v3613
    %3615 = vmatprep.subr.mxu0 0.0
    %v3616 = vand.u32 %v41, 4294901760
    %v3617 = vsub.f32 %v41, %v3616
    %3618 = vmatpush1.msra.mxu0 %v3617
    %3619 = vmatprep.subr.mxu0 0.0
    %v3620 = vand.u32 %v42, 4294901760
    %v3621 = vsub.f32 %v42, %v3620
    %3622 = vmatpush1.msra.mxu0 %v3621
    %3623 = vmatprep.subr.mxu0 0.0
    %v3624 = vand.u32 %v43, 4294901760
    %v3625 = vsub.f32 %v43, %v3624
    %3626 = vmatpush1.msra.mxu0 %v3625
    %3627 = vmatprep.subr.mxu0 0.0
    %v3628 = vand.u32 %v44, 4294901760
    %v3629 = vsub.f32 %v44, %v3628
    %3630 = vmatpush1.msra.mxu0 %v3629
    %3631 = vmatprep.subr.mxu0 0.0
    %v3632 = vand.u32 %v45, 4294901760
    %v3633 = vsub.f32 %v45, %v3632
    %3634 = vmatpush1.msra.mxu0 %v3633
    %3635 = vmatprep.subr.mxu0 0.0
    %v3636 = vand.u32 %v46, 4294901760
    %v3637 = vsub.f32 %v46, %v3636
    %3638 = vmatpush1.msra.mxu0 %v3637
    %3639 = vmatprep.subr.mxu0 0.0
    %v3640 = vand.u32 %v47, 4294901760
    %v3641 = vsub.f32 %v47, %v3640
    %3642 = vmatpush1.msra.mxu0 %v3641
    %v3643 = vand.u32 %v3170, 4294901760
    %v3644 = vsub.f32 %v3170, %v3643
    %3645 = vmatprep.mubr.f32.mxu0 %v3644
    %v3646 = vand.u32 %v3169, 4294901760
    %v3647 = vsub.f32 %v3169, %v3646
    %3648 = vmatmul.mubr.f32.gmra.mrb[0].mxu0 %v3647
    %v3649 = vpop.f32.mrb[0].mxu0
    %v3650 = vadd.f32 %v3512, %v3649
    %v3651 = vpop.f32.mrb[0].mxu0
    %3652 = vdwg.mxu0
    %3653 = vmatprep.subr.mxu0 0.0
    %v3654 = vand.u32 %v16, 4294901760
    %3655 = vmatpush1.msra.mxu0 %v3654
    %3656 = vmatprep.subr.mxu0 0.0
    %v3657 = vand.u32 %v17, 4294901760
    %3658 = vmatpush1.msra.mxu0 %v3657
    %3659 = vmatprep.subr.mxu0 0.0
    %v3660 = vand.u32 %v18, 4294901760
    %3661 = vmatpush1.msra.mxu0 %v3660
    %3662 = vmatprep.subr.mxu0 0.0
    %v3663 = vand.u32 %v19, 4294901760
    %3664 = vmatpush1.msra.mxu0 %v3663
    %3665 = vmatprep.subr.mxu0 0.0
    %v3666 = vand.u32 %v20, 4294901760
    %3667 = vmatpush1.msra.mxu0 %v3666
    %3668 = vmatprep.subr.mxu0 0.0
    %v3669 = vand.u32 %v21, 4294901760
    %3670 = vmatpush1.msra.mxu0 %v3669
    %3671 = vmatprep.subr.mxu0 0.0
    %v3672 = vand.u32 %v22, 4294901760
    %3673 = vmatpush1.msra.mxu0 %v3672
    %3674 = vmatprep.subr.mxu0 0.0
    %v3675 = vand.u32 %v23, 4294901760
    %3676 = vmatpush1.msra.mxu0 %v3675
    %3677 = vmatprep.subr.mxu0 0.0
    %v3678 = vand.u32 %v24, 4294901760
    %3679 = vmatpush1.msra.mxu0 %v3678
    %3680 = vmatprep.subr.mxu0 0.0
    %v3681 = vand.u32 %v25, 4294901760
    %3682 = vmatpush1.msra.mxu0 %v3681
    %3683 = vmatprep.subr.mxu0 0.0
    %v3684 = vand.u32 %v26, 4294901760
    %3685 = vmatpush1.msra.mxu0 %v3684
    %3686 = vmatprep.subr.mxu0 0.0
    %v3687 = vand.u32 %v27, 4294901760
    %3688 = vmatpush1.msra.mxu0 %v3687
    %3689 = vmatprep.subr.mxu0 0.0
    %v3690 = vand.u32 %v28, 4294901760
    %3691 = vmatpush1.msra.mxu0 %v3690
    %3692 = vmatprep.subr.mxu0 0.0
    %v3693 = vand.u32 %v29, 4294901760
    %3694 = vmatpush1.msra.mxu0 %v3693
    %3695 = vmatprep.subr.mxu0 0.0
    %v3696 = vand.u32 %v30, 4294901760
    %3697 = vmatpush1.msra.mxu0 %v3696
    %3698 = vmatprep.subr.mxu0 0.0
    %v3699 = vand.u32 %v31, 4294901760
    %3700 = vmatpush1.msra.mxu0 %v3699
    %3701 = vmatprep.subr.mxu0 0.0
    %v3702 = vand.u32 %v32, 4294901760
    %3703 = vmatpush1.msra.mxu0 %v3702
    %3704 = vmatprep.subr.mxu0 0.0
    %v3705 = vand.u32 %v33, 4294901760
    %3706 = vmatpush1.msra.mxu0 %v3705
    %3707 = vmatprep.subr.mxu0 0.0
    %v3708 = vand.u32 %v34, 4294901760
    %3709 = vmatpush1.msra.mxu0 %v3708
    %3710 = vmatprep.subr.mxu0 0.0
    %v3711 = vand.u32 %v35, 4294901760
    %3712 = vmatpush1.msra.mxu0 %v3711
    %3713 = vmatprep.subr.mxu0 0.0
    %v3714 = vand.u32 %v36, 4294901760
    %3715 = vmatpush1.msra.mxu0 %v3714
    %3716 = vmatprep.subr.mxu0 0.0
    %v3717 = vand.u32 %v37, 4294901760
    %3718 = vmatpush1.msra.mxu0 %v3717
    %3719 = vmatprep.subr.mxu0 0.0
    %v3720 = vand.u32 %v38, 4294901760
    %3721 = vmatpush1.msra.mxu0 %v3720
    %3722 = vmatprep.subr.mxu0 0.0
    %v3723 = vand.u32 %v39, 4294901760
    %3724 = vmatpush1.msra.mxu0 %v3723
    %3725 = vmatprep.subr.mxu0 0.0
    %v3726 = vand.u32 %v40, 4294901760
    %3727 = vmatpush1.msra.mxu0 %v3726
    %3728 = vmatprep.subr.mxu0 0.0
    %v3729 = vand.u32 %v41, 4294901760
    %3730 = vmatpush1.msra.mxu0 %v3729
    %3731 = vmatprep.subr.mxu0 0.0
    %v3732 = vand.u32 %v42, 4294901760
    %3733 = vmatpush1.msra.mxu0 %v3732
    %3734 = vmatprep.subr.mxu0 0.0
    %v3735 = vand.u32 %v43, 4294901760
    %3736 = vmatpush1.msra.mxu0 %v3735
    %3737 = vmatprep.subr.mxu0 0.0
    %v3738 = vand.u32 %v44, 4294901760
    %3739 = vmatpush1.msra.mxu0 %v3738
    %3740 = vmatprep.subr.mxu0 0.0
    %v3741 = vand.u32 %v45, 4294901760
    %3742 = vmatpush1.msra.mxu0 %v3741
    %3743 = vmatprep.subr.mxu0 0.0
    %v3744 = vand.u32 %v46, 4294901760
    %3745 = vmatpush1.msra.mxu0 %v3744
    %3746 = vmatprep.subr.mxu0 0.0
    %v3747 = vand.u32 %v47, 4294901760
    %3748 = vmatpush1.msra.mxu0 %v3747
    %v3749 = vand.u32 %v3170, 4294901760
    %v3750 = vsub.f32 %v3170, %v3749
    %v3751 = vand.u32 %v3750, 4294901760
    %3752 = vmatprep.mubr.f32.mxu0 %v3751
    %v3753 = vand.u32 %v3169, 4294901760
    %v3754 = vsub.f32 %v3169, %v3753
    %v3755 = vand.u32 %v3754, 4294901760
    %3756 = vmatmul.mubr.f32.gmra.mrb[0].mxu0 %v3755
    %v3757 = vpop.f32.mrb[0].mxu0
    %v3758 = vadd.f32 %v3650, %v3757
    %v3759 = vpop.f32.mrb[0].mxu0
    %3760 = vdwg.mxu0
    %3761 = vmatprep.subr.mxu0 0.0
    %v3762 = vand.u32 %v16, 4294901760
    %v3763 = vsub.f32 %v16, %v3762
    %v3764 = vand.u32 %v3763, 4294901760
    %3765 = vmatpush1.msra.mxu0 %v3764
    %3766 = vmatprep.subr.mxu0 0.0
    %v3767 = vand.u32 %v17, 4294901760
    %v3768 = vsub.f32 %v17, %v3767
    %v3769 = vand.u32 %v3768, 4294901760
    %3770 = vmatpush1.msra.mxu0 %v3769
    %3771 = vmatprep.subr.mxu0 0.0
    %v3772 = vand.u32 %v18, 4294901760
    %v3773 = vsub.f32 %v18, %v3772
    %v3774 = vand.u32 %v3773, 4294901760
    %3775 = vmatpush1.msra.mxu0 %v3774
    %3776 = vmatprep.subr.mxu0 0.0
    %v3777 = vand.u32 %v19, 4294901760
    %v3778 = vsub.f32 %v19, %v3777
    %v3779 = vand.u32 %v3778, 4294901760
    %3780 = vmatpush1.msra.mxu0 %v3779
    %3781 = vmatprep.subr.mxu0 0.0
    %v3782 = vand.u32 %v20, 4294901760
    %v3783 = vsub.f32 %v20, %v3782
    %v3784 = vand.u32 %v3783, 4294901760
    %3785 = vmatpush1.msra.mxu0 %v3784
    %3786 = vmatprep.subr.mxu0 0.0
    %v3787 = vand.u32 %v21, 4294901760
    %v3788 = vsub.f32 %v21, %v3787
    %v3789 = vand.u32 %v3788, 4294901760
    %3790 = vmatpush1.msra.mxu0 %v3789
    %3791 = vmatprep.subr.mxu0 0.0
    %v3792 = vand.u32 %v22, 4294901760
    %v3793 = vsub.f32 %v22, %v3792
    %v3794 = vand.u32 %v3793, 4294901760
    %3795 = vmatpush1.msra.mxu0 %v3794
    %3796 = vmatprep.subr.mxu0 0.0
    %v3797 = vand.u32 %v23, 4294901760
    %v3798 = vsub.f32 %v23, %v3797
    %v3799 = vand.u32 %v3798, 4294901760
    %3800 = vmatpush1.msra.mxu0 %v3799
    %3801 = vmatprep.subr.mxu0 0.0
    %v3802 = vand.u32 %v24, 4294901760
    %v3803 = vsub.f32 %v24, %v3802
    %v3804 = vand.u32 %v3803, 4294901760
    %3805 = vmatpush1.msra.mxu0 %v3804
    %3806 = vmatprep.subr.mxu0 0.0
    %v3807 = vand.u32 %v25, 4294901760
    %v3808 = vsub.f32 %v25, %v3807
    %v3809 = vand.u32 %v3808, 4294901760
    %3810 = vmatpush1.msra.mxu0 %v3809
    %3811 = vmatprep.subr.mxu0 0.0
    %v3812 = vand.u32 %v26, 4294901760
    %v3813 = vsub.f32 %v26, %v3812
    %v3814 = vand.u32 %v3813, 4294901760
    %3815 = vmatpush1.msra.mxu0 %v3814
    %3816 = vmatprep.subr.mxu0 0.0
    %v3817 = vand.u32 %v27, 4294901760
    %v3818 = vsub.f32 %v27, %v3817
    %v3819 = vand.u32 %v3818, 4294901760
    %3820 = vmatpush1.msra.mxu0 %v3819
    %3821 = vmatprep.subr.mxu0 0.0
    %v3822 = vand.u32 %v28, 4294901760
    %v3823 = vsub.f32 %v28, %v3822
    %v3824 = vand.u32 %v3823, 4294901760
    %3825 = vmatpush1.msra.mxu0 %v3824
    %3826 = vmatprep.subr.mxu0 0.0
    %v3827 = vand.u32 %v29, 4294901760
    %v3828 = vsub.f32 %v29, %v3827
    %v3829 = vand.u32 %v3828, 4294901760
    %3830 = vmatpush1.msra.mxu0 %v3829
    %3831 = vmatprep.subr.mxu0 0.0
    %v3832 = vand.u32 %v30, 4294901760
    %v3833 = vsub.f32 %v30, %v3832
    %v3834 = vand.u32 %v3833, 4294901760
    %3835 = vmatpush1.msra.mxu0 %v3834
    %3836 = vmatprep.subr.mxu0 0.0
    %v3837 = vand.u32 %v31, 4294901760
    %v3838 = vsub.f32 %v31, %v3837
    %v3839 = vand.u32 %v3838, 4294901760
    %3840 = vmatpush1.msra.mxu0 %v3839
    %3841 = vmatprep.subr.mxu0 0.0
    %v3842 = vand.u32 %v32, 4294901760
    %v3843 = vsub.f32 %v32, %v3842
    %v3844 = vand.u32 %v3843, 4294901760
    %3845 = vmatpush1.msra.mxu0 %v3844
    %3846 = vmatprep.subr.mxu0 0.0
    %v3847 = vand.u32 %v33, 4294901760
    %v3848 = vsub.f32 %v33, %v3847
    %v3849 = vand.u32 %v3848, 4294901760
    %3850 = vmatpush1.msra.mxu0 %v3849
    %3851 = vmatprep.subr.mxu0 0.0
    %v3852 = vand.u32 %v34, 4294901760
    %v3853 = vsub.f32 %v34, %v3852
    %v3854 = vand.u32 %v3853, 4294901760
    %3855 = vmatpush1.msra.mxu0 %v3854
    %3856 = vmatprep.subr.mxu0 0.0
    %v3857 = vand.u32 %v35, 4294901760
    %v3858 = vsub.f32 %v35, %v3857
    %v3859 = vand.u32 %v3858, 4294901760
    %3860 = vmatpush1.msra.mxu0 %v3859
    %3861 = vmatprep.subr.mxu0 0.0
    %v3862 = vand.u32 %v36, 4294901760
    %v3863 = vsub.f32 %v36, %v3862
    %v3864 = vand.u32 %v3863, 4294901760
    %3865 = vmatpush1.msra.mxu0 %v3864
    %3866 = vmatprep.subr.mxu0 0.0
    %v3867 = vand.u32 %v37, 4294901760
    %v3868 = vsub.f32 %v37, %v3867
    %v3869 = vand.u32 %v3868, 4294901760
    %3870 = vmatpush1.msra.mxu0 %v3869
    %3871 = vmatprep.subr.mxu0 0.0
    %v3872 = vand.u32 %v38, 4294901760
    %v3873 = vsub.f32 %v38, %v3872
    %v3874 = vand.u32 %v3873, 4294901760
    %3875 = vmatpush1.msra.mxu0 %v3874
    %3876 = vmatprep.subr.mxu0 0.0
    %v3877 = vand.u32 %v39, 4294901760
    %v3878 = vsub.f32 %v39, %v3877
    %v3879 = vand.u32 %v3878, 4294901760
    %3880 = vmatpush1.msra.mxu0 %v3879
    %3881 = vmatprep.subr.mxu0 0.0
    %v3882 = vand.u32 %v40, 4294901760
    %v3883 = vsub.f32 %v40, %v3882
    %v3884 = vand.u32 %v3883, 4294901760
    %3885 = vmatpush1.msra.mxu0 %v3884
    %3886 = vmatprep.subr.mxu0 0.0
    %v3887 = vand.u32 %v41, 4294901760
    %v3888 = vsub.f32 %v41, %v3887
    %v3889 = vand.u32 %v3888, 4294901760
    %3890 = vmatpush1.msra.mxu0 %v3889
    %3891 = vmatprep.subr.mxu0 0.0
    %v3892 = vand.u32 %v42, 4294901760
    %v3893 = vsub.f32 %v42, %v3892
    %v3894 = vand.u32 %v3893, 4294901760
    %3895 = vmatpush1.msra.mxu0 %v3894
    %3896 = vmatprep.subr.mxu0 0.0
    %v3897 = vand.u32 %v43, 4294901760
    %v3898 = vsub.f32 %v43, %v3897
    %v3899 = vand.u32 %v3898, 4294901760
    %3900 = vmatpush1.msra.mxu0 %v3899
    %3901 = vmatprep.subr.mxu0 0.0
    %v3902 = vand.u32 %v44, 4294901760
    %v3903 = vsub.f32 %v44, %v3902
    %v3904 = vand.u32 %v3903, 4294901760
    %3905 = vmatpush1.msra.mxu0 %v3904
    %3906 = vmatprep.subr.mxu0 0.0
    %v3907 = vand.u32 %v45, 4294901760
    %v3908 = vsub.f32 %v45, %v3907
    %v3909 = vand.u32 %v3908, 4294901760
    %3910 = vmatpush1.msra.mxu0 %v3909
    %3911 = vmatprep.subr.mxu0 0.0
    %v3912 = vand.u32 %v46, 4294901760
    %v3913 = vsub.f32 %v46, %v3912
    %v3914 = vand.u32 %v3913, 4294901760
    %3915 = vmatpush1.msra.mxu0 %v3914
    %3916 = vmatprep.subr.mxu0 0.0
    %v3917 = vand.u32 %v47, 4294901760
    %v3918 = vsub.f32 %v47, %v3917
    %v3919 = vand.u32 %v3918, 4294901760
    %3920 = vmatpush1.msra.mxu0 %v3919
    %v3921 = vand.u32 %v3170, 4294901760
    %3922 = vmatprep.mubr.f32.mxu0 %v3921
    %v3923 = vand.u32 %v3169, 4294901760
    %3924 = vmatmul.mubr.f32.gmra.mrb[0].mxu0 %v3923
    %v3925 = vpop.f32.mrb[0].mxu0
    %v3926 = vadd.f32 %v3758, %v3925
    %v3927 = vpop.f32.mrb[0].mxu0
    %3928 = vdwg.mxu0
    %3929 = vmatprep.subr.mxu0 0.0
    %v3930 = vand.u32 %v16, 4294901760
    %3931 = vmatpush1.msra.mxu0 %v3930
    %3932 = vmatprep.subr.mxu0 0.0
    %v3933 = vand.u32 %v17, 4294901760
    %3934 = vmatpush1.msra.mxu0 %v3933
    %3935 = vmatprep.subr.mxu0 0.0
    %v3936 = vand.u32 %v18, 4294901760
    %3937 = vmatpush1.msra.mxu0 %v3936
    %3938 = vmatprep.subr.mxu0 0.0
    %v3939 = vand.u32 %v19, 4294901760
    %3940 = vmatpush1.msra.mxu0 %v3939
    %3941 = vmatprep.subr.mxu0 0.0
    %v3942 = vand.u32 %v20, 4294901760
    %3943 = vmatpush1.msra.mxu0 %v3942
    %3944 = vmatprep.subr.mxu0 0.0
    %v3945 = vand.u32 %v21, 4294901760
    %3946 = vmatpush1.msra.mxu0 %v3945
    %3947 = vmatprep.subr.mxu0 0.0
    %v3948 = vand.u32 %v22, 4294901760
    %3949 = vmatpush1.msra.mxu0 %v3948
    %3950 = vmatprep.subr.mxu0 0.0
    %v3951 = vand.u32 %v23, 4294901760
    %3952 = vmatpush1.msra.mxu0 %v3951
    %3953 = vmatprep.subr.mxu0 0.0
    %v3954 = vand.u32 %v24, 4294901760
    %3955 = vmatpush1.msra.mxu0 %v3954
    %3956 = vmatprep.subr.mxu0 0.0
    %v3957 = vand.u32 %v25, 4294901760
    %3958 = vmatpush1.msra.mxu0 %v3957
    %3959 = vmatprep.subr.mxu0 0.0
    %v3960 = vand.u32 %v26, 4294901760
    %3961 = vmatpush1.msra.mxu0 %v3960
    %3962 = vmatprep.subr.mxu0 0.0
    %v3963 = vand.u32 %v27, 4294901760
    %3964 = vmatpush1.msra.mxu0 %v3963
    %3965 = vmatprep.subr.mxu0 0.0
    %v3966 = vand.u32 %v28, 4294901760
    %3967 = vmatpush1.msra.mxu0 %v3966
    %3968 = vmatprep.subr.mxu0 0.0
    %v3969 = vand.u32 %v29, 4294901760
    %3970 = vmatpush1.msra.mxu0 %v3969
    %3971 = vmatprep.subr.mxu0 0.0
    %v3972 = vand.u32 %v30, 4294901760
    %3973 = vmatpush1.msra.mxu0 %v3972
    %3974 = vmatprep.subr.mxu0 0.0
    %v3975 = vand.u32 %v31, 4294901760
    %3976 = vmatpush1.msra.mxu0 %v3975
    %3977 = vmatprep.subr.mxu0 0.0
    %v3978 = vand.u32 %v32, 4294901760
    %3979 = vmatpush1.msra.mxu0 %v3978
    %3980 = vmatprep.subr.mxu0 0.0
    %v3981 = vand.u32 %v33, 4294901760
    %3982 = vmatpush1.msra.mxu0 %v3981
    %3983 = vmatprep.subr.mxu0 0.0
    %v3984 = vand.u32 %v34, 4294901760
    %3985 = vmatpush1.msra.mxu0 %v3984
    %3986 = vmatprep.subr.mxu0 0.0
    %v3987 = vand.u32 %v35, 4294901760
    %3988 = vmatpush1.msra.mxu0 %v3987
    %3989 = vmatprep.subr.mxu0 0.0
    %v3990 = vand.u32 %v36, 4294901760
    %3991 = vmatpush1.msra.mxu0 %v3990
    %3992 = vmatprep.subr.mxu0 0.0
    %v3993 = vand.u32 %v37, 4294901760
    %3994 = vmatpush1.msra.mxu0 %v3993
    %3995 = vmatprep.subr.mxu0 0.0
    %v3996 = vand.u32 %v38, 4294901760
    %3997 = vmatpush1.msra.mxu0 %v3996
    %3998 = vmatprep.subr.mxu0 0.0
    %v3999 = vand.u32 %v39, 4294901760
    %4000 = vmatpush1.msra.mxu0 %v3999
    %4001 = vmatprep.subr.mxu0 0.0
    %v4002 = vand.u32 %v40, 4294901760
    %4003 = vmatpush1.msra.mxu0 %v4002
    %4004 = vmatprep.subr.mxu0 0.0
    %v4005 = vand.u32 %v41, 4294901760
    %4006 = vmatpush1.msra.mxu0 %v4005
    %4007 = vmatprep.subr.mxu0 0.0
    %v4008 = vand.u32 %v42, 4294901760
    %4009 = vmatpush1.msra.mxu0 %v4008
    %4010 = vmatprep.subr.mxu0 0.0
    %v4011 = vand.u32 %v43, 4294901760
    %4012 = vmatpush1.msra.mxu0 %v4011
    %4013 = vmatprep.subr.mxu0 0.0
    %v4014 = vand.u32 %v44, 4294901760
    %4015 = vmatpush1.msra.mxu0 %v4014
    %4016 = vmatprep.subr.mxu0 0.0
    %v4017 = vand.u32 %v45, 4294901760
    %4018 = vmatpush1.msra.mxu0 %v4017
    %4019 = vmatprep.subr.mxu0 0.0
    %v4020 = vand.u32 %v46, 4294901760
    %4021 = vmatpush1.msra.mxu0 %v4020
    %4022 = vmatprep.subr.mxu0 0.0
    %v4023 = vand.u32 %v47, 4294901760
    %4024 = vmatpush1.msra.mxu0 %v4023
    %v4025 = vand.u32 %v3170, 4294901760
    %4026 = vmatprep.mubr.f32.mxu0 %v4025
    %v4027 = vand.u32 %v3169, 4294901760
    %4028 = vmatmul.mubr.f32.gmra.mrb[0].mxu0 %v4027
    %v4029 = vpop.f32.mrb[0].mxu0
    %v4030 = vadd.f32 %v3926, %v4029
    %v4031 = vpop.f32.mrb[0].mxu0
    %4032 = vdwg.mxu0
    %v4033 = vmul.f32 %v4030, %v4030
    %v4034 = vsel %vm2037, %v4033, 0.0
    %4035 = vadd.xlane.f32.xlu0 %v4034
    %v4036 = vpop.xlane.xlu0 %4035
    %v4037 = vrot.slane %v4036, 4
    %v4038 = vadd.f32 %v4036, %v4037
    %v4039 = vrot.slane %v4038, 2
    %v4040 = vadd.f32 %v4038, %v4039
    %v4041 = vrot.slane %v4040, 1
    %v4042 = vadd.f32 %v4040, %v4041
    %s4043 = vtos %v4042
    %s4044 = sadd.f32 %s2048, %s4043
    %s4045 = smul.f32 %s4044, 0.0013020834
    %s4046 = scalar_lea.smem [#allocation2], 0
    %4047 = sst [smem:[%s4046]] %s4045
    // Predicated region
    $region14: #{fixed_kernel_loss.1} parent=1 // pred_check
      _
    $region15: #{fixed_kernel_loss.1} parent=1 // pred_check_branch
      %4049 = sbr.rel (0) target = $region17
    $region16: #{fixed_kernel_loss.1} parent=1 // pred_region
      %s4051 = ssub.s32 16, 16
      %4052 = vsyncadd [#allocation3], %s4051
      %4055 = dma.smem_to_hbm [#allocation2], 16, %s3, [#allocation3]
    $region17: #{fixed_kernel_loss.1} parent=1 // pred_fallthru
      _
    // Predicated region
    $region18: #{fixed_kernel_loss.1} parent=1 // pred_check
      _
    $region19: #{fixed_kernel_loss.1} parent=1 // pred_check_branch
      %4057 = sbr.rel (0) target = $region21
    $region20: #{fixed_kernel_loss.1} parent=1 // pred_region
      %4058 = dma.done [#allocation3], 16
    $region21: #{fixed_kernel_loss.1} parent=1 // pred_fallthru
      _
    %4059 = sfence
    %4060 = vsyncpa [#allocation3], 1

</llo_original>
